<compile_context>
chip_gen: v7x
topology: tpu7x:2x2x1
jax: 0.10.0
libtpu: 0.0.40
codegen_flags: <defaults>
</compile_context>

<pallas_src>
import math
import functools

import jax
import jax.numpy as jnp
from jax.experimental import pallas as pl
from jax.experimental.pallas import tpu as pltpu


OUT_PAD = 128  # lane-dense padded width for the scalar output head


# ---------------------------------------------------------------------------
# Fused forward kernel: one grid step == `batch_block` sequences, all layers.
# ---------------------------------------------------------------------------
def _fused_forward_kernel(
    x_ref, emb_w_ref, emb_b_ref,
    wq_ref, bq_ref, wqr_ref, bqr_ref,
    wk_ref, bk_ref, wkr_ref, bkr_ref,
    wv_ref, bv_ref, wo_ref, bo_ref,
    w1_ref, b1_ref, w2_ref, b2_ref,
    n1w_ref, n1b_ref, n2w_ref, n2b_ref,
    cos_ref, sin_ref, hw_ref, hb_ref,
    o_ref,
    *, num_layers, nhead, head_dim, batch_block, eps):
  Bt = batch_block
  S = x_ref.shape[1]
  in_size = x_ref.shape[2]
  n_rows = Bt * S

  def bf16(v):
    return v.astype(jnp.bfloat16)

  def layernorm(v, w, b):
    mu = jnp.mean(v, axis=-1, keepdims=True)
    var = jnp.mean((v - mu) ** 2, axis=-1, keepdims=True)
    return (v - mu) * jax.lax.rsqrt(var + eps) * w + b

  cosv = cos_ref[...]                       # (S, D) head-tiled cos
  sinv = sin_ref[...]                       # (S, D) head-tiled sin

  # Embedding; sqrt(d_model) scale already folded into emb_w / emb_b.
  x = x_ref[...].reshape(n_rows, in_size)
  h = jnp.dot(bf16(x), emb_w_ref[...],
              preferred_element_type=jnp.float32) + emb_b_ref[...]

  for l in range(num_layers):               # static unroll; weights VMEM-resident
    h16 = bf16(h)
    # q-side weights already carry 1/sqrt(head_dim); *_r weights carry the
    # RoPE rotate_half permutation (both folded at pack time).
    q_lin = jnp.dot(h16, wq_ref[l], preferred_element_type=jnp.float32) + bq_ref[l]
    q_rot = jnp.dot(h16, wqr_ref[l], preferred_element_type=jnp.float32) + bqr_ref[l]
    k_lin = jnp.dot(h16, wk_ref[l], preferred_element_type=jnp.float32) + bk_ref[l]
    k_rot = jnp.dot(h16, wkr_ref[l], preferred_element_type=jnp.float32) + bkr_ref[l]
    v_all = jnp.dot(h16, wv_ref[l], preferred_element_type=jnp.float32) + bv_ref[l]
    wo_l = wo_ref[l]                        # (D, D) bf16

    per_seq = []
    for b in range(Bt):                     # attention is per sequence
      rows = slice(b * S, (b + 1) * S)
      q = q_lin[rows] * cosv + q_rot[rows] * sinv      # (S, D) RoPE'd, pre-scaled
      k = k_lin[rows] * cosv + k_rot[rows] * sinv      # (S, D) RoPE'd
      vb = v_all[rows]
      attn_b = None
      for hh in range(nhead):               # per-head: no nhead x MXU overcompute
        cols = slice(hh * head_dim, (hh + 1) * head_dim)
        qh = bf16(q[:, cols])
        kh = bf16(k[:, cols])
        scores = jax.lax.dot_general(       # (S, S) = qh @ kh.T  (scale pre-folded)
            qh, kh, (((1,), (1,)), ((), ())),
            preferred_element_type=jnp.float32)
        scores = scores - jnp.max(scores, axis=-1, keepdims=True)
        p = jnp.exp(scores)
        p = p * pl.reciprocal(jnp.sum(p, axis=-1, keepdims=True), approx=True)
        # NOTE: dropout on attention probabilities is identity at inference.
        ctx = jnp.dot(bf16(p), bf16(vb[:, cols]),
                      preferred_element_type=jnp.float32)          # (S, hd)
        # Head h feeds rows [h*hd:(h+1)*hd] of the output projection, so heads
        # recombine by accumulation -- no context concat / transpose.
        contrib = jnp.dot(bf16(ctx), wo_l[cols, :],
                          preferred_element_type=jnp.float32)      # (S, D)
        attn_b = contrib if attn_b is None else attn_b + contrib
      per_seq.append(attn_b)
    attn = per_seq[0] if Bt == 1 else jnp.concatenate(per_seq, axis=0)
    attn = attn + bo_ref[l]

    # residual + LayerNorm 1
    h = layernorm(h + attn, n1w_ref[l], n1b_ref[l])

    # feed-forward (inner dropout = identity)
    f = jnp.dot(bf16(h), w1_ref[l], preferred_element_type=jnp.float32) + b1_ref[l]
    f = jnp.maximum(f, 0.0)                 # ReLU
    f = jnp.dot(bf16(f), w2_ref[l], preferred_element_type=jnp.float32) + b2_ref[l]

    # residual + LayerNorm 2
    h = layernorm(h + f, n2w_ref[l], n2b_ref[l])

  # Lane-dense padded output head; the real scalar output lives in column 0.
  out = jnp.dot(bf16(h), hw_ref[...],
                preferred_element_type=jnp.float32) + hb_ref[...]
  o_ref[...] = out.reshape(Bt, S, OUT_PAD)


# ---------------------------------------------------------------------------
# RoPE tables (rotary_embedding_torch, freqs_for='lang', theta=10000)
# ---------------------------------------------------------------------------
def make_rope(seq_len, head_dim, theta=10000.0):
  inv_freq = 1.0 / (theta ** (jnp.arange(0, head_dim, 2, dtype=jnp.float32) / head_dim))
  t = jnp.arange(seq_len, dtype=jnp.float32)
  freqs = jnp.outer(t, inv_freq)                 # (S, hd/2)
  freqs = jnp.repeat(freqs, 2, axis=-1)          # [f0,f0,f1,f1,...] -> (S, hd)
  cos = jnp.cos(freqs)
  sin = jnp.sin(freqs)
  # rotate_half as a matmul: out[2i] = -x[2i+1], out[2i+1] = x[2i]
  R = jnp.zeros((head_dim, head_dim), dtype=jnp.float32)
  idx = jnp.arange(0, head_dim, 2)
  R = R.at[idx + 1, idx].set(-1.0)
  R = R.at[idx, idx + 1].set(1.0)
  return cos, sin, R


# ---------------------------------------------------------------------------
# Parameter init (PyTorch-like layout: W [in, out], b [out]) and packing.
# ---------------------------------------------------------------------------
def init_params(key, input_size, d_model, nhead, num_layers, dim_feedforward):
  std = 0.05

  def dense(k, fan_in, fan_out):
    kw, kb = jax.random.split(k)
    w = jax.random.normal(kw, (fan_in, fan_out), jnp.float32) * std
    b = jax.random.normal(kb, (fan_out,), jnp.float32) * std
    return w, b

  keys = jax.random.split(key, 2 + num_layers)
  emb_w, emb_b = dense(keys[0], input_size, d_model)
  head_w, head_b = dense(keys[1], d_model, 1)

  layers = []
  for i in range(num_layers):
    lk = jax.random.split(keys[2 + i], 4)
    qkv_w, qkv_b = dense(lk[0], d_model, 3 * d_model)
    ow, ob = dense(lk[1], d_model, d_model)
    l1w, l1b = dense(lk[2], d_model, dim_feedforward)
    l2w, l2b = dense(lk[3], dim_feedforward, d_model)
    layers.append(dict(
        qkv_w=qkv_w, qkv_b=qkv_b, out_w=ow, out_b=ob,
        lin1_w=l1w, lin1_b=l1b, lin2_w=l2w, lin2_b=l2b,
        n1_w=jnp.ones((d_model,), jnp.float32),
        n1_b=jnp.zeros((d_model,), jnp.float32),
        n2_w=jnp.ones((d_model,), jnp.float32),
        n2_b=jnp.zeros((d_model,), jnp.float32)))
  return dict(emb_w=emb_w, emb_b=emb_b, head_w=head_w, head_b=head_b,
              layers=layers)


def pack_params(params, *, d_model, nhead, seq_len):
  """Stack per-layer weights, split QKV, fold scales + RoPE, pad the head."""
  D = d_model
  assert D % nhead == 0
  hd = D // nhead
  emb_scale = math.sqrt(D)
  score_scale = 1.0 / math.sqrt(hd)
  layers = params["layers"]

  def stack(fn):
    return jnp.stack([fn(lp) for lp in layers], axis=0)

  def b2d(v):
    return jnp.reshape(v, (1, -1)).astype(jnp.float32)

  cos, sin, rot_hd = make_rope(seq_len, hd)
  cos_full = jnp.tile(cos, (1, nhead))                             # (S, D)
  sin_full = jnp.tile(sin, (1, nhead))                             # (S, D)
  rot_full = jnp.kron(jnp.eye(nhead, dtype=jnp.float32), rot_hd)   # (D, D) block-diag

  def q_w(lp): return lp["qkv_w"][:, 0 * D:1 * D]
  def k_w(lp): return lp["qkv_w"][:, 1 * D:2 * D]
  def v_w(lp): return lp["qkv_w"][:, 2 * D:3 * D]
  def q_b(lp): return b2d(lp["qkv_b"][0 * D:1 * D])
  def k_b(lp): return b2d(lp["qkv_b"][1 * D:2 * D])
  def v_b(lp): return b2d(lp["qkv_b"][2 * D:3 * D])

  head_w = jnp.zeros((D, OUT_PAD), jnp.float32).at[:, 0].set(params["head_w"][:, 0])
  head_b = jnp.zeros((1, OUT_PAD), jnp.float32).at[0, 0].set(params["head_b"][0])

  return dict(
      emb_w=(params["emb_w"] * emb_scale).astype(jnp.bfloat16),
      emb_b=b2d(params["emb_b"]) * emb_scale,
      # q-side carries the 1/sqrt(head_dim) score scale; *_r carries rotate_half.
      wq=stack(lambda lp: q_w(lp) * score_scale).astype(jnp.bfloat16),
      bq=stack(lambda lp: q_b(lp) * score_scale),
      wqr=stack(lambda lp: (q_w(lp) @ rot_full) * score_scale).astype(jnp.bfloat16),
      bqr=stack(lambda lp: (q_b(lp) @ rot_full) * score_scale),
      wk=stack(k_w).astype(jnp.bfloat16),
      bk=stack(k_b),
      wkr=stack(lambda lp: k_w(lp) @ rot_full).astype(jnp.bfloat16),
      bkr=stack(lambda lp: k_b(lp) @ rot_full),
      wv=stack(v_w).astype(jnp.bfloat16),
      bv=stack(v_b),
      wo=stack(lambda lp: lp["out_w"]).astype(jnp.bfloat16),
      bo=stack(lambda lp: b2d(lp["out_b"])),
      w1=stack(lambda lp: lp["lin1_w"]).astype(jnp.bfloat16),
      b1=stack(lambda lp: b2d(lp["lin1_b"])),
      w2=stack(lambda lp: lp["lin2_w"]).astype(jnp.bfloat16),
      b2=stack(lambda lp: b2d(lp["lin2_b"])),
      n1w=stack(lambda lp: b2d(lp["n1_w"])),
      n1b=stack(lambda lp: b2d(lp["n1_b"])),
      n2w=stack(lambda lp: b2d(lp["n2_w"])),
      n2b=stack(lambda lp: b2d(lp["n2_b"])),
      cos=cos_full, sin=sin_full,
      head_w=head_w.astype(jnp.bfloat16), head_b=head_b,
  )


# ---------------------------------------------------------------------------
# Full model forward: one fused pallas_call.
# ---------------------------------------------------------------------------
def transformer_forward(packed, x, *, d_model, nhead, batch_block=1):
  B, S, in_size = x.shape
  D = d_model
  head_dim = D // nhead
  L = packed["wq"].shape[0]
  F = packed["w1"].shape[-1]
  assert B % batch_block == 0, "batch must be divisible by batch_block"
  Bt = batch_block
  n_steps = B // Bt

  # Constant-index (grid-invariant) blocks: single-buffer them so resident
  # weights/tables only count once against the VMEM budget.
  def wspec(shape):
    nd = len(shape)
    return pl.BlockSpec(shape, lambda b, _nd=nd: (0,) * _nd,
                        pipeline_mode=pl.Buffered(1))

  kernel = functools.partial(
      _fused_forward_kernel, num_layers=L, nhead=nhead, head_dim=head_dim,
      batch_block=Bt, eps=1e-5)

  # --- VMEM budget: single-buffered weights + activations + I/O blocks. ---
  weight_bytes = sum(int(v.size) * v.dtype.itemsize for v in packed.values())
  rows = Bt * S
  act_bytes = 4 * rows * (10 * D + 2 * F + 2 * OUT_PAD + S)     # rough f32 working set
  io_bytes = 2 * rows * (in_size + OUT_PAD) * 4                 # double-buffered x / out
  vmem_limit = int(min(max(2 * (weight_bytes + act_bytes + io_bytes),
                           16 * 1024 * 1024),
                       48 * 1024 * 1024))   # stays under v7x's 64 MiB physical VMEM

  # --- Advisory cost estimate for the XLA scheduler. ---
  tot_rows = B * S
  flops = (2 * tot_rows * in_size * D
           + L * (12 * tot_rows * D * D            # q, q_rot, k, k_rot, v, out-proj
                  + 4 * B * S * S * D              # scores + context, all heads
                  + 4 * tot_rows * D * F)          # FFN
           + 2 * tot_rows * D * OUT_PAD)           # padded output head
  transcendentals = L * B * nhead * S * (S + 1) + 2 * L * tot_rows
  bytes_accessed = int(x.size * x.dtype.itemsize + weight_bytes
                       + B * S * OUT_PAD * 4)

  out = pl.pallas_call(
      kernel,
      out_shape=jax.ShapeDtypeStruct((B, S, OUT_PAD), jnp.float32),
      grid=(n_steps,),
      in_specs=[
          pl.BlockSpec((Bt, S, in_size), lambda b: (b, 0, 0)),
          wspec((in_size, D)), wspec((1, D)),          # embedding (scale folded)
          wspec((L, D, D)), wspec((L, 1, D)),          # wq, bq   (score scale folded)
          wspec((L, D, D)), wspec((L, 1, D)),          # wq@R, bq@R
          wspec((L, D, D)), wspec((L, 1, D)),          # wk, bk
          wspec((L, D, D)), wspec((L, 1, D)),          # wk@R, bk@R
          wspec((L, D, D)), wspec((L, 1, D)),          # wv, bv
          wspec((L, D, D)), wspec((L, 1, D)),          # wo, bo
          wspec((L, D, F)), wspec((L, 1, F)),          # w1, b1
          wspec((L, F, D)), wspec((L, 1, D)),          # w2, b2
          wspec((L, 1, D)), wspec((L, 1, D)),          # ln1 w, b
          wspec((L, 1, D)), wspec((L, 1, D)),          # ln2 w, b
          wspec((S, D)), wspec((S, D)),                # cos, sin (head-tiled)
          wspec((D, OUT_PAD)), wspec((1, OUT_PAD)),    # padded output head
      ],
      out_specs=pl.BlockSpec((Bt, S, OUT_PAD), lambda b: (b, 0, 0)),
      compiler_params=pltpu.CompilerParams(
          dimension_semantics=("parallel",),
          vmem_limit_bytes=vmem_limit),
      cost_estimate=pl.CostEstimate(
          flops=flops, transcendentals=transcendentals,
          bytes_accessed=bytes_accessed),
  )(x,
    packed["emb_w"], packed["emb_b"],
    packed["wq"], packed["bq"], packed["wqr"], packed["bqr"],
    packed["wk"], packed["bk"], packed["wkr"], packed["bkr"],
    packed["wv"], packed["bv"], packed["wo"], packed["bo"],
    packed["w1"], packed["b1"], packed["w2"], packed["b2"],
    packed["n1w"], packed["n1b"], packed["n2w"], packed["n2b"],
    packed["cos"], packed["sin"],
    packed["head_w"], packed["head_b"])

  return out[..., :1]


if __name__ == "__main__":
  # Small shapes consistent with TransformerModel(input_size=3, d_model, nhead, ...)
  B, S, input_size = 2, 8, 3
  d_model, nhead, num_layers, dim_ff = 32, 4, 2, 64

  key = jax.random.PRNGKey(0)
  kx, kp = jax.random.split(key)
  x = jax.random.normal(kx, (B, S, input_size), jnp.float32)
  params = init_params(kp, input_size, d_model, nhead, num_layers, dim_ff)
  packed = pack_params(params, d_model=d_model, nhead=nhead, seq_len=S)

  # batch_block=1 keeps grid=(B,) "parallel" (megacore); raise it for small-S
  # workloads with larger B to fold more rows into each MXU matmul.
  y = transformer_forward(packed, x, d_model=d_model, nhead=nhead, batch_block=1)
  jax.block_until_ready(y)
  assert y.shape == (B, S, 1) and y.dtype == jnp.float32
  print("KERNEL_OK")
</pallas_src>

<mosaic_0001>
module attributes {stable_mosaic.version = 11 : i64} {
  func.func @_fused_forward_kernel(%arg0: i32, %arg1: memref<1x8x3xf32, #tpu.memory_space<vmem>>, %arg2: memref<3x32xbf16, #tpu.memory_space<vmem>>, %arg3: memref<1x32xf32, #tpu.memory_space<vmem>>, %arg4: memref<2x32x32xbf16, #tpu.memory_space<vmem>>, %arg5: memref<2x1x32xf32, #tpu.memory_space<vmem>>, %arg6: memref<2x32x32xbf16, #tpu.memory_space<vmem>>, %arg7: memref<2x1x32xf32, #tpu.memory_space<vmem>>, %arg8: memref<2x32x32xbf16, #tpu.memory_space<vmem>>, %arg9: memref<2x1x32xf32, #tpu.memory_space<vmem>>, %arg10: memref<2x32x32xbf16, #tpu.memory_space<vmem>>, %arg11: memref<2x1x32xf32, #tpu.memory_space<vmem>>, %arg12: memref<2x32x32xbf16, #tpu.memory_space<vmem>>, %arg13: memref<2x1x32xf32, #tpu.memory_space<vmem>>, %arg14: memref<2x32x32xbf16, #tpu.memory_space<vmem>>, %arg15: memref<2x1x32xf32, #tpu.memory_space<vmem>>, %arg16: memref<2x32x64xbf16, #tpu.memory_space<vmem>>, %arg17: memref<2x1x64xf32, #tpu.memory_space<vmem>>, %arg18: memref<2x64x32xbf16, #tpu.memory_space<vmem>>, %arg19: memref<2x1x32xf32, #tpu.memory_space<vmem>>, %arg20: memref<2x1x32xf32, #tpu.memory_space<vmem>>, %arg21: memref<2x1x32xf32, #tpu.memory_space<vmem>>, %arg22: memref<2x1x32xf32, #tpu.memory_space<vmem>>, %arg23: memref<2x1x32xf32, #tpu.memory_space<vmem>>, %arg24: memref<8x32xf32, #tpu.memory_space<vmem>>, %arg25: memref<8x32xf32, #tpu.memory_space<vmem>>, %arg26: memref<32x128xbf16, #tpu.memory_space<vmem>>, %arg27: memref<1x128xf32, #tpu.memory_space<vmem>>, %arg28: memref<1x8x128xf32, #tpu.memory_space<vmem>>) attributes {dimension_semantics = [#tpu.dimension_semantics<parallel>], iteration_bounds = array<i64: 2>, scalar_prefetch = 0 : i64, scratch_operands = 0 : i64, tpu.core_type = #tpu.core_type<tc>, window_params = [{transform_indices = @transform_0, window_bounds = array<i64: 1, 8, 3>}, {pipeline_mode = #tpu.pipeline_mode<synchronous>, transform_indices = @transform_1, window_bounds = array<i64: 3, 32>}, {pipeline_mode = #tpu.pipeline_mode<synchronous>, transform_indices = @transform_2, window_bounds = array<i64: 1, 32>}, {pipeline_mode = #tpu.pipeline_mode<synchronous>, transform_indices = @transform_3, window_bounds = array<i64: 2, 32, 32>}, {pipeline_mode = #tpu.pipeline_mode<synchronous>, transform_indices = @transform_4, window_bounds = array<i64: 2, 1, 32>}, {pipeline_mode = #tpu.pipeline_mode<synchronous>, transform_indices = @transform_5, window_bounds = array<i64: 2, 32, 32>}, {pipeline_mode = #tpu.pipeline_mode<synchronous>, transform_indices = @transform_6, window_bounds = array<i64: 2, 1, 32>}, {pipeline_mode = #tpu.pipeline_mode<synchronous>, transform_indices = @transform_7, window_bounds = array<i64: 2, 32, 32>}, {pipeline_mode = #tpu.pipeline_mode<synchronous>, transform_indices = @transform_8, window_bounds = array<i64: 2, 1, 32>}, {pipeline_mode = #tpu.pipeline_mode<synchronous>, transform_indices = @transform_9, window_bounds = array<i64: 2, 32, 32>}, {pipeline_mode = #tpu.pipeline_mode<synchronous>, transform_indices = @transform_10, window_bounds = array<i64: 2, 1, 32>}, {pipeline_mode = #tpu.pipeline_mode<synchronous>, transform_indices = @transform_11, window_bounds = array<i64: 2, 32, 32>}, {pipeline_mode = #tpu.pipeline_mode<synchronous>, transform_indices = @transform_12, window_bounds = array<i64: 2, 1, 32>}, {pipeline_mode = #tpu.pipeline_mode<synchronous>, transform_indices = @transform_13, window_bounds = array<i64: 2, 32, 32>}, {pipeline_mode = #tpu.pipeline_mode<synchronous>, transform_indices = @transform_14, window_bounds = array<i64: 2, 1, 32>}, {pipeline_mode = #tpu.pipeline_mode<synchronous>, transform_indices = @transform_15, window_bounds = array<i64: 2, 32, 64>}, {pipeline_mode = #tpu.pipeline_mode<synchronous>, transform_indices = @transform_16, window_bounds = array<i64: 2, 1, 64>}, {pipeline_mode = #tpu.pipeline_mode<synchronous>, transform_indices = @transform_17, window_bounds = array<i64: 2, 64, 32>}, {pipeline_mode = #tpu.pipeline_mode<synchronous>, transform_indices = @transform_18, window_bounds = array<i64: 2, 1, 32>}, {pipeline_mode = #tpu.pipeline_mode<synchronous>, transform_indices = @transform_19, window_bounds = array<i64: 2, 1, 32>}, {pipeline_mode = #tpu.pipeline_mode<synchronous>, transform_indices = @transform_20, window_bounds = array<i64: 2, 1, 32>}, {pipeline_mode = #tpu.pipeline_mode<synchronous>, transform_indices = @transform_21, window_bounds = array<i64: 2, 1, 32>}, {pipeline_mode = #tpu.pipeline_mode<synchronous>, transform_indices = @transform_22, window_bounds = array<i64: 2, 1, 32>}, {pipeline_mode = #tpu.pipeline_mode<synchronous>, transform_indices = @transform_23, window_bounds = array<i64: 8, 32>}, {pipeline_mode = #tpu.pipeline_mode<synchronous>, transform_indices = @transform_24, window_bounds = array<i64: 8, 32>}, {pipeline_mode = #tpu.pipeline_mode<synchronous>, transform_indices = @transform_25, window_bounds = array<i64: 32, 128>}, {pipeline_mode = #tpu.pipeline_mode<synchronous>, transform_indices = @transform_26, window_bounds = array<i64: 1, 128>}, {transform_indices = @transform_27, window_bounds = array<i64: 1, 8, 128>}]} {
    %c0 = arith.constant 0 : index
    %c0_0 = arith.constant 0 : index
    %0 = vector.load %arg24[%c0, %c0_0] : memref<8x32xf32, #tpu.memory_space<vmem>>, vector<8x32xf32>
    %c0_1 = arith.constant 0 : index
    %c0_2 = arith.constant 0 : index
    %1 = vector.load %arg25[%c0_1, %c0_2] : memref<8x32xf32, #tpu.memory_space<vmem>>, vector<8x32xf32>
    %c0_3 = arith.constant 0 : index
    %c0_4 = arith.constant 0 : index
    %c0_5 = arith.constant 0 : index
    %2 = vector.load %arg1[%c0_3, %c0_4, %c0_5] : memref<1x8x3xf32, #tpu.memory_space<vmem>>, vector<1x8x3xf32>
    %3 = vector.shape_cast %2 : vector<1x8x3xf32> to vector<8x3xf32>
    %4 = arith.truncf %3 : vector<8x3xf32> to vector<8x3xbf16>
    %c0_6 = arith.constant 0 : index
    %c0_7 = arith.constant 0 : index
    %5 = vector.load %arg2[%c0_6, %c0_7] : memref<3x32xbf16, #tpu.memory_space<vmem>>, vector<3x32xbf16>
    %cst = arith.constant dense<0.000000e+00> : vector<8x32xf32>
    %6 = tpu.matmul %4, %5, %cst {dimension_numbers = #tpu.dot_dimension_numbers<[1], [0], [0], [1], [0, 0, 1, 1], [], []>} : vector<8x3xbf16>, vector<3x32xbf16>, vector<8x32xf32> -> vector<8x32xf32>
    %c0_8 = arith.constant 0 : index
    %c0_9 = arith.constant 0 : index
    %7 = vector.load %arg3[%c0_8, %c0_9] : memref<1x32xf32, #tpu.memory_space<vmem>>, vector<1x32xf32>
    %8 = vector.broadcast %7 : vector<1x32xf32> to vector<8x32xf32>
    %9 = arith.addf %6, %8 : vector<8x32xf32>
    %10 = arith.truncf %9 : vector<8x32xf32> to vector<8x32xbf16>
    %c0_10 = arith.constant 0 : index
    %c0_11 = arith.constant 0 : index
    %c0_12 = arith.constant 0 : index
    %11 = vector.load %arg4[%c0_10, %c0_11, %c0_12] : memref<2x32x32xbf16, #tpu.memory_space<vmem>>, vector<1x32x32xbf16>
    %12 = vector.shape_cast %11 : vector<1x32x32xbf16> to vector<32x32xbf16>
    %cst_13 = arith.constant dense<0.000000e+00> : vector<8x32xf32>
    %13 = tpu.matmul %10, %12, %cst_13 {dimension_numbers = #tpu.dot_dimension_numbers<[1], [0], [0], [1], [0, 0, 1, 1], [], []>} : vector<8x32xbf16>, vector<32x32xbf16>, vector<8x32xf32> -> vector<8x32xf32>
    %c0_14 = arith.constant 0 : index
    %c0_15 = arith.constant 0 : index
    %c0_16 = arith.constant 0 : index
    %14 = vector.load %arg5[%c0_14, %c0_15, %c0_16] : memref<2x1x32xf32, #tpu.memory_space<vmem>>, vector<1x1x32xf32>
    %15 = vector.shape_cast %14 : vector<1x1x32xf32> to vector<1x32xf32>
    %16 = vector.broadcast %15 : vector<1x32xf32> to vector<8x32xf32>
    %17 = arith.addf %13, %16 : vector<8x32xf32>
    %c0_17 = arith.constant 0 : index
    %c0_18 = arith.constant 0 : index
    %c0_19 = arith.constant 0 : index
    %18 = vector.load %arg6[%c0_17, %c0_18, %c0_19] : memref<2x32x32xbf16, #tpu.memory_space<vmem>>, vector<1x32x32xbf16>
    %19 = vector.shape_cast %18 : vector<1x32x32xbf16> to vector<32x32xbf16>
    %cst_20 = arith.constant dense<0.000000e+00> : vector<8x32xf32>
    %20 = tpu.matmul %10, %19, %cst_20 {dimension_numbers = #tpu.dot_dimension_numbers<[1], [0], [0], [1], [0, 0, 1, 1], [], []>} : vector<8x32xbf16>, vector<32x32xbf16>, vector<8x32xf32> -> vector<8x32xf32>
    %c0_21 = arith.constant 0 : index
    %c0_22 = arith.constant 0 : index
    %c0_23 = arith.constant 0 : index
    %21 = vector.load %arg7[%c0_21, %c0_22, %c0_23] : memref<2x1x32xf32, #tpu.memory_space<vmem>>, vector<1x1x32xf32>
    %22 = vector.shape_cast %21 : vector<1x1x32xf32> to vector<1x32xf32>
    %23 = vector.broadcast %22 : vector<1x32xf32> to vector<8x32xf32>
    %24 = arith.addf %20, %23 : vector<8x32xf32>
    %c0_24 = arith.constant 0 : index
    %c0_25 = arith.constant 0 : index
    %c0_26 = arith.constant 0 : index
    %25 = vector.load %arg8[%c0_24, %c0_25, %c0_26] : memref<2x32x32xbf16, #tpu.memory_space<vmem>>, vector<1x32x32xbf16>
    %26 = vector.shape_cast %25 : vector<1x32x32xbf16> to vector<32x32xbf16>
    %cst_27 = arith.constant dense<0.000000e+00> : vector<8x32xf32>
    %27 = tpu.matmul %10, %26, %cst_27 {dimension_numbers = #tpu.dot_dimension_numbers<[1], [0], [0], [1], [0, 0, 1, 1], [], []>} : vector<8x32xbf16>, vector<32x32xbf16>, vector<8x32xf32> -> vector<8x32xf32>
    %c0_28 = arith.constant 0 : index
    %c0_29 = arith.constant 0 : index
    %c0_30 = arith.constant 0 : index
    %28 = vector.load %arg9[%c0_28, %c0_29, %c0_30] : memref<2x1x32xf32, #tpu.memory_space<vmem>>, vector<1x1x32xf32>
    %29 = vector.shape_cast %28 : vector<1x1x32xf32> to vector<1x32xf32>
    %30 = vector.broadcast %29 : vector<1x32xf32> to vector<8x32xf32>
    %31 = arith.addf %27, %30 : vector<8x32xf32>
    %c0_31 = arith.constant 0 : index
    %c0_32 = arith.constant 0 : index
    %c0_33 = arith.constant 0 : index
    %32 = vector.load %arg10[%c0_31, %c0_32, %c0_33] : memref<2x32x32xbf16, #tpu.memory_space<vmem>>, vector<1x32x32xbf16>
    %33 = vector.shape_cast %32 : vector<1x32x32xbf16> to vector<32x32xbf16>
    %cst_34 = arith.constant dense<0.000000e+00> : vector<8x32xf32>
    %34 = tpu.matmul %10, %33, %cst_34 {dimension_numbers = #tpu.dot_dimension_numbers<[1], [0], [0], [1], [0, 0, 1, 1], [], []>} : vector<8x32xbf16>, vector<32x32xbf16>, vector<8x32xf32> -> vector<8x32xf32>
    %c0_35 = arith.constant 0 : index
    %c0_36 = arith.constant 0 : index
    %c0_37 = arith.constant 0 : index
    %35 = vector.load %arg11[%c0_35, %c0_36, %c0_37] : memref<2x1x32xf32, #tpu.memory_space<vmem>>, vector<1x1x32xf32>
    %36 = vector.shape_cast %35 : vector<1x1x32xf32> to vector<1x32xf32>
    %37 = vector.broadcast %36 : vector<1x32xf32> to vector<8x32xf32>
    %38 = arith.addf %34, %37 : vector<8x32xf32>
    %c0_38 = arith.constant 0 : index
    %c0_39 = arith.constant 0 : index
    %c0_40 = arith.constant 0 : index
    %39 = vector.load %arg12[%c0_38, %c0_39, %c0_40] : memref<2x32x32xbf16, #tpu.memory_space<vmem>>, vector<1x32x32xbf16>
    %40 = vector.shape_cast %39 : vector<1x32x32xbf16> to vector<32x32xbf16>
    %cst_41 = arith.constant dense<0.000000e+00> : vector<8x32xf32>
    %41 = tpu.matmul %10, %40, %cst_41 {dimension_numbers = #tpu.dot_dimension_numbers<[1], [0], [0], [1], [0, 0, 1, 1], [], []>} : vector<8x32xbf16>, vector<32x32xbf16>, vector<8x32xf32> -> vector<8x32xf32>
    %c0_42 = arith.constant 0 : index
    %c0_43 = arith.constant 0 : index
    %c0_44 = arith.constant 0 : index
    %42 = vector.load %arg13[%c0_42, %c0_43, %c0_44] : memref<2x1x32xf32, #tpu.memory_space<vmem>>, vector<1x1x32xf32>
    %43 = vector.shape_cast %42 : vector<1x1x32xf32> to vector<1x32xf32>
    %44 = vector.broadcast %43 : vector<1x32xf32> to vector<8x32xf32>
    %45 = arith.addf %41, %44 : vector<8x32xf32>
    %c0_45 = arith.constant 0 : index
    %c0_46 = arith.constant 0 : index
    %c0_47 = arith.constant 0 : index
    %46 = vector.load %arg14[%c0_45, %c0_46, %c0_47] : memref<2x32x32xbf16, #tpu.memory_space<vmem>>, vector<1x32x32xbf16>
    %47 = vector.shape_cast %46 : vector<1x32x32xbf16> to vector<32x32xbf16>
    %48 = arith.mulf %17, %0 : vector<8x32xf32>
    %49 = arith.mulf %24, %1 : vector<8x32xf32>
    %50 = arith.addf %48, %49 : vector<8x32xf32>
    %51 = arith.mulf %31, %0 : vector<8x32xf32>
    %52 = arith.mulf %38, %1 : vector<8x32xf32>
    %53 = arith.addf %51, %52 : vector<8x32xf32>
    %54 = vector.extract_strided_slice %50 {offsets = [0, 0], sizes = [8, 8], strides = [1, 1]} : vector<8x32xf32> to vector<8x8xf32>
    %55 = arith.truncf %54 : vector<8x8xf32> to vector<8x8xbf16>
    %56 = vector.extract_strided_slice %53 {offsets = [0, 0], sizes = [8, 8], strides = [1, 1]} : vector<8x32xf32> to vector<8x8xf32>
    %57 = arith.truncf %56 : vector<8x8xf32> to vector<8x8xbf16>
    %cst_48 = arith.constant dense<0.000000e+00> : vector<8x8xf32>
    %58 = tpu.matmul %55, %57, %cst_48 {dimension_numbers = #tpu.dot_dimension_numbers<[1], [1], [0], [0], [0, 0, 1, 0], [], []>} : vector<8x8xbf16>, vector<8x8xbf16>, vector<8x8xf32> -> vector<8x8xf32>
    %cst_49 = arith.constant dense<0xFF800000> : vector<8xf32>
    %59 = vector.multi_reduction <maximumf>, %58, %cst_49 [1] : vector<8x8xf32> to vector<8xf32>
    %60 = vector.shape_cast %59 : vector<8xf32> to vector<8x1xf32>
    %61 = vector.broadcast %60 : vector<8x1xf32> to vector<8x8xf32>
    %62 = arith.subf %58, %61 : vector<8x8xf32>
    %63 = math.exp %62 : vector<8x8xf32>
    %cst_50 = arith.constant dense<0.000000e+00> : vector<8xf32>
    %64 = vector.multi_reduction <add>, %63, %cst_50 [1] : vector<8x8xf32> to vector<8xf32>
    %65 = vector.shape_cast %64 : vector<8xf32> to vector<8x1xf32>
    %66 = tpu.reciprocal %65 {approx = true} : vector<8x1xf32> -> vector<8x1xf32>
    %67 = vector.broadcast %66 : vector<8x1xf32> to vector<8x8xf32>
    %68 = arith.mulf %63, %67 : vector<8x8xf32>
    %69 = arith.truncf %68 : vector<8x8xf32> to vector<8x8xbf16>
    %70 = vector.extract_strided_slice %45 {offsets = [0, 0], sizes = [8, 8], strides = [1, 1]} : vector<8x32xf32> to vector<8x8xf32>
    %71 = arith.truncf %70 : vector<8x8xf32> to vector<8x8xbf16>
    %cst_51 = arith.constant dense<0.000000e+00> : vector<8x8xf32>
    %72 = tpu.matmul %69, %71, %cst_51 {dimension_numbers = #tpu.dot_dimension_numbers<[1], [0], [0], [1], [0, 0, 1, 1], [], []>} : vector<8x8xbf16>, vector<8x8xbf16>, vector<8x8xf32> -> vector<8x8xf32>
    %73 = arith.truncf %72 : vector<8x8xf32> to vector<8x8xbf16>
    %74 = vector.extract_strided_slice %47 {offsets = [0, 0], sizes = [8, 32], strides = [1, 1]} : vector<32x32xbf16> to vector<8x32xbf16>
    %cst_52 = arith.constant dense<0.000000e+00> : vector<8x32xf32>
    %75 = tpu.matmul %73, %74, %cst_52 {dimension_numbers = #tpu.dot_dimension_numbers<[1], [0], [0], [1], [0, 0, 1, 1], [], []>} : vector<8x8xbf16>, vector<8x32xbf16>, vector<8x32xf32> -> vector<8x32xf32>
    %76 = vector.extract_strided_slice %50 {offsets = [0, 8], sizes = [8, 8], strides = [1, 1]} : vector<8x32xf32> to vector<8x8xf32>
    %77 = arith.truncf %76 : vector<8x8xf32> to vector<8x8xbf16>
    %78 = vector.extract_strided_slice %53 {offsets = [0, 8], sizes = [8, 8], strides = [1, 1]} : vector<8x32xf32> to vector<8x8xf32>
    %79 = arith.truncf %78 : vector<8x8xf32> to vector<8x8xbf16>
    %cst_53 = arith.constant dense<0.000000e+00> : vector<8x8xf32>
    %80 = tpu.matmul %77, %79, %cst_53 {dimension_numbers = #tpu.dot_dimension_numbers<[1], [1], [0], [0], [0, 0, 1, 0], [], []>} : vector<8x8xbf16>, vector<8x8xbf16>, vector<8x8xf32> -> vector<8x8xf32>
    %cst_54 = arith.constant dense<0xFF800000> : vector<8xf32>
    %81 = vector.multi_reduction <maximumf>, %80, %cst_54 [1] : vector<8x8xf32> to vector<8xf32>
    %82 = vector.shape_cast %81 : vector<8xf32> to vector<8x1xf32>
    %83 = vector.broadcast %82 : vector<8x1xf32> to vector<8x8xf32>
    %84 = arith.subf %80, %83 : vector<8x8xf32>
    %85 = math.exp %84 : vector<8x8xf32>
    %cst_55 = arith.constant dense<0.000000e+00> : vector<8xf32>
    %86 = vector.multi_reduction <add>, %85, %cst_55 [1] : vector<8x8xf32> to vector<8xf32>
    %87 = vector.shape_cast %86 : vector<8xf32> to vector<8x1xf32>
    %88 = tpu.reciprocal %87 {approx = true} : vector<8x1xf32> -> vector<8x1xf32>
    %89 = vector.broadcast %88 : vector<8x1xf32> to vector<8x8xf32>
    %90 = arith.mulf %85, %89 : vector<8x8xf32>
    %91 = arith.truncf %90 : vector<8x8xf32> to vector<8x8xbf16>
    %92 = vector.extract_strided_slice %45 {offsets = [0, 8], sizes = [8, 8], strides = [1, 1]} : vector<8x32xf32> to vector<8x8xf32>
    %93 = arith.truncf %92 : vector<8x8xf32> to vector<8x8xbf16>
    %cst_56 = arith.constant dense<0.000000e+00> : vector<8x8xf32>
    %94 = tpu.matmul %91, %93, %cst_56 {dimension_numbers = #tpu.dot_dimension_numbers<[1], [0], [0], [1], [0, 0, 1, 1], [], []>} : vector<8x8xbf16>, vector<8x8xbf16>, vector<8x8xf32> -> vector<8x8xf32>
    %95 = arith.truncf %94 : vector<8x8xf32> to vector<8x8xbf16>
    %96 = vector.extract_strided_slice %47 {offsets = [8, 0], sizes = [8, 32], strides = [1, 1]} : vector<32x32xbf16> to vector<8x32xbf16>
    %cst_57 = arith.constant dense<0.000000e+00> : vector<8x32xf32>
    %97 = tpu.matmul %95, %96, %cst_57 {dimension_numbers = #tpu.dot_dimension_numbers<[1], [0], [0], [1], [0, 0, 1, 1], [], []>} : vector<8x8xbf16>, vector<8x32xbf16>, vector<8x32xf32> -> vector<8x32xf32>
    %98 = arith.addf %75, %97 : vector<8x32xf32>
    %99 = vector.extract_strided_slice %50 {offsets = [0, 16], sizes = [8, 8], strides = [1, 1]} : vector<8x32xf32> to vector<8x8xf32>
    %100 = arith.truncf %99 : vector<8x8xf32> to vector<8x8xbf16>
    %101 = vector.extract_strided_slice %53 {offsets = [0, 16], sizes = [8, 8], strides = [1, 1]} : vector<8x32xf32> to vector<8x8xf32>
    %102 = arith.truncf %101 : vector<8x8xf32> to vector<8x8xbf16>
    %cst_58 = arith.constant dense<0.000000e+00> : vector<8x8xf32>
    %103 = tpu.matmul %100, %102, %cst_58 {dimension_numbers = #tpu.dot_dimension_numbers<[1], [1], [0], [0], [0, 0, 1, 0], [], []>} : vector<8x8xbf16>, vector<8x8xbf16>, vector<8x8xf32> -> vector<8x8xf32>
    %cst_59 = arith.constant dense<0xFF800000> : vector<8xf32>
    %104 = vector.multi_reduction <maximumf>, %103, %cst_59 [1] : vector<8x8xf32> to vector<8xf32>
    %105 = vector.shape_cast %104 : vector<8xf32> to vector<8x1xf32>
    %106 = vector.broadcast %105 : vector<8x1xf32> to vector<8x8xf32>
    %107 = arith.subf %103, %106 : vector<8x8xf32>
    %108 = math.exp %107 : vector<8x8xf32>
    %cst_60 = arith.constant dense<0.000000e+00> : vector<8xf32>
    %109 = vector.multi_reduction <add>, %108, %cst_60 [1] : vector<8x8xf32> to vector<8xf32>
    %110 = vector.shape_cast %109 : vector<8xf32> to vector<8x1xf32>
    %111 = tpu.reciprocal %110 {approx = true} : vector<8x1xf32> -> vector<8x1xf32>
    %112 = vector.broadcast %111 : vector<8x1xf32> to vector<8x8xf32>
    %113 = arith.mulf %108, %112 : vector<8x8xf32>
    %114 = arith.truncf %113 : vector<8x8xf32> to vector<8x8xbf16>
    %115 = vector.extract_strided_slice %45 {offsets = [0, 16], sizes = [8, 8], strides = [1, 1]} : vector<8x32xf32> to vector<8x8xf32>
    %116 = arith.truncf %115 : vector<8x8xf32> to vector<8x8xbf16>
    %cst_61 = arith.constant dense<0.000000e+00> : vector<8x8xf32>
    %117 = tpu.matmul %114, %116, %cst_61 {dimension_numbers = #tpu.dot_dimension_numbers<[1], [0], [0], [1], [0, 0, 1, 1], [], []>} : vector<8x8xbf16>, vector<8x8xbf16>, vector<8x8xf32> -> vector<8x8xf32>
    %118 = arith.truncf %117 : vector<8x8xf32> to vector<8x8xbf16>
    %119 = vector.extract_strided_slice %47 {offsets = [16, 0], sizes = [8, 32], strides = [1, 1]} : vector<32x32xbf16> to vector<8x32xbf16>
    %cst_62 = arith.constant dense<0.000000e+00> : vector<8x32xf32>
    %120 = tpu.matmul %118, %119, %cst_62 {dimension_numbers = #tpu.dot_dimension_numbers<[1], [0], [0], [1], [0, 0, 1, 1], [], []>} : vector<8x8xbf16>, vector<8x32xbf16>, vector<8x32xf32> -> vector<8x32xf32>
    %121 = arith.addf %98, %120 : vector<8x32xf32>
    %122 = vector.extract_strided_slice %50 {offsets = [0, 24], sizes = [8, 8], strides = [1, 1]} : vector<8x32xf32> to vector<8x8xf32>
    %123 = arith.truncf %122 : vector<8x8xf32> to vector<8x8xbf16>
    %124 = vector.extract_strided_slice %53 {offsets = [0, 24], sizes = [8, 8], strides = [1, 1]} : vector<8x32xf32> to vector<8x8xf32>
    %125 = arith.truncf %124 : vector<8x8xf32> to vector<8x8xbf16>
    %cst_63 = arith.constant dense<0.000000e+00> : vector<8x8xf32>
    %126 = tpu.matmul %123, %125, %cst_63 {dimension_numbers = #tpu.dot_dimension_numbers<[1], [1], [0], [0], [0, 0, 1, 0], [], []>} : vector<8x8xbf16>, vector<8x8xbf16>, vector<8x8xf32> -> vector<8x8xf32>
    %cst_64 = arith.constant dense<0xFF800000> : vector<8xf32>
    %127 = vector.multi_reduction <maximumf>, %126, %cst_64 [1] : vector<8x8xf32> to vector<8xf32>
    %128 = vector.shape_cast %127 : vector<8xf32> to vector<8x1xf32>
    %129 = vector.broadcast %128 : vector<8x1xf32> to vector<8x8xf32>
    %130 = arith.subf %126, %129 : vector<8x8xf32>
    %131 = math.exp %130 : vector<8x8xf32>
    %cst_65 = arith.constant dense<0.000000e+00> : vector<8xf32>
    %132 = vector.multi_reduction <add>, %131, %cst_65 [1] : vector<8x8xf32> to vector<8xf32>
    %133 = vector.shape_cast %132 : vector<8xf32> to vector<8x1xf32>
    %134 = tpu.reciprocal %133 {approx = true} : vector<8x1xf32> -> vector<8x1xf32>
    %135 = vector.broadcast %134 : vector<8x1xf32> to vector<8x8xf32>
    %136 = arith.mulf %131, %135 : vector<8x8xf32>
    %137 = arith.truncf %136 : vector<8x8xf32> to vector<8x8xbf16>
    %138 = vector.extract_strided_slice %45 {offsets = [0, 24], sizes = [8, 8], strides = [1, 1]} : vector<8x32xf32> to vector<8x8xf32>
    %139 = arith.truncf %138 : vector<8x8xf32> to vector<8x8xbf16>
    %cst_66 = arith.constant dense<0.000000e+00> : vector<8x8xf32>
    %140 = tpu.matmul %137, %139, %cst_66 {dimension_numbers = #tpu.dot_dimension_numbers<[1], [0], [0], [1], [0, 0, 1, 1], [], []>} : vector<8x8xbf16>, vector<8x8xbf16>, vector<8x8xf32> -> vector<8x8xf32>
    %141 = arith.truncf %140 : vector<8x8xf32> to vector<8x8xbf16>
    %142 = vector.extract_strided_slice %47 {offsets = [24, 0], sizes = [8, 32], strides = [1, 1]} : vector<32x32xbf16> to vector<8x32xbf16>
    %cst_67 = arith.constant dense<0.000000e+00> : vector<8x32xf32>
    %143 = tpu.matmul %141, %142, %cst_67 {dimension_numbers = #tpu.dot_dimension_numbers<[1], [0], [0], [1], [0, 0, 1, 1], [], []>} : vector<8x8xbf16>, vector<8x32xbf16>, vector<8x32xf32> -> vector<8x32xf32>
    %144 = arith.addf %121, %143 : vector<8x32xf32>
    %c0_68 = arith.constant 0 : index
    %c0_69 = arith.constant 0 : index
    %c0_70 = arith.constant 0 : index
    %145 = vector.load %arg15[%c0_68, %c0_69, %c0_70] : memref<2x1x32xf32, #tpu.memory_space<vmem>>, vector<1x1x32xf32>
    %146 = vector.shape_cast %145 : vector<1x1x32xf32> to vector<1x32xf32>
    %147 = vector.broadcast %146 : vector<1x32xf32> to vector<8x32xf32>
    %148 = arith.addf %144, %147 : vector<8x32xf32>
    %149 = arith.addf %9, %148 : vector<8x32xf32>
    %c0_71 = arith.constant 0 : index
    %c0_72 = arith.constant 0 : index
    %c0_73 = arith.constant 0 : index
    %150 = vector.load %arg20[%c0_71, %c0_72, %c0_73] : memref<2x1x32xf32, #tpu.memory_space<vmem>>, vector<1x1x32xf32>
    %151 = vector.shape_cast %150 : vector<1x1x32xf32> to vector<1x32xf32>
    %c0_74 = arith.constant 0 : index
    %c0_75 = arith.constant 0 : index
    %c0_76 = arith.constant 0 : index
    %152 = vector.load %arg21[%c0_74, %c0_75, %c0_76] : memref<2x1x32xf32, #tpu.memory_space<vmem>>, vector<1x1x32xf32>
    %153 = vector.shape_cast %152 : vector<1x1x32xf32> to vector<1x32xf32>
    %cst_77 = arith.constant dense<0.000000e+00> : vector<8xf32>
    %154 = vector.multi_reduction <add>, %149, %cst_77 [1] : vector<8x32xf32> to vector<8xf32>
    %155 = vector.shape_cast %154 : vector<8xf32> to vector<8x1xf32>
    %cst_78 = arith.constant 3.200000e+01 : f32
    %156 = vector.broadcast %cst_78 : f32 to vector<8x1xf32>
    %157 = arith.divf %155, %156 : vector<8x1xf32>
    %158 = vector.broadcast %157 : vector<8x1xf32> to vector<8x32xf32>
    %159 = arith.subf %149, %158 : vector<8x32xf32>
    %160 = arith.mulf %159, %159 : vector<8x32xf32>
    %cst_79 = arith.constant dense<0.000000e+00> : vector<8xf32>
    %161 = vector.multi_reduction <add>, %160, %cst_79 [1] : vector<8x32xf32> to vector<8xf32>
    %162 = vector.shape_cast %161 : vector<8xf32> to vector<8x1xf32>
    %cst_80 = arith.constant 3.200000e+01 : f32
    %163 = vector.broadcast %cst_80 : f32 to vector<8x1xf32>
    %164 = arith.divf %162, %163 : vector<8x1xf32>
    %165 = vector.broadcast %157 : vector<8x1xf32> to vector<8x32xf32>
    %166 = arith.subf %149, %165 : vector<8x32xf32>
    %cst_81 = arith.constant 9.99999974E-6 : f32
    %167 = vector.broadcast %cst_81 : f32 to vector<8x1xf32>
    %168 = arith.addf %164, %167 : vector<8x1xf32>
    %169 = math.rsqrt %168 : vector<8x1xf32>
    %170 = vector.broadcast %169 : vector<8x1xf32> to vector<8x32xf32>
    %171 = arith.mulf %166, %170 : vector<8x32xf32>
    %172 = vector.broadcast %151 : vector<1x32xf32> to vector<8x32xf32>
    %173 = arith.mulf %171, %172 : vector<8x32xf32>
    %174 = vector.broadcast %153 : vector<1x32xf32> to vector<8x32xf32>
    %175 = arith.addf %173, %174 : vector<8x32xf32>
    %176 = arith.truncf %175 : vector<8x32xf32> to vector<8x32xbf16>
    %c0_82 = arith.constant 0 : index
    %c0_83 = arith.constant 0 : index
    %c0_84 = arith.constant 0 : index
    %177 = vector.load %arg16[%c0_82, %c0_83, %c0_84] : memref<2x32x64xbf16, #tpu.memory_space<vmem>>, vector<1x32x64xbf16>
    %178 = vector.shape_cast %177 : vector<1x32x64xbf16> to vector<32x64xbf16>
    %cst_85 = arith.constant dense<0.000000e+00> : vector<8x64xf32>
    %179 = tpu.matmul %176, %178, %cst_85 {dimension_numbers = #tpu.dot_dimension_numbers<[1], [0], [0], [1], [0, 0, 1, 1], [], []>} : vector<8x32xbf16>, vector<32x64xbf16>, vector<8x64xf32> -> vector<8x64xf32>
    %c0_86 = arith.constant 0 : index
    %c0_87 = arith.constant 0 : index
    %c0_88 = arith.constant 0 : index
    %180 = vector.load %arg17[%c0_86, %c0_87, %c0_88] : memref<2x1x64xf32, #tpu.memory_space<vmem>>, vector<1x1x64xf32>
    %181 = vector.shape_cast %180 : vector<1x1x64xf32> to vector<1x64xf32>
    %182 = vector.broadcast %181 : vector<1x64xf32> to vector<8x64xf32>
    %183 = arith.addf %179, %182 : vector<8x64xf32>
    %cst_89 = arith.constant 0.000000e+00 : f32
    %184 = vector.broadcast %cst_89 : f32 to vector<8x64xf32>
    %185 = arith.maximumf %183, %184 : vector<8x64xf32>
    %186 = arith.truncf %185 : vector<8x64xf32> to vector<8x64xbf16>
    %c0_90 = arith.constant 0 : index
    %c0_91 = arith.constant 0 : index
    %c0_92 = arith.constant 0 : index
    %187 = vector.load %arg18[%c0_90, %c0_91, %c0_92] : memref<2x64x32xbf16, #tpu.memory_space<vmem>>, vector<1x64x32xbf16>
    %188 = vector.shape_cast %187 : vector<1x64x32xbf16> to vector<64x32xbf16>
    %cst_93 = arith.constant dense<0.000000e+00> : vector<8x32xf32>
    %189 = tpu.matmul %186, %188, %cst_93 {dimension_numbers = #tpu.dot_dimension_numbers<[1], [0], [0], [1], [0, 0, 1, 1], [], []>} : vector<8x64xbf16>, vector<64x32xbf16>, vector<8x32xf32> -> vector<8x32xf32>
    %c0_94 = arith.constant 0 : index
    %c0_95 = arith.constant 0 : index
    %c0_96 = arith.constant 0 : index
    %190 = vector.load %arg19[%c0_94, %c0_95, %c0_96] : memref<2x1x32xf32, #tpu.memory_space<vmem>>, vector<1x1x32xf32>
    %191 = vector.shape_cast %190 : vector<1x1x32xf32> to vector<1x32xf32>
    %192 = vector.broadcast %191 : vector<1x32xf32> to vector<8x32xf32>
    %193 = arith.addf %189, %192 : vector<8x32xf32>
    %194 = arith.addf %175, %193 : vector<8x32xf32>
    %c0_97 = arith.constant 0 : index
    %c0_98 = arith.constant 0 : index
    %c0_99 = arith.constant 0 : index
    %195 = vector.load %arg22[%c0_97, %c0_98, %c0_99] : memref<2x1x32xf32, #tpu.memory_space<vmem>>, vector<1x1x32xf32>
    %196 = vector.shape_cast %195 : vector<1x1x32xf32> to vector<1x32xf32>
    %c0_100 = arith.constant 0 : index
    %c0_101 = arith.constant 0 : index
    %c0_102 = arith.constant 0 : index
    %197 = vector.load %arg23[%c0_100, %c0_101, %c0_102] : memref<2x1x32xf32, #tpu.memory_space<vmem>>, vector<1x1x32xf32>
    %198 = vector.shape_cast %197 : vector<1x1x32xf32> to vector<1x32xf32>
    %cst_103 = arith.constant dense<0.000000e+00> : vector<8xf32>
    %199 = vector.multi_reduction <add>, %194, %cst_103 [1] : vector<8x32xf32> to vector<8xf32>
    %200 = vector.shape_cast %199 : vector<8xf32> to vector<8x1xf32>
    %cst_104 = arith.constant 3.200000e+01 : f32
    %201 = vector.broadcast %cst_104 : f32 to vector<8x1xf32>
    %202 = arith.divf %200, %201 : vector<8x1xf32>
    %203 = vector.broadcast %202 : vector<8x1xf32> to vector<8x32xf32>
    %204 = arith.subf %194, %203 : vector<8x32xf32>
    %205 = arith.mulf %204, %204 : vector<8x32xf32>
    %cst_105 = arith.constant dense<0.000000e+00> : vector<8xf32>
    %206 = vector.multi_reduction <add>, %205, %cst_105 [1] : vector<8x32xf32> to vector<8xf32>
    %207 = vector.shape_cast %206 : vector<8xf32> to vector<8x1xf32>
    %cst_106 = arith.constant 3.200000e+01 : f32
    %208 = vector.broadcast %cst_106 : f32 to vector<8x1xf32>
    %209 = arith.divf %207, %208 : vector<8x1xf32>
    %210 = vector.broadcast %202 : vector<8x1xf32> to vector<8x32xf32>
    %211 = arith.subf %194, %210 : vector<8x32xf32>
    %cst_107 = arith.constant 9.99999974E-6 : f32
    %212 = vector.broadcast %cst_107 : f32 to vector<8x1xf32>
    %213 = arith.addf %209, %212 : vector<8x1xf32>
    %214 = math.rsqrt %213 : vector<8x1xf32>
    %215 = vector.broadcast %214 : vector<8x1xf32> to vector<8x32xf32>
    %216 = arith.mulf %211, %215 : vector<8x32xf32>
    %217 = vector.broadcast %196 : vector<1x32xf32> to vector<8x32xf32>
    %218 = arith.mulf %216, %217 : vector<8x32xf32>
    %219 = vector.broadcast %198 : vector<1x32xf32> to vector<8x32xf32>
    %220 = arith.addf %218, %219 : vector<8x32xf32>
    %221 = arith.truncf %220 : vector<8x32xf32> to vector<8x32xbf16>
    %c1 = arith.constant 1 : index
    %c0_108 = arith.constant 0 : index
    %c0_109 = arith.constant 0 : index
    %222 = vector.load %arg4[%c1, %c0_108, %c0_109] : memref<2x32x32xbf16, #tpu.memory_space<vmem>>, vector<1x32x32xbf16>
    %223 = vector.shape_cast %222 : vector<1x32x32xbf16> to vector<32x32xbf16>
    %cst_110 = arith.constant dense<0.000000e+00> : vector<8x32xf32>
    %224 = tpu.matmul %221, %223, %cst_110 {dimension_numbers = #tpu.dot_dimension_numbers<[1], [0], [0], [1], [0, 0, 1, 1], [], []>} : vector<8x32xbf16>, vector<32x32xbf16>, vector<8x32xf32> -> vector<8x32xf32>
    %c1_111 = arith.constant 1 : index
    %c0_112 = arith.constant 0 : index
    %c0_113 = arith.constant 0 : index
    %225 = vector.load %arg5[%c1_111, %c0_112, %c0_113] : memref<2x1x32xf32, #tpu.memory_space<vmem>>, vector<1x1x32xf32>
    %226 = vector.shape_cast %225 : vector<1x1x32xf32> to vector<1x32xf32>
    %227 = vector.broadcast %226 : vector<1x32xf32> to vector<8x32xf32>
    %228 = arith.addf %224, %227 : vector<8x32xf32>
    %c1_114 = arith.constant 1 : index
    %c0_115 = arith.constant 0 : index
    %c0_116 = arith.constant 0 : index
    %229 = vector.load %arg6[%c1_114, %c0_115, %c0_116] : memref<2x32x32xbf16, #tpu.memory_space<vmem>>, vector<1x32x32xbf16>
    %230 = vector.shape_cast %229 : vector<1x32x32xbf16> to vector<32x32xbf16>
    %cst_117 = arith.constant dense<0.000000e+00> : vector<8x32xf32>
    %231 = tpu.matmul %221, %230, %cst_117 {dimension_numbers = #tpu.dot_dimension_numbers<[1], [0], [0], [1], [0, 0, 1, 1], [], []>} : vector<8x32xbf16>, vector<32x32xbf16>, vector<8x32xf32> -> vector<8x32xf32>
    %c1_118 = arith.constant 1 : index
    %c0_119 = arith.constant 0 : index
    %c0_120 = arith.constant 0 : index
    %232 = vector.load %arg7[%c1_118, %c0_119, %c0_120] : memref<2x1x32xf32, #tpu.memory_space<vmem>>, vector<1x1x32xf32>
    %233 = vector.shape_cast %232 : vector<1x1x32xf32> to vector<1x32xf32>
    %234 = vector.broadcast %233 : vector<1x32xf32> to vector<8x32xf32>
    %235 = arith.addf %231, %234 : vector<8x32xf32>
    %c1_121 = arith.constant 1 : index
    %c0_122 = arith.constant 0 : index
    %c0_123 = arith.constant 0 : index
    %236 = vector.load %arg8[%c1_121, %c0_122, %c0_123] : memref<2x32x32xbf16, #tpu.memory_space<vmem>>, vector<1x32x32xbf16>
    %237 = vector.shape_cast %236 : vector<1x32x32xbf16> to vector<32x32xbf16>
    %cst_124 = arith.constant dense<0.000000e+00> : vector<8x32xf32>
    %238 = tpu.matmul %221, %237, %cst_124 {dimension_numbers = #tpu.dot_dimension_numbers<[1], [0], [0], [1], [0, 0, 1, 1], [], []>} : vector<8x32xbf16>, vector<32x32xbf16>, vector<8x32xf32> -> vector<8x32xf32>
    %c1_125 = arith.constant 1 : index
    %c0_126 = arith.constant 0 : index
    %c0_127 = arith.constant 0 : index
    %239 = vector.load %arg9[%c1_125, %c0_126, %c0_127] : memref<2x1x32xf32, #tpu.memory_space<vmem>>, vector<1x1x32xf32>
    %240 = vector.shape_cast %239 : vector<1x1x32xf32> to vector<1x32xf32>
    %241 = vector.broadcast %240 : vector<1x32xf32> to vector<8x32xf32>
    %242 = arith.addf %238, %241 : vector<8x32xf32>
    %c1_128 = arith.constant 1 : index
    %c0_129 = arith.constant 0 : index
    %c0_130 = arith.constant 0 : index
    %243 = vector.load %arg10[%c1_128, %c0_129, %c0_130] : memref<2x32x32xbf16, #tpu.memory_space<vmem>>, vector<1x32x32xbf16>
    %244 = vector.shape_cast %243 : vector<1x32x32xbf16> to vector<32x32xbf16>
    %cst_131 = arith.constant dense<0.000000e+00> : vector<8x32xf32>
    %245 = tpu.matmul %221, %244, %cst_131 {dimension_numbers = #tpu.dot_dimension_numbers<[1], [0], [0], [1], [0, 0, 1, 1], [], []>} : vector<8x32xbf16>, vector<32x32xbf16>, vector<8x32xf32> -> vector<8x32xf32>
    %c1_132 = arith.constant 1 : index
    %c0_133 = arith.constant 0 : index
    %c0_134 = arith.constant 0 : index
    %246 = vector.load %arg11[%c1_132, %c0_133, %c0_134] : memref<2x1x32xf32, #tpu.memory_space<vmem>>, vector<1x1x32xf32>
    %247 = vector.shape_cast %246 : vector<1x1x32xf32> to vector<1x32xf32>
    %248 = vector.broadcast %247 : vector<1x32xf32> to vector<8x32xf32>
    %249 = arith.addf %245, %248 : vector<8x32xf32>
    %c1_135 = arith.constant 1 : index
    %c0_136 = arith.constant 0 : index
    %c0_137 = arith.constant 0 : index
    %250 = vector.load %arg12[%c1_135, %c0_136, %c0_137] : memref<2x32x32xbf16, #tpu.memory_space<vmem>>, vector<1x32x32xbf16>
    %251 = vector.shape_cast %250 : vector<1x32x32xbf16> to vector<32x32xbf16>
    %cst_138 = arith.constant dense<0.000000e+00> : vector<8x32xf32>
    %252 = tpu.matmul %221, %251, %cst_138 {dimension_numbers = #tpu.dot_dimension_numbers<[1], [0], [0], [1], [0, 0, 1, 1], [], []>} : vector<8x32xbf16>, vector<32x32xbf16>, vector<8x32xf32> -> vector<8x32xf32>
    %c1_139 = arith.constant 1 : index
    %c0_140 = arith.constant 0 : index
    %c0_141 = arith.constant 0 : index
    %253 = vector.load %arg13[%c1_139, %c0_140, %c0_141] : memref<2x1x32xf32, #tpu.memory_space<vmem>>, vector<1x1x32xf32>
    %254 = vector.shape_cast %253 : vector<1x1x32xf32> to vector<1x32xf32>
    %255 = vector.broadcast %254 : vector<1x32xf32> to vector<8x32xf32>
    %256 = arith.addf %252, %255 : vector<8x32xf32>
    %c1_142 = arith.constant 1 : index
    %c0_143 = arith.constant 0 : index
    %c0_144 = arith.constant 0 : index
    %257 = vector.load %arg14[%c1_142, %c0_143, %c0_144] : memref<2x32x32xbf16, #tpu.memory_space<vmem>>, vector<1x32x32xbf16>
    %258 = vector.shape_cast %257 : vector<1x32x32xbf16> to vector<32x32xbf16>
    %259 = arith.mulf %228, %0 : vector<8x32xf32>
    %260 = arith.mulf %235, %1 : vector<8x32xf32>
    %261 = arith.addf %259, %260 : vector<8x32xf32>
    %262 = arith.mulf %242, %0 : vector<8x32xf32>
    %263 = arith.mulf %249, %1 : vector<8x32xf32>
    %264 = arith.addf %262, %263 : vector<8x32xf32>
    %265 = vector.extract_strided_slice %261 {offsets = [0, 0], sizes = [8, 8], strides = [1, 1]} : vector<8x32xf32> to vector<8x8xf32>
    %266 = arith.truncf %265 : vector<8x8xf32> to vector<8x8xbf16>
    %267 = vector.extract_strided_slice %264 {offsets = [0, 0], sizes = [8, 8], strides = [1, 1]} : vector<8x32xf32> to vector<8x8xf32>
    %268 = arith.truncf %267 : vector<8x8xf32> to vector<8x8xbf16>
    %cst_145 = arith.constant dense<0.000000e+00> : vector<8x8xf32>
    %269 = tpu.matmul %266, %268, %cst_145 {dimension_numbers = #tpu.dot_dimension_numbers<[1], [1], [0], [0], [0, 0, 1, 0], [], []>} : vector<8x8xbf16>, vector<8x8xbf16>, vector<8x8xf32> -> vector<8x8xf32>
    %cst_146 = arith.constant dense<0xFF800000> : vector<8xf32>
    %270 = vector.multi_reduction <maximumf>, %269, %cst_146 [1] : vector<8x8xf32> to vector<8xf32>
    %271 = vector.shape_cast %270 : vector<8xf32> to vector<8x1xf32>
    %272 = vector.broadcast %271 : vector<8x1xf32> to vector<8x8xf32>
    %273 = arith.subf %269, %272 : vector<8x8xf32>
    %274 = math.exp %273 : vector<8x8xf32>
    %cst_147 = arith.constant dense<0.000000e+00> : vector<8xf32>
    %275 = vector.multi_reduction <add>, %274, %cst_147 [1] : vector<8x8xf32> to vector<8xf32>
    %276 = vector.shape_cast %275 : vector<8xf32> to vector<8x1xf32>
    %277 = tpu.reciprocal %276 {approx = true} : vector<8x1xf32> -> vector<8x1xf32>
    %278 = vector.broadcast %277 : vector<8x1xf32> to vector<8x8xf32>
    %279 = arith.mulf %274, %278 : vector<8x8xf32>
    %280 = arith.truncf %279 : vector<8x8xf32> to vector<8x8xbf16>
    %281 = vector.extract_strided_slice %256 {offsets = [0, 0], sizes = [8, 8], strides = [1, 1]} : vector<8x32xf32> to vector<8x8xf32>
    %282 = arith.truncf %281 : vector<8x8xf32> to vector<8x8xbf16>
    %cst_148 = arith.constant dense<0.000000e+00> : vector<8x8xf32>
    %283 = tpu.matmul %280, %282, %cst_148 {dimension_numbers = #tpu.dot_dimension_numbers<[1], [0], [0], [1], [0, 0, 1, 1], [], []>} : vector<8x8xbf16>, vector<8x8xbf16>, vector<8x8xf32> -> vector<8x8xf32>
    %284 = arith.truncf %283 : vector<8x8xf32> to vector<8x8xbf16>
    %285 = vector.extract_strided_slice %258 {offsets = [0, 0], sizes = [8, 32], strides = [1, 1]} : vector<32x32xbf16> to vector<8x32xbf16>
    %cst_149 = arith.constant dense<0.000000e+00> : vector<8x32xf32>
    %286 = tpu.matmul %284, %285, %cst_149 {dimension_numbers = #tpu.dot_dimension_numbers<[1], [0], [0], [1], [0, 0, 1, 1], [], []>} : vector<8x8xbf16>, vector<8x32xbf16>, vector<8x32xf32> -> vector<8x32xf32>
    %287 = vector.extract_strided_slice %261 {offsets = [0, 8], sizes = [8, 8], strides = [1, 1]} : vector<8x32xf32> to vector<8x8xf32>
    %288 = arith.truncf %287 : vector<8x8xf32> to vector<8x8xbf16>
    %289 = vector.extract_strided_slice %264 {offsets = [0, 8], sizes = [8, 8], strides = [1, 1]} : vector<8x32xf32> to vector<8x8xf32>
    %290 = arith.truncf %289 : vector<8x8xf32> to vector<8x8xbf16>
    %cst_150 = arith.constant dense<0.000000e+00> : vector<8x8xf32>
    %291 = tpu.matmul %288, %290, %cst_150 {dimension_numbers = #tpu.dot_dimension_numbers<[1], [1], [0], [0], [0, 0, 1, 0], [], []>} : vector<8x8xbf16>, vector<8x8xbf16>, vector<8x8xf32> -> vector<8x8xf32>
    %cst_151 = arith.constant dense<0xFF800000> : vector<8xf32>
    %292 = vector.multi_reduction <maximumf>, %291, %cst_151 [1] : vector<8x8xf32> to vector<8xf32>
    %293 = vector.shape_cast %292 : vector<8xf32> to vector<8x1xf32>
    %294 = vector.broadcast %293 : vector<8x1xf32> to vector<8x8xf32>
    %295 = arith.subf %291, %294 : vector<8x8xf32>
    %296 = math.exp %295 : vector<8x8xf32>
    %cst_152 = arith.constant dense<0.000000e+00> : vector<8xf32>
    %297 = vector.multi_reduction <add>, %296, %cst_152 [1] : vector<8x8xf32> to vector<8xf32>
    %298 = vector.shape_cast %297 : vector<8xf32> to vector<8x1xf32>
    %299 = tpu.reciprocal %298 {approx = true} : vector<8x1xf32> -> vector<8x1xf32>
    %300 = vector.broadcast %299 : vector<8x1xf32> to vector<8x8xf32>
    %301 = arith.mulf %296, %300 : vector<8x8xf32>
    %302 = arith.truncf %301 : vector<8x8xf32> to vector<8x8xbf16>
    %303 = vector.extract_strided_slice %256 {offsets = [0, 8], sizes = [8, 8], strides = [1, 1]} : vector<8x32xf32> to vector<8x8xf32>
    %304 = arith.truncf %303 : vector<8x8xf32> to vector<8x8xbf16>
    %cst_153 = arith.constant dense<0.000000e+00> : vector<8x8xf32>
    %305 = tpu.matmul %302, %304, %cst_153 {dimension_numbers = #tpu.dot_dimension_numbers<[1], [0], [0], [1], [0, 0, 1, 1], [], []>} : vector<8x8xbf16>, vector<8x8xbf16>, vector<8x8xf32> -> vector<8x8xf32>
    %306 = arith.truncf %305 : vector<8x8xf32> to vector<8x8xbf16>
    %307 = vector.extract_strided_slice %258 {offsets = [8, 0], sizes = [8, 32], strides = [1, 1]} : vector<32x32xbf16> to vector<8x32xbf16>
    %cst_154 = arith.constant dense<0.000000e+00> : vector<8x32xf32>
    %308 = tpu.matmul %306, %307, %cst_154 {dimension_numbers = #tpu.dot_dimension_numbers<[1], [0], [0], [1], [0, 0, 1, 1], [], []>} : vector<8x8xbf16>, vector<8x32xbf16>, vector<8x32xf32> -> vector<8x32xf32>
    %309 = arith.addf %286, %308 : vector<8x32xf32>
    %310 = vector.extract_strided_slice %261 {offsets = [0, 16], sizes = [8, 8], strides = [1, 1]} : vector<8x32xf32> to vector<8x8xf32>
    %311 = arith.truncf %310 : vector<8x8xf32> to vector<8x8xbf16>
    %312 = vector.extract_strided_slice %264 {offsets = [0, 16], sizes = [8, 8], strides = [1, 1]} : vector<8x32xf32> to vector<8x8xf32>
    %313 = arith.truncf %312 : vector<8x8xf32> to vector<8x8xbf16>
    %cst_155 = arith.constant dense<0.000000e+00> : vector<8x8xf32>
    %314 = tpu.matmul %311, %313, %cst_155 {dimension_numbers = #tpu.dot_dimension_numbers<[1], [1], [0], [0], [0, 0, 1, 0], [], []>} : vector<8x8xbf16>, vector<8x8xbf16>, vector<8x8xf32> -> vector<8x8xf32>
    %cst_156 = arith.constant dense<0xFF800000> : vector<8xf32>
    %315 = vector.multi_reduction <maximumf>, %314, %cst_156 [1] : vector<8x8xf32> to vector<8xf32>
    %316 = vector.shape_cast %315 : vector<8xf32> to vector<8x1xf32>
    %317 = vector.broadcast %316 : vector<8x1xf32> to vector<8x8xf32>
    %318 = arith.subf %314, %317 : vector<8x8xf32>
    %319 = math.exp %318 : vector<8x8xf32>
    %cst_157 = arith.constant dense<0.000000e+00> : vector<8xf32>
    %320 = vector.multi_reduction <add>, %319, %cst_157 [1] : vector<8x8xf32> to vector<8xf32>
    %321 = vector.shape_cast %320 : vector<8xf32> to vector<8x1xf32>
    %322 = tpu.reciprocal %321 {approx = true} : vector<8x1xf32> -> vector<8x1xf32>
    %323 = vector.broadcast %322 : vector<8x1xf32> to vector<8x8xf32>
    %324 = arith.mulf %319, %323 : vector<8x8xf32>
    %325 = arith.truncf %324 : vector<8x8xf32> to vector<8x8xbf16>
    %326 = vector.extract_strided_slice %256 {offsets = [0, 16], sizes = [8, 8], strides = [1, 1]} : vector<8x32xf32> to vector<8x8xf32>
    %327 = arith.truncf %326 : vector<8x8xf32> to vector<8x8xbf16>
    %cst_158 = arith.constant dense<0.000000e+00> : vector<8x8xf32>
    %328 = tpu.matmul %325, %327, %cst_158 {dimension_numbers = #tpu.dot_dimension_numbers<[1], [0], [0], [1], [0, 0, 1, 1], [], []>} : vector<8x8xbf16>, vector<8x8xbf16>, vector<8x8xf32> -> vector<8x8xf32>
    %329 = arith.truncf %328 : vector<8x8xf32> to vector<8x8xbf16>
    %330 = vector.extract_strided_slice %258 {offsets = [16, 0], sizes = [8, 32], strides = [1, 1]} : vector<32x32xbf16> to vector<8x32xbf16>
    %cst_159 = arith.constant dense<0.000000e+00> : vector<8x32xf32>
    %331 = tpu.matmul %329, %330, %cst_159 {dimension_numbers = #tpu.dot_dimension_numbers<[1], [0], [0], [1], [0, 0, 1, 1], [], []>} : vector<8x8xbf16>, vector<8x32xbf16>, vector<8x32xf32> -> vector<8x32xf32>
    %332 = arith.addf %309, %331 : vector<8x32xf32>
    %333 = vector.extract_strided_slice %261 {offsets = [0, 24], sizes = [8, 8], strides = [1, 1]} : vector<8x32xf32> to vector<8x8xf32>
    %334 = arith.truncf %333 : vector<8x8xf32> to vector<8x8xbf16>
    %335 = vector.extract_strided_slice %264 {offsets = [0, 24], sizes = [8, 8], strides = [1, 1]} : vector<8x32xf32> to vector<8x8xf32>
    %336 = arith.truncf %335 : vector<8x8xf32> to vector<8x8xbf16>
    %cst_160 = arith.constant dense<0.000000e+00> : vector<8x8xf32>
    %337 = tpu.matmul %334, %336, %cst_160 {dimension_numbers = #tpu.dot_dimension_numbers<[1], [1], [0], [0], [0, 0, 1, 0], [], []>} : vector<8x8xbf16>, vector<8x8xbf16>, vector<8x8xf32> -> vector<8x8xf32>
    %cst_161 = arith.constant dense<0xFF800000> : vector<8xf32>
    %338 = vector.multi_reduction <maximumf>, %337, %cst_161 [1] : vector<8x8xf32> to vector<8xf32>
    %339 = vector.shape_cast %338 : vector<8xf32> to vector<8x1xf32>
    %340 = vector.broadcast %339 : vector<8x1xf32> to vector<8x8xf32>
    %341 = arith.subf %337, %340 : vector<8x8xf32>
    %342 = math.exp %341 : vector<8x8xf32>
    %cst_162 = arith.constant dense<0.000000e+00> : vector<8xf32>
    %343 = vector.multi_reduction <add>, %342, %cst_162 [1] : vector<8x8xf32> to vector<8xf32>
    %344 = vector.shape_cast %343 : vector<8xf32> to vector<8x1xf32>
    %345 = tpu.reciprocal %344 {approx = true} : vector<8x1xf32> -> vector<8x1xf32>
    %346 = vector.broadcast %345 : vector<8x1xf32> to vector<8x8xf32>
    %347 = arith.mulf %342, %346 : vector<8x8xf32>
    %348 = arith.truncf %347 : vector<8x8xf32> to vector<8x8xbf16>
    %349 = vector.extract_strided_slice %256 {offsets = [0, 24], sizes = [8, 8], strides = [1, 1]} : vector<8x32xf32> to vector<8x8xf32>
    %350 = arith.truncf %349 : vector<8x8xf32> to vector<8x8xbf16>
    %cst_163 = arith.constant dense<0.000000e+00> : vector<8x8xf32>
    %351 = tpu.matmul %348, %350, %cst_163 {dimension_numbers = #tpu.dot_dimension_numbers<[1], [0], [0], [1], [0, 0, 1, 1], [], []>} : vector<8x8xbf16>, vector<8x8xbf16>, vector<8x8xf32> -> vector<8x8xf32>
    %352 = arith.truncf %351 : vector<8x8xf32> to vector<8x8xbf16>
    %353 = vector.extract_strided_slice %258 {offsets = [24, 0], sizes = [8, 32], strides = [1, 1]} : vector<32x32xbf16> to vector<8x32xbf16>
    %cst_164 = arith.constant dense<0.000000e+00> : vector<8x32xf32>
    %354 = tpu.matmul %352, %353, %cst_164 {dimension_numbers = #tpu.dot_dimension_numbers<[1], [0], [0], [1], [0, 0, 1, 1], [], []>} : vector<8x8xbf16>, vector<8x32xbf16>, vector<8x32xf32> -> vector<8x32xf32>
    %355 = arith.addf %332, %354 : vector<8x32xf32>
    %c1_165 = arith.constant 1 : index
    %c0_166 = arith.constant 0 : index
    %c0_167 = arith.constant 0 : index
    %356 = vector.load %arg15[%c1_165, %c0_166, %c0_167] : memref<2x1x32xf32, #tpu.memory_space<vmem>>, vector<1x1x32xf32>
    %357 = vector.shape_cast %356 : vector<1x1x32xf32> to vector<1x32xf32>
    %358 = vector.broadcast %357 : vector<1x32xf32> to vector<8x32xf32>
    %359 = arith.addf %355, %358 : vector<8x32xf32>
    %360 = arith.addf %220, %359 : vector<8x32xf32>
    %c1_168 = arith.constant 1 : index
    %c0_169 = arith.constant 0 : index
    %c0_170 = arith.constant 0 : index
    %361 = vector.load %arg20[%c1_168, %c0_169, %c0_170] : memref<2x1x32xf32, #tpu.memory_space<vmem>>, vector<1x1x32xf32>
    %362 = vector.shape_cast %361 : vector<1x1x32xf32> to vector<1x32xf32>
    %c1_171 = arith.constant 1 : index
    %c0_172 = arith.constant 0 : index
    %c0_173 = arith.constant 0 : index
    %363 = vector.load %arg21[%c1_171, %c0_172, %c0_173] : memref<2x1x32xf32, #tpu.memory_space<vmem>>, vector<1x1x32xf32>
    %364 = vector.shape_cast %363 : vector<1x1x32xf32> to vector<1x32xf32>
    %cst_174 = arith.constant dense<0.000000e+00> : vector<8xf32>
    %365 = vector.multi_reduction <add>, %360, %cst_174 [1] : vector<8x32xf32> to vector<8xf32>
    %366 = vector.shape_cast %365 : vector<8xf32> to vector<8x1xf32>
    %cst_175 = arith.constant 3.200000e+01 : f32
    %367 = vector.broadcast %cst_175 : f32 to vector<8x1xf32>
    %368 = arith.divf %366, %367 : vector<8x1xf32>
    %369 = vector.broadcast %368 : vector<8x1xf32> to vector<8x32xf32>
    %370 = arith.subf %360, %369 : vector<8x32xf32>
    %371 = arith.mulf %370, %370 : vector<8x32xf32>
    %cst_176 = arith.constant dense<0.000000e+00> : vector<8xf32>
    %372 = vector.multi_reduction <add>, %371, %cst_176 [1] : vector<8x32xf32> to vector<8xf32>
    %373 = vector.shape_cast %372 : vector<8xf32> to vector<8x1xf32>
    %cst_177 = arith.constant 3.200000e+01 : f32
    %374 = vector.broadcast %cst_177 : f32 to vector<8x1xf32>
    %375 = arith.divf %373, %374 : vector<8x1xf32>
    %376 = vector.broadcast %368 : vector<8x1xf32> to vector<8x32xf32>
    %377 = arith.subf %360, %376 : vector<8x32xf32>
    %cst_178 = arith.constant 9.99999974E-6 : f32
    %378 = vector.broadcast %cst_178 : f32 to vector<8x1xf32>
    %379 = arith.addf %375, %378 : vector<8x1xf32>
    %380 = math.rsqrt %379 : vector<8x1xf32>
    %381 = vector.broadcast %380 : vector<8x1xf32> to vector<8x32xf32>
    %382 = arith.mulf %377, %381 : vector<8x32xf32>
    %383 = vector.broadcast %362 : vector<1x32xf32> to vector<8x32xf32>
    %384 = arith.mulf %382, %383 : vector<8x32xf32>
    %385 = vector.broadcast %364 : vector<1x32xf32> to vector<8x32xf32>
    %386 = arith.addf %384, %385 : vector<8x32xf32>
    %387 = arith.truncf %386 : vector<8x32xf32> to vector<8x32xbf16>
    %c1_179 = arith.constant 1 : index
    %c0_180 = arith.constant 0 : index
    %c0_181 = arith.constant 0 : index
    %388 = vector.load %arg16[%c1_179, %c0_180, %c0_181] : memref<2x32x64xbf16, #tpu.memory_space<vmem>>, vector<1x32x64xbf16>
    %389 = vector.shape_cast %388 : vector<1x32x64xbf16> to vector<32x64xbf16>
    %cst_182 = arith.constant dense<0.000000e+00> : vector<8x64xf32>
    %390 = tpu.matmul %387, %389, %cst_182 {dimension_numbers = #tpu.dot_dimension_numbers<[1], [0], [0], [1], [0, 0, 1, 1], [], []>} : vector<8x32xbf16>, vector<32x64xbf16>, vector<8x64xf32> -> vector<8x64xf32>
    %c1_183 = arith.constant 1 : index
    %c0_184 = arith.constant 0 : index
    %c0_185 = arith.constant 0 : index
    %391 = vector.load %arg17[%c1_183, %c0_184, %c0_185] : memref<2x1x64xf32, #tpu.memory_space<vmem>>, vector<1x1x64xf32>
    %392 = vector.shape_cast %391 : vector<1x1x64xf32> to vector<1x64xf32>
    %393 = vector.broadcast %392 : vector<1x64xf32> to vector<8x64xf32>
    %394 = arith.addf %390, %393 : vector<8x64xf32>
    %cst_186 = arith.constant 0.000000e+00 : f32
    %395 = vector.broadcast %cst_186 : f32 to vector<8x64xf32>
    %396 = arith.maximumf %394, %395 : vector<8x64xf32>
    %397 = arith.truncf %396 : vector<8x64xf32> to vector<8x64xbf16>
    %c1_187 = arith.constant 1 : index
    %c0_188 = arith.constant 0 : index
    %c0_189 = arith.constant 0 : index
    %398 = vector.load %arg18[%c1_187, %c0_188, %c0_189] : memref<2x64x32xbf16, #tpu.memory_space<vmem>>, vector<1x64x32xbf16>
    %399 = vector.shape_cast %398 : vector<1x64x32xbf16> to vector<64x32xbf16>
    %cst_190 = arith.constant dense<0.000000e+00> : vector<8x32xf32>
    %400 = tpu.matmul %397, %399, %cst_190 {dimension_numbers = #tpu.dot_dimension_numbers<[1], [0], [0], [1], [0, 0, 1, 1], [], []>} : vector<8x64xbf16>, vector<64x32xbf16>, vector<8x32xf32> -> vector<8x32xf32>
    %c1_191 = arith.constant 1 : index
    %c0_192 = arith.constant 0 : index
    %c0_193 = arith.constant 0 : index
    %401 = vector.load %arg19[%c1_191, %c0_192, %c0_193] : memref<2x1x32xf32, #tpu.memory_space<vmem>>, vector<1x1x32xf32>
    %402 = vector.shape_cast %401 : vector<1x1x32xf32> to vector<1x32xf32>
    %403 = vector.broadcast %402 : vector<1x32xf32> to vector<8x32xf32>
    %404 = arith.addf %400, %403 : vector<8x32xf32>
    %405 = arith.addf %386, %404 : vector<8x32xf32>
    %c1_194 = arith.constant 1 : index
    %c0_195 = arith.constant 0 : index
    %c0_196 = arith.constant 0 : index
    %406 = vector.load %arg22[%c1_194, %c0_195, %c0_196] : memref<2x1x32xf32, #tpu.memory_space<vmem>>, vector<1x1x32xf32>
    %407 = vector.shape_cast %406 : vector<1x1x32xf32> to vector<1x32xf32>
    %c1_197 = arith.constant 1 : index
    %c0_198 = arith.constant 0 : index
    %c0_199 = arith.constant 0 : index
    %408 = vector.load %arg23[%c1_197, %c0_198, %c0_199] : memref<2x1x32xf32, #tpu.memory_space<vmem>>, vector<1x1x32xf32>
    %409 = vector.shape_cast %408 : vector<1x1x32xf32> to vector<1x32xf32>
    %cst_200 = arith.constant dense<0.000000e+00> : vector<8xf32>
    %410 = vector.multi_reduction <add>, %405, %cst_200 [1] : vector<8x32xf32> to vector<8xf32>
    %411 = vector.shape_cast %410 : vector<8xf32> to vector<8x1xf32>
    %cst_201 = arith.constant 3.200000e+01 : f32
    %412 = vector.broadcast %cst_201 : f32 to vector<8x1xf32>
    %413 = arith.divf %411, %412 : vector<8x1xf32>
    %414 = vector.broadcast %413 : vector<8x1xf32> to vector<8x32xf32>
    %415 = arith.subf %405, %414 : vector<8x32xf32>
    %416 = arith.mulf %415, %415 : vector<8x32xf32>
    %cst_202 = arith.constant dense<0.000000e+00> : vector<8xf32>
    %417 = vector.multi_reduction <add>, %416, %cst_202 [1] : vector<8x32xf32> to vector<8xf32>
    %418 = vector.shape_cast %417 : vector<8xf32> to vector<8x1xf32>
    %cst_203 = arith.constant 3.200000e+01 : f32
    %419 = vector.broadcast %cst_203 : f32 to vector<8x1xf32>
    %420 = arith.divf %418, %419 : vector<8x1xf32>
    %421 = vector.broadcast %413 : vector<8x1xf32> to vector<8x32xf32>
    %422 = arith.subf %405, %421 : vector<8x32xf32>
    %cst_204 = arith.constant 9.99999974E-6 : f32
    %423 = vector.broadcast %cst_204 : f32 to vector<8x1xf32>
    %424 = arith.addf %420, %423 : vector<8x1xf32>
    %425 = math.rsqrt %424 : vector<8x1xf32>
    %426 = vector.broadcast %425 : vector<8x1xf32> to vector<8x32xf32>
    %427 = arith.mulf %422, %426 : vector<8x32xf32>
    %428 = vector.broadcast %407 : vector<1x32xf32> to vector<8x32xf32>
    %429 = arith.mulf %427, %428 : vector<8x32xf32>
    %430 = vector.broadcast %409 : vector<1x32xf32> to vector<8x32xf32>
    %431 = arith.addf %429, %430 : vector<8x32xf32>
    %432 = arith.truncf %431 : vector<8x32xf32> to vector<8x32xbf16>
    %c0_205 = arith.constant 0 : index
    %c0_206 = arith.constant 0 : index
    %433 = vector.load %arg26[%c0_205, %c0_206] : memref<32x128xbf16, #tpu.memory_space<vmem>>, vector<32x128xbf16>
    %cst_207 = arith.constant dense<0.000000e+00> : vector<8x128xf32>
    %434 = tpu.matmul %432, %433, %cst_207 {dimension_numbers = #tpu.dot_dimension_numbers<[1], [0], [0], [1], [0, 0, 1, 1], [], []>} : vector<8x32xbf16>, vector<32x128xbf16>, vector<8x128xf32> -> vector<8x128xf32>
    %c0_208 = arith.constant 0 : index
    %c0_209 = arith.constant 0 : index
    %435 = vector.load %arg27[%c0_208, %c0_209] : memref<1x128xf32, #tpu.memory_space<vmem>>, vector<1x128xf32>
    %436 = vector.broadcast %435 : vector<1x128xf32> to vector<8x128xf32>
    %437 = arith.addf %434, %436 : vector<8x128xf32>
    %438 = vector.shape_cast %437 : vector<8x128xf32> to vector<1x8x128xf32>
    %c0_210 = arith.constant 0 : index
    %c0_211 = arith.constant 0 : index
    %c0_212 = arith.constant 0 : index
    %439 = vector.load %arg28[%c0_210, %c0_211, %c0_212] : memref<1x8x128xf32, #tpu.memory_space<vmem>>, vector<1x8x128xf32>
    tpu.vector_store %arg28[%c0_210, %c0_211, %c0_212], %438 {strides = array<i32>} : memref<1x8x128xf32, #tpu.memory_space<vmem>>, vector<1x8x128xf32>,
    return
  }
  func.func @transform_0(%arg0: i32) -> (i32, i32, i32) {
    %c0_i32 = arith.constant 0 : i32
    %c0_i32_0 = arith.constant 0 : i32
    %c0_i32_1 = arith.constant 0 : i32
    return %arg0, %c0_i32, %c0_i32_0 : i32, i32, i32
  }
  func.func @transform_1(%arg0: i32) -> (i32, i32) {
    %c0_i32 = arith.constant 0 : i32
    %c0_i32_0 = arith.constant 0 : i32
    %c0_i32_1 = arith.constant 0 : i32
    return %c0_i32, %c0_i32_0 : i32, i32
  }
  func.func @transform_2(%arg0: i32) -> (i32, i32) {
    %c0_i32 = arith.constant 0 : i32
    %c0_i32_0 = arith.constant 0 : i32
    %c0_i32_1 = arith.constant 0 : i32
    return %c0_i32, %c0_i32_0 : i32, i32
  }
  func.func @transform_3(%arg0: i32) -> (i32, i32, i32) {
    %c0_i32 = arith.constant 0 : i32
    %c0_i32_0 = arith.constant 0 : i32
    %c0_i32_1 = arith.constant 0 : i32
    %c0_i32_2 = arith.constant 0 : i32
    return %c0_i32, %c0_i32_0, %c0_i32_1 : i32, i32, i32
  }
  func.func @transform_4(%arg0: i32) -> (i32, i32, i32) {
    %c0_i32 = arith.constant 0 : i32
    %c0_i32_0 = arith.constant 0 : i32
    %c0_i32_1 = arith.constant 0 : i32
    %c0_i32_2 = arith.constant 0 : i32
    return %c0_i32, %c0_i32_0, %c0_i32_1 : i32, i32, i32
  }
  func.func @transform_5(%arg0: i32) -> (i32, i32, i32) {
    %c0_i32 = arith.constant 0 : i32
    %c0_i32_0 = arith.constant 0 : i32
    %c0_i32_1 = arith.constant 0 : i32
    %c0_i32_2 = arith.constant 0 : i32
    return %c0_i32, %c0_i32_0, %c0_i32_1 : i32, i32, i32
  }
  func.func @transform_6(%arg0: i32) -> (i32, i32, i32) {
    %c0_i32 = arith.constant 0 : i32
    %c0_i32_0 = arith.constant 0 : i32
    %c0_i32_1 = arith.constant 0 : i32
    %c0_i32_2 = arith.constant 0 : i32
    return %c0_i32, %c0_i32_0, %c0_i32_1 : i32, i32, i32
  }
  func.func @transform_7(%arg0: i32) -> (i32, i32, i32) {
    %c0_i32 = arith.constant 0 : i32
    %c0_i32_0 = arith.constant 0 : i32
    %c0_i32_1 = arith.constant 0 : i32
    %c0_i32_2 = arith.constant 0 : i32
    return %c0_i32, %c0_i32_0, %c0_i32_1 : i32, i32, i32
  }
  func.func @transform_8(%arg0: i32) -> (i32, i32, i32) {
    %c0_i32 = arith.constant 0 : i32
    %c0_i32_0 = arith.constant 0 : i32
    %c0_i32_1 = arith.constant 0 : i32
    %c0_i32_2 = arith.constant 0 : i32
    return %c0_i32, %c0_i32_0, %c0_i32_1 : i32, i32, i32
  }
  func.func @transform_9(%arg0: i32) -> (i32, i32, i32) {
    %c0_i32 = arith.constant 0 : i32
    %c0_i32_0 = arith.constant 0 : i32
    %c0_i32_1 = arith.constant 0 : i32
    %c0_i32_2 = arith.constant 0 : i32
    return %c0_i32, %c0_i32_0, %c0_i32_1 : i32, i32, i32
  }
  func.func @transform_10(%arg0: i32) -> (i32, i32, i32) {
    %c0_i32 = arith.constant 0 : i32
    %c0_i32_0 = arith.constant 0 : i32
    %c0_i32_1 = arith.constant 0 : i32
    %c0_i32_2 = arith.constant 0 : i32
    return %c0_i32, %c0_i32_0, %c0_i32_1 : i32, i32, i32
  }
  func.func @transform_11(%arg0: i32) -> (i32, i32, i32) {
    %c0_i32 = arith.constant 0 : i32
    %c0_i32_0 = arith.constant 0 : i32
    %c0_i32_1 = arith.constant 0 : i32
    %c0_i32_2 = arith.constant 0 : i32
    return %c0_i32, %c0_i32_0, %c0_i32_1 : i32, i32, i32
  }
  func.func @transform_12(%arg0: i32) -> (i32, i32, i32) {
    %c0_i32 = arith.constant 0 : i32
    %c0_i32_0 = arith.constant 0 : i32
    %c0_i32_1 = arith.constant 0 : i32
    %c0_i32_2 = arith.constant 0 : i32
    return %c0_i32, %c0_i32_0, %c0_i32_1 : i32, i32, i32
  }
  func.func @transform_13(%arg0: i32) -> (i32, i32, i32) {
    %c0_i32 = arith.constant 0 : i32
    %c0_i32_0 = arith.constant 0 : i32
    %c0_i32_1 = arith.constant 0 : i32
    %c0_i32_2 = arith.constant 0 : i32
    return %c0_i32, %c0_i32_0, %c0_i32_1 : i32, i32, i32
  }
  func.func @transform_14(%arg0: i32) -> (i32, i32, i32) {
    %c0_i32 = arith.constant 0 : i32
    %c0_i32_0 = arith.constant 0 : i32
    %c0_i32_1 = arith.constant 0 : i32
    %c0_i32_2 = arith.constant 0 : i32
    return %c0_i32, %c0_i32_0, %c0_i32_1 : i32, i32, i32
  }
  func.func @transform_15(%arg0: i32) -> (i32, i32, i32) {
    %c0_i32 = arith.constant 0 : i32
    %c0_i32_0 = arith.constant 0 : i32
    %c0_i32_1 = arith.constant 0 : i32
    %c0_i32_2 = arith.constant 0 : i32
    return %c0_i32, %c0_i32_0, %c0_i32_1 : i32, i32, i32
  }
  func.func @transform_16(%arg0: i32) -> (i32, i32, i32) {
    %c0_i32 = arith.constant 0 : i32
    %c0_i32_0 = arith.constant 0 : i32
    %c0_i32_1 = arith.constant 0 : i32
    %c0_i32_2 = arith.constant 0 : i32
    return %c0_i32, %c0_i32_0, %c0_i32_1 : i32, i32, i32
  }
  func.func @transform_17(%arg0: i32) -> (i32, i32, i32) {
    %c0_i32 = arith.constant 0 : i32
    %c0_i32_0 = arith.constant 0 : i32
    %c0_i32_1 = arith.constant 0 : i32
    %c0_i32_2 = arith.constant 0 : i32
    return %c0_i32, %c0_i32_0, %c0_i32_1 : i32, i32, i32
  }
  func.func @transform_18(%arg0: i32) -> (i32, i32, i32) {
    %c0_i32 = arith.constant 0 : i32
    %c0_i32_0 = arith.constant 0 : i32
    %c0_i32_1 = arith.constant 0 : i32
    %c0_i32_2 = arith.constant 0 : i32
    return %c0_i32, %c0_i32_0, %c0_i32_1 : i32, i32, i32
  }
  func.func @transform_19(%arg0: i32) -> (i32, i32, i32) {
    %c0_i32 = arith.constant 0 : i32
    %c0_i32_0 = arith.constant 0 : i32
    %c0_i32_1 = arith.constant 0 : i32
    %c0_i32_2 = arith.constant 0 : i32
    return %c0_i32, %c0_i32_0, %c0_i32_1 : i32, i32, i32
  }
  func.func @transform_20(%arg0: i32) -> (i32, i32, i32) {
    %c0_i32 = arith.constant 0 : i32
    %c0_i32_0 = arith.constant 0 : i32
    %c0_i32_1 = arith.constant 0 : i32
    %c0_i32_2 = arith.constant 0 : i32
    return %c0_i32, %c0_i32_0, %c0_i32_1 : i32, i32, i32
  }
  func.func @transform_21(%arg0: i32) -> (i32, i32, i32) {
    %c0_i32 = arith.constant 0 : i32
    %c0_i32_0 = arith.constant 0 : i32
    %c0_i32_1 = arith.constant 0 : i32
    %c0_i32_2 = arith.constant 0 : i32
    return %c0_i32, %c0_i32_0, %c0_i32_1 : i32, i32, i32
  }
  func.func @transform_22(%arg0: i32) -> (i32, i32, i32) {
    %c0_i32 = arith.constant 0 : i32
    %c0_i32_0 = arith.constant 0 : i32
    %c0_i32_1 = arith.constant 0 : i32
    %c0_i32_2 = arith.constant 0 : i32
    return %c0_i32, %c0_i32_0, %c0_i32_1 : i32, i32, i32
  }
  func.func @transform_23(%arg0: i32) -> (i32, i32) {
    %c0_i32 = arith.constant 0 : i32
    %c0_i32_0 = arith.constant 0 : i32
    %c0_i32_1 = arith.constant 0 : i32
    return %c0_i32, %c0_i32_0 : i32, i32
  }
  func.func @transform_24(%arg0: i32) -> (i32, i32) {
    %c0_i32 = arith.constant 0 : i32
    %c0_i32_0 = arith.constant 0 : i32
    %c0_i32_1 = arith.constant 0 : i32
    return %c0_i32, %c0_i32_0 : i32, i32
  }
  func.func @transform_25(%arg0: i32) -> (i32, i32) {
    %c0_i32 = arith.constant 0 : i32
    %c0_i32_0 = arith.constant 0 : i32
    %c0_i32_1 = arith.constant 0 : i32
    return %c0_i32, %c0_i32_0 : i32, i32
  }
  func.func @transform_26(%arg0: i32) -> (i32, i32) {
    %c0_i32 = arith.constant 0 : i32
    %c0_i32_0 = arith.constant 0 : i32
    %c0_i32_1 = arith.constant 0 : i32
    return %c0_i32, %c0_i32_0 : i32, i32
  }
  func.func @transform_27(%arg0: i32) -> (i32, i32, i32) {
    %c0_i32 = arith.constant 0 : i32
    %c0_i32_0 = arith.constant 0 : i32
    %c0_i32_1 = arith.constant 0 : i32
    return %arg0, %c0_i32, %c0_i32_0 : i32, i32, i32
  }
}

</mosaic_0001>

<llo_original>
// kernel: tpu_custom_call.1
$region0: #{tpu_custom_call.1}
  #allocation0 [shape = 'u32[]', space=smem, size = 0x4, offset = 0x4, fixed_abs, tag = 'smem constant byte address 0x4 - core index']
  #allocation1 [shape = 'u32[144,128]{1,0:T(1,128)}', space=vmem, size = 0x12000, scoped, tag = 'internal scratch']
  %s0 = inlined_call_operand.vmem [shape: f32[2,8,3], index: 0, kind: input, shape index: {}]
  %s1 = inlined_call_operand.hbm [shape: bf16[3,32], index: 1, kind: input, shape index: {}]
  %s2 = inlined_call_operand.vmem [shape: f32[1,32], index: 2, kind: input, shape index: {}]
  %s3 = inlined_call_operand.vmem [shape: bf16[2,32,32], index: 3, kind: input, shape index: {}]
  %s4 = inlined_call_operand.hbm [shape: f32[2,1,32], index: 4, kind: input, shape index: {}]
  %s5 = inlined_call_operand.vmem [shape: bf16[2,32,32], index: 5, kind: input, shape index: {}]
  %s6 = inlined_call_operand.hbm [shape: f32[2,1,32], index: 6, kind: input, shape index: {}]
  %s7 = inlined_call_operand.vmem [shape: bf16[2,32,32], index: 7, kind: input, shape index: {}]
  %s8 = inlined_call_operand.hbm [shape: f32[2,1,32], index: 8, kind: input, shape index: {}]
  %s9 = inlined_call_operand.hbm [shape: bf16[2,32,32], index: 9, kind: input, shape index: {}]
  %s10 = inlined_call_operand.hbm [shape: f32[2,1,32], index: 10, kind: input, shape index: {}]
  %s11 = inlined_call_operand.hbm [shape: bf16[2,32,32], index: 11, kind: input, shape index: {}]
  %s12 = inlined_call_operand.hbm [shape: f32[2,1,32], index: 12, kind: input, shape index: {}]
  %s13 = inlined_call_operand.vmem [shape: bf16[2,32,32], index: 13, kind: input, shape index: {}]
  %s14 = inlined_call_operand.hbm [shape: f32[2,1,32], index: 14, kind: input, shape index: {}]
  %s15 = inlined_call_operand.hbm [shape: bf16[2,32,64], index: 15, kind: input, shape index: {}]
  %s16 = inlined_call_operand.hbm [shape: f32[2,1,64], index: 16, kind: input, shape index: {}]
  %s17 = inlined_call_operand.vmem [shape: bf16[2,64,32], index: 17, kind: input, shape index: {}]
  %s18 = inlined_call_operand.hbm [shape: f32[2,1,32], index: 18, kind: input, shape index: {}]
  %s19 = inlined_call_operand.hbm [shape: f32[2,1,32], index: 19, kind: input, shape index: {}]
  %s20 = inlined_call_operand.hbm [shape: f32[2,1,32], index: 20, kind: input, shape index: {}]
  %s21 = inlined_call_operand.vmem [shape: f32[2,1,32], index: 21, kind: input, shape index: {}]
  %s22 = inlined_call_operand.vmem [shape: f32[2,1,32], index: 22, kind: input, shape index: {}]
  %s23 = inlined_call_operand.vmem [shape: f32[8,32], index: 23, kind: input, shape index: {}]
  %s24 = inlined_call_operand.vmem [shape: f32[8,32], index: 24, kind: input, shape index: {}]
  %s25 = inlined_call_operand.vmem [shape: bf16[32,128], index: 25, kind: input, shape index: {}]
  %s26 = inlined_call_operand.vmem [shape: f32[1,128], index: 26, kind: input, shape index: {}]
  %s27 = inlined_call_operand.hbm [shape: f32[2,8,128], index: 27, kind: output, shape index: {}]
  %s28 = sld [smem:[#allocation0]]
  $region197: #{tpu_custom_call.1} parent=0
    _
  %s30 = ssub.s32 1, %s28
  %s31 = scalar_select 0, %s30, %s28
  $region1: #{tpu_custom_call.1} parent=0
    #allocation2 [shape = 'u8[1024]{0}', space=vmem, size = 0x400, scoped, tag = 'input window, operand 1, single buffered']
    #allocation3 [shape = 's32[2]{0}', space=sflag, size = 0x8, scoped, tag = 'scoped memory for tpu_custom_call.1']
    #allocation4 [shape = 's32[2]{0}', space=sflag, size = 0x8, scoped, tag = 'scoped memory for tpu_custom_call.1']
    #allocation5 [shape = 'u8[1024]{0}', space=vmem, size = 0x400, scoped, tag = 'input window, operand 4, single buffered']
    #allocation6 [shape = 's32[1]{0}', space=sflag, size = 0x4, scoped, tag = 'scoped memory for tpu_custom_call.1']
    #allocation7 [shape = 'u8[1024]{0}', space=vmem, size = 0x400, scoped, tag = 'input window, operand 6, single buffered']
    #allocation8 [shape = 'u8[1024]{0}', space=vmem, size = 0x400, scoped, tag = 'input window, operand 8, single buffered']
    #allocation9 [shape = 's32[1]{0}', space=sflag, size = 0x4, scoped, tag = 'scoped memory for tpu_custom_call.1']
    #allocation10 [shape = 'u8[16384]{0}', space=vmem, size = 0x4000, scoped, tag = 'input window, operand 9, single buffered']
    #allocation11 [shape = 'u8[1024]{0}', space=vmem, size = 0x400, scoped, tag = 'input window, operand 10, single buffered']
    #allocation12 [shape = 's32[1]{0}', space=sflag, size = 0x4, scoped, tag = 'scoped memory for tpu_custom_call.1']
    #allocation13 [shape = 'u8[16384]{0}', space=vmem, size = 0x4000, scoped, tag = 'input window, operand 11, single buffered']
    #allocation14 [shape = 'u8[1024]{0}', space=vmem, size = 0x400, scoped, tag = 'input window, operand 12, single buffered']
    #allocation15 [shape = 's32[1]{0}', space=sflag, size = 0x4, scoped, tag = 'scoped memory for tpu_custom_call.1']
    #allocation16 [shape = 'u8[1024]{0}', space=vmem, size = 0x400, scoped, tag = 'input window, operand 14, single buffered']
    #allocation17 [shape = 'u8[16384]{0}', space=vmem, size = 0x4000, scoped, tag = 'input window, operand 15, single buffered']
    #allocation18 [shape = 's32[1]{0}', space=sflag, size = 0x4, scoped, tag = 'scoped memory for tpu_custom_call.1']
    #allocation19 [shape = 'u8[1024]{0}', space=vmem, size = 0x400, scoped, tag = 'input window, operand 16, single buffered']
    #allocation20 [shape = 'u8[1024]{0}', space=vmem, size = 0x400, scoped, tag = 'input window, operand 18, single buffered']
    #allocation21 [shape = 's32[1]{0}', space=sflag, size = 0x4, scoped, tag = 'scoped memory for tpu_custom_call.1']
    #allocation22 [shape = 'u8[1024]{0}', space=vmem, size = 0x400, scoped, tag = 'input window, operand 19, single buffered']
    #allocation23 [shape = 'u8[1024]{0}', space=vmem, size = 0x400, scoped, tag = 'input window, operand 20, single buffered']
    #allocation24 [shape = 's32[1]{0}', space=sflag, size = 0x4, scoped, tag = 'scoped memory for tpu_custom_call.1']
    #allocation25 [shape = 'u8[8192]{0}', space=vmem, size = 0x2000, scoped, tag = 'output window, operand 0']
    %32 = vsyncpa [#allocation3], 0
    %33 = vsyncpa [#allocation6], 0
    %34 = vsyncpa [#allocation9], 0
    %35 = vsyncpa [#allocation12], 0
    %36 = vsyncpa [#allocation15], 0
    %37 = vsyncpa [#allocation18], 0
    %38 = vsyncpa [#allocation21], 0
    %39 = vsyncpa [#allocation24], 0
    %40 = vsyncpa [#allocation4], 0
    %s41 = scalar_lea.sflag [#allocation4], 1
    %42 = vsyncpa %s41, 0
    loop: start=0, step=1, limit=4
    $region2: #{tpu_custom_call.1} parent=1 // loop_pre_header
      _
    $region3: #{tpu_custom_call.1} parent=1 // loop_header
      %s44 = sphi 0, %s48
      %p45 = scmp.ge.s32.totalorder %s44, 4
      %s54 = sphi 0, %s56
      %s57 = sphi 0, %s54
      %s58 = sphi 0, %s57
      %s74 = sphi 0, %s58
      %s78 = sphi 0, %s78
      %s80 = sphi 0, %s78
      %s81 = sphi 0, %s80
      %s95 = sphi 0, %s81
      %s99 = sphi 0, %s99
      %s101 = sphi 0, %s99
      %s102 = sphi 0, %s101
      %s116 = sphi 0, %s102
      %s120 = sphi 0, %s120
      %s122 = sphi 0, %s120
      %s123 = sphi 0, %s122
      %s137 = sphi 0, %s123
      %s141 = sphi 0, %s141
      %s143 = sphi 0, %s141
      %s144 = sphi 0, %s143
      %s158 = sphi 0, %s144
      %s162 = sphi 0, %s162
      %s164 = sphi 0, %s162
      %s165 = sphi 0, %s164
      %s179 = sphi 0, %s165
      %s183 = sphi 0, %s183
      %s185 = sphi 0, %s183
      %s186 = sphi 0, %s185
      %s200 = sphi 0, %s186
      %s204 = sphi 0, %s204
      %s206 = sphi 0, %s204
      %s207 = sphi 0, %s206
      %s221 = sphi 0, %s207
      %s225 = sphi 0, %s225
      %s227 = sphi 0, %s225
      %s228 = sphi 0, %s227
      %s242 = sphi 0, %s228
      %s246 = sphi 0, %s246
      %s248 = sphi 0, %s246
      %s249 = sphi 0, %s248
      %s263 = sphi 0, %s249
      %s267 = sphi 0, %s267
      %s269 = sphi 0, %s267
      %s270 = sphi 0, %s269
      %s284 = sphi 0, %s270
      %s288 = sphi 0, %s288
      %s290 = sphi 0, %s288
      %s291 = sphi 0, %s290
      %s305 = sphi 0, %s291
      %s309 = sphi 0, %s309
      %s311 = sphi 0, %s309
      %s312 = sphi 0, %s311
      %s326 = sphi 0, %s312
      %s330 = sphi 0, %s330
      %s332 = sphi 0, %s330
      %s333 = sphi 0, %s332
      %s347 = sphi 0, %s333
      %s351 = sphi 0, %s351
      %s353 = sphi 0, %s351
      %s354 = sphi 0, %s353
      %s368 = sphi 0, %s354
      %s372 = sphi 0, %s372
      %s374 = sphi 0, %s372
      %s375 = sphi 0, %s374
      %s389 = sphi 0, %s375
      %s393 = sphi 0, %s393
      %s395 = sphi 0, %s393
      %s396 = sphi 0, %s395
      %s410 = sphi 0, %s396
      %s414 = sphi 0, %s414
      %s416 = sphi 0, %s414
      %s417 = sphi 0, %s416
      %s431 = sphi 0, %s417
      %s435 = sphi 0, %s435
      %s437 = sphi 0, %s435
      %s438 = sphi 0, %s437
      %s452 = sphi 0, %s438
      %s456 = sphi 0, %s456
      %s458 = sphi 0, %s456
      %s459 = sphi 0, %s458
      %s473 = sphi 0, %s459
      %s477 = sphi 0, %s477
      %s479 = sphi 0, %s477
      %s480 = sphi 0, %s479
      %s494 = sphi 0, %s480
      %s498 = sphi 0, %s498
      %s500 = sphi 0, %s498
      %s501 = sphi 0, %s500
      %s515 = sphi 0, %s501
      %s519 = sphi 0, %s519
      %s521 = sphi 0, %s519
      %s522 = sphi 0, %s521
      %s536 = sphi 0, %s522
      %s540 = sphi 0, %s540
      %s542 = sphi 0, %s540
      %s543 = sphi 0, %s542
      %s557 = sphi 0, %s543
      %s561 = sphi 0, %s561
      %s563 = sphi 0, %s561
      %s564 = sphi 0, %s563
      %s578 = sphi 0, %s564
      %s582 = sphi 0, %s582
      %s584 = sphi 0, %s582
      %s585 = sphi 0, %s584
      %s599 = sphi 0, %s585
      %s603 = sphi 0, %s603
      %s605 = sphi 0, %s603
      %s606 = sphi 0, %s605
      %s620 = sphi 0, %s606
      %s626 = sphi 0, %s628
      %s629 = sphi 0, %s626
      %s630 = sphi 0, %s629
      %s646 = sphi 0, %s630
    $region4: #{tpu_custom_call.1} parent=1 // loop_header_branch
      %47 = sbr.rel (%p45) target = $region8
    $region5: #{tpu_custom_call.1} parent=1 // loop_body
      %s49 = ssub.s32 %s44, 1
      %s50 = ssub.s32 %s44, 2
      %s51 = sadd.s32 %s44, 1
      %s52 = ssub.s32 %s44, %s51
      %p53 = scmp.eq.s32.totalorder %s52, 0
      %s55 = sadd.s32 %s54, 1
      %s56 = scalar_select %p53, %s54, %s55
      %p59 = pneg %p53
      %p60 = scmp.eq.s32.totalorder %s44, 1
      %p61 = por %p59, %p60
      %p62 = scmp.ne.s32.totalorder %s54, %s57
      %p63 = scmp.eq.s32.totalorder %s44, 0
      %p64 = por %p62, %p63
      %p65 = scmp.ne.s32.totalorder %s54, %s57
      %p66 = scmp.eq.s32.totalorder %s49, 1
      %p67 = por %p65, %p66
      %p68 = scmp.ne.s32.totalorder %s57, %s58
      %p69 = scmp.eq.s32.totalorder %s49, 0
      %p70 = por %p68, %p69
      %p71 = scmp.ne.s32.totalorder %s57, %s58
      %p72 = scmp.eq.s32.totalorder %s50, 1
      %p73 = por %p71, %p72
      %p75 = scmp.ne.s32.totalorder %s58, %s74
      %p76 = scmp.eq.s32.totalorder %s50, 0
      %p77 = por %p75, %p76
      %s79 = sadd.s32 %s78, 1
      %p82 = scmp.eq.s32.totalorder %s44, 1
      %p83 = scmp.ne.s32.totalorder %s78, %s80
      %p84 = scmp.eq.s32.totalorder %s44, 0
      %p85 = por %p83, %p84
      %p86 = scmp.ne.s32.totalorder %s78, %s80
      %p87 = scmp.eq.s32.totalorder %s49, 1
      %p88 = por %p86, %p87
      %p89 = scmp.ne.s32.totalorder %s80, %s81
      %p90 = scmp.eq.s32.totalorder %s49, 0
      %p91 = por %p89, %p90
      %p92 = scmp.ne.s32.totalorder %s80, %s81
      %p93 = scmp.eq.s32.totalorder %s50, 1
      %p94 = por %p92, %p93
      %p96 = scmp.ne.s32.totalorder %s81, %s95
      %p97 = scmp.eq.s32.totalorder %s50, 0
      %p98 = por %p96, %p97
      %s100 = sadd.s32 %s99, 1
      %p103 = scmp.eq.s32.totalorder %s44, 1
      %p104 = scmp.ne.s32.totalorder %s99, %s101
      %p105 = scmp.eq.s32.totalorder %s44, 0
      %p106 = por %p104, %p105
      %p107 = scmp.ne.s32.totalorder %s99, %s101
      %p108 = scmp.eq.s32.totalorder %s49, 1
      %p109 = por %p107, %p108
      %p110 = scmp.ne.s32.totalorder %s101, %s102
      %p111 = scmp.eq.s32.totalorder %s49, 0
      %p112 = por %p110, %p111
      %p113 = scmp.ne.s32.totalorder %s101, %s102
      %p114 = scmp.eq.s32.totalorder %s50, 1
      %p115 = por %p113, %p114
      %p117 = scmp.ne.s32.totalorder %s102, %s116
      %p118 = scmp.eq.s32.totalorder %s50, 0
      %p119 = por %p117, %p118
      %s121 = sadd.s32 %s120, 1
      %p124 = scmp.eq.s32.totalorder %s44, 1
      %p125 = scmp.ne.s32.totalorder %s120, %s122
      %p126 = scmp.eq.s32.totalorder %s44, 0
      %p127 = por %p125, %p126
      %p128 = scmp.ne.s32.totalorder %s120, %s122
      %p129 = scmp.eq.s32.totalorder %s49, 1
      %p130 = por %p128, %p129
      %p131 = scmp.ne.s32.totalorder %s122, %s123
      %p132 = scmp.eq.s32.totalorder %s49, 0
      %p133 = por %p131, %p132
      %p134 = scmp.ne.s32.totalorder %s122, %s123
      %p135 = scmp.eq.s32.totalorder %s50, 1
      %p136 = por %p134, %p135
      %p138 = scmp.ne.s32.totalorder %s123, %s137
      %p139 = scmp.eq.s32.totalorder %s50, 0
      %p140 = por %p138, %p139
      %s142 = sadd.s32 %s141, 1
      %p145 = scmp.eq.s32.totalorder %s44, 1
      %p146 = scmp.ne.s32.totalorder %s141, %s143
      %p147 = scmp.eq.s32.totalorder %s44, 0
      %p148 = por %p146, %p147
      %p149 = scmp.ne.s32.totalorder %s141, %s143
      %p150 = scmp.eq.s32.totalorder %s49, 1
      %p151 = por %p149, %p150
      %p152 = scmp.ne.s32.totalorder %s143, %s144
      %p153 = scmp.eq.s32.totalorder %s49, 0
      %p154 = por %p152, %p153
      %p155 = scmp.ne.s32.totalorder %s143, %s144
      %p156 = scmp.eq.s32.totalorder %s50, 1
      %p157 = por %p155, %p156
      %p159 = scmp.ne.s32.totalorder %s144, %s158
      %p160 = scmp.eq.s32.totalorder %s50, 0
      %p161 = por %p159, %p160
      %s163 = sadd.s32 %s162, 1
      %p166 = scmp.eq.s32.totalorder %s44, 1
      %p167 = scmp.ne.s32.totalorder %s162, %s164
      %p168 = scmp.eq.s32.totalorder %s44, 0
      %p169 = por %p167, %p168
      %p170 = scmp.ne.s32.totalorder %s162, %s164
      %p171 = scmp.eq.s32.totalorder %s49, 1
      %p172 = por %p170, %p171
      %p173 = scmp.ne.s32.totalorder %s164, %s165
      %p174 = scmp.eq.s32.totalorder %s49, 0
      %p175 = por %p173, %p174
      %p176 = scmp.ne.s32.totalorder %s164, %s165
      %p177 = scmp.eq.s32.totalorder %s50, 1
      %p178 = por %p176, %p177
      %p180 = scmp.ne.s32.totalorder %s165, %s179
      %p181 = scmp.eq.s32.totalorder %s50, 0
      %p182 = por %p180, %p181
      %s184 = sadd.s32 %s183, 1
      %p187 = scmp.eq.s32.totalorder %s44, 1
      %p188 = scmp.ne.s32.totalorder %s183, %s185
      %p189 = scmp.eq.s32.totalorder %s44, 0
      %p190 = por %p188, %p189
      %p191 = scmp.ne.s32.totalorder %s183, %s185
      %p192 = scmp.eq.s32.totalorder %s49, 1
      %p193 = por %p191, %p192
      %p194 = scmp.ne.s32.totalorder %s185, %s186
      %p195 = scmp.eq.s32.totalorder %s49, 0
      %p196 = por %p194, %p195
      %p197 = scmp.ne.s32.totalorder %s185, %s186
      %p198 = scmp.eq.s32.totalorder %s50, 1
      %p199 = por %p197, %p198
      %p201 = scmp.ne.s32.totalorder %s186, %s200
      %p202 = scmp.eq.s32.totalorder %s50, 0
      %p203 = por %p201, %p202
      %s205 = sadd.s32 %s204, 1
      %p208 = scmp.eq.s32.totalorder %s44, 1
      %p209 = scmp.ne.s32.totalorder %s204, %s206
      %p210 = scmp.eq.s32.totalorder %s44, 0
      %p211 = por %p209, %p210
      %p212 = scmp.ne.s32.totalorder %s204, %s206
      %p213 = scmp.eq.s32.totalorder %s49, 1
      %p214 = por %p212, %p213
      %p215 = scmp.ne.s32.totalorder %s206, %s207
      %p216 = scmp.eq.s32.totalorder %s49, 0
      %p217 = por %p215, %p216
      %p218 = scmp.ne.s32.totalorder %s206, %s207
      %p219 = scmp.eq.s32.totalorder %s50, 1
      %p220 = por %p218, %p219
      %p222 = scmp.ne.s32.totalorder %s207, %s221
      %p223 = scmp.eq.s32.totalorder %s50, 0
      %p224 = por %p222, %p223
      %s226 = sadd.s32 %s225, 1
      %p229 = scmp.eq.s32.totalorder %s44, 1
      %p230 = scmp.ne.s32.totalorder %s225, %s227
      %p231 = scmp.eq.s32.totalorder %s44, 0
      %p232 = por %p230, %p231
      %p233 = scmp.ne.s32.totalorder %s225, %s227
      %p234 = scmp.eq.s32.totalorder %s49, 1
      %p235 = por %p233, %p234
      %p236 = scmp.ne.s32.totalorder %s227, %s228
      %p237 = scmp.eq.s32.totalorder %s49, 0
      %p238 = por %p236, %p237
      %p239 = scmp.ne.s32.totalorder %s227, %s228
      %p240 = scmp.eq.s32.totalorder %s50, 1
      %p241 = por %p239, %p240
      %p243 = scmp.ne.s32.totalorder %s228, %s242
      %p244 = scmp.eq.s32.totalorder %s50, 0
      %p245 = por %p243, %p244
      %s247 = sadd.s32 %s246, 1
      %p250 = scmp.eq.s32.totalorder %s44, 1
      %p251 = scmp.ne.s32.totalorder %s246, %s248
      %p252 = scmp.eq.s32.totalorder %s44, 0
      %p253 = por %p251, %p252
      %p254 = scmp.ne.s32.totalorder %s246, %s248
      %p255 = scmp.eq.s32.totalorder %s49, 1
      %p256 = por %p254, %p255
      %p257 = scmp.ne.s32.totalorder %s248, %s249
      %p258 = scmp.eq.s32.totalorder %s49, 0
      %p259 = por %p257, %p258
      %p260 = scmp.ne.s32.totalorder %s248, %s249
      %p261 = scmp.eq.s32.totalorder %s50, 1
      %p262 = por %p260, %p261
      %p264 = scmp.ne.s32.totalorder %s249, %s263
      %p265 = scmp.eq.s32.totalorder %s50, 0
      %p266 = por %p264, %p265
      %s268 = sadd.s32 %s267, 1
      %p271 = scmp.eq.s32.totalorder %s44, 1
      %p272 = scmp.ne.s32.totalorder %s267, %s269
      %p273 = scmp.eq.s32.totalorder %s44, 0
      %p274 = por %p272, %p273
      %p275 = scmp.ne.s32.totalorder %s267, %s269
      %p276 = scmp.eq.s32.totalorder %s49, 1
      %p277 = por %p275, %p276
      %p278 = scmp.ne.s32.totalorder %s269, %s270
      %p279 = scmp.eq.s32.totalorder %s49, 0
      %p280 = por %p278, %p279
      %p281 = scmp.ne.s32.totalorder %s269, %s270
      %p282 = scmp.eq.s32.totalorder %s50, 1
      %p283 = por %p281, %p282
      %p285 = scmp.ne.s32.totalorder %s270, %s284
      %p286 = scmp.eq.s32.totalorder %s50, 0
      %p287 = por %p285, %p286
      %s289 = sadd.s32 %s288, 1
      %p292 = scmp.eq.s32.totalorder %s44, 1
      %p293 = scmp.ne.s32.totalorder %s288, %s290
      %p294 = scmp.eq.s32.totalorder %s44, 0
      %p295 = por %p293, %p294
      %p296 = scmp.ne.s32.totalorder %s288, %s290
      %p297 = scmp.eq.s32.totalorder %s49, 1
      %p298 = por %p296, %p297
      %p299 = scmp.ne.s32.totalorder %s290, %s291
      %p300 = scmp.eq.s32.totalorder %s49, 0
      %p301 = por %p299, %p300
      %p302 = scmp.ne.s32.totalorder %s290, %s291
      %p303 = scmp.eq.s32.totalorder %s50, 1
      %p304 = por %p302, %p303
      %p306 = scmp.ne.s32.totalorder %s291, %s305
      %p307 = scmp.eq.s32.totalorder %s50, 0
      %p308 = por %p306, %p307
      %s310 = sadd.s32 %s309, 1
      %p313 = scmp.eq.s32.totalorder %s44, 1
      %p314 = scmp.ne.s32.totalorder %s309, %s311
      %p315 = scmp.eq.s32.totalorder %s44, 0
      %p316 = por %p314, %p315
      %p317 = scmp.ne.s32.totalorder %s309, %s311
      %p318 = scmp.eq.s32.totalorder %s49, 1
      %p319 = por %p317, %p318
      %p320 = scmp.ne.s32.totalorder %s311, %s312
      %p321 = scmp.eq.s32.totalorder %s49, 0
      %p322 = por %p320, %p321
      %p323 = scmp.ne.s32.totalorder %s311, %s312
      %p324 = scmp.eq.s32.totalorder %s50, 1
      %p325 = por %p323, %p324
      %p327 = scmp.ne.s32.totalorder %s312, %s326
      %p328 = scmp.eq.s32.totalorder %s50, 0
      %p329 = por %p327, %p328
      %s331 = sadd.s32 %s330, 1
      %p334 = scmp.eq.s32.totalorder %s44, 1
      %p335 = scmp.ne.s32.totalorder %s330, %s332
      %p336 = scmp.eq.s32.totalorder %s44, 0
      %p337 = por %p335, %p336
      %p338 = scmp.ne.s32.totalorder %s330, %s332
      %p339 = scmp.eq.s32.totalorder %s49, 1
      %p340 = por %p338, %p339
      %p341 = scmp.ne.s32.totalorder %s332, %s333
      %p342 = scmp.eq.s32.totalorder %s49, 0
      %p343 = por %p341, %p342
      %p344 = scmp.ne.s32.totalorder %s332, %s333
      %p345 = scmp.eq.s32.totalorder %s50, 1
      %p346 = por %p344, %p345
      %p348 = scmp.ne.s32.totalorder %s333, %s347
      %p349 = scmp.eq.s32.totalorder %s50, 0
      %p350 = por %p348, %p349
      %s352 = sadd.s32 %s351, 1
      %p355 = scmp.eq.s32.totalorder %s44, 1
      %p356 = scmp.ne.s32.totalorder %s351, %s353
      %p357 = scmp.eq.s32.totalorder %s44, 0
      %p358 = por %p356, %p357
      %p359 = scmp.ne.s32.totalorder %s351, %s353
      %p360 = scmp.eq.s32.totalorder %s49, 1
      %p361 = por %p359, %p360
      %p362 = scmp.ne.s32.totalorder %s353, %s354
      %p363 = scmp.eq.s32.totalorder %s49, 0
      %p364 = por %p362, %p363
      %p365 = scmp.ne.s32.totalorder %s353, %s354
      %p366 = scmp.eq.s32.totalorder %s50, 1
      %p367 = por %p365, %p366
      %p369 = scmp.ne.s32.totalorder %s354, %s368
      %p370 = scmp.eq.s32.totalorder %s50, 0
      %p371 = por %p369, %p370
      %s373 = sadd.s32 %s372, 1
      %p376 = scmp.eq.s32.totalorder %s44, 1
      %p377 = scmp.ne.s32.totalorder %s372, %s374
      %p378 = scmp.eq.s32.totalorder %s44, 0
      %p379 = por %p377, %p378
      %p380 = scmp.ne.s32.totalorder %s372, %s374
      %p381 = scmp.eq.s32.totalorder %s49, 1
      %p382 = por %p380, %p381
      %p383 = scmp.ne.s32.totalorder %s374, %s375
      %p384 = scmp.eq.s32.totalorder %s49, 0
      %p385 = por %p383, %p384
      %p386 = scmp.ne.s32.totalorder %s374, %s375
      %p387 = scmp.eq.s32.totalorder %s50, 1
      %p388 = por %p386, %p387
      %p390 = scmp.ne.s32.totalorder %s375, %s389
      %p391 = scmp.eq.s32.totalorder %s50, 0
      %p392 = por %p390, %p391
      %s394 = sadd.s32 %s393, 1
      %p397 = scmp.eq.s32.totalorder %s44, 1
      %p398 = scmp.ne.s32.totalorder %s393, %s395
      %p399 = scmp.eq.s32.totalorder %s44, 0
      %p400 = por %p398, %p399
      %p401 = scmp.ne.s32.totalorder %s393, %s395
      %p402 = scmp.eq.s32.totalorder %s49, 1
      %p403 = por %p401, %p402
      %p404 = scmp.ne.s32.totalorder %s395, %s396
      %p405 = scmp.eq.s32.totalorder %s49, 0
      %p406 = por %p404, %p405
      %p407 = scmp.ne.s32.totalorder %s395, %s396
      %p408 = scmp.eq.s32.totalorder %s50, 1
      %p409 = por %p407, %p408
      %p411 = scmp.ne.s32.totalorder %s396, %s410
      %p412 = scmp.eq.s32.totalorder %s50, 0
      %p413 = por %p411, %p412
      %s415 = sadd.s32 %s414, 1
      %p418 = scmp.eq.s32.totalorder %s44, 1
      %p419 = scmp.ne.s32.totalorder %s414, %s416
      %p420 = scmp.eq.s32.totalorder %s44, 0
      %p421 = por %p419, %p420
      %p422 = scmp.ne.s32.totalorder %s414, %s416
      %p423 = scmp.eq.s32.totalorder %s49, 1
      %p424 = por %p422, %p423
      %p425 = scmp.ne.s32.totalorder %s416, %s417
      %p426 = scmp.eq.s32.totalorder %s49, 0
      %p427 = por %p425, %p426
      %p428 = scmp.ne.s32.totalorder %s416, %s417
      %p429 = scmp.eq.s32.totalorder %s50, 1
      %p430 = por %p428, %p429
      %p432 = scmp.ne.s32.totalorder %s417, %s431
      %p433 = scmp.eq.s32.totalorder %s50, 0
      %p434 = por %p432, %p433
      %s436 = sadd.s32 %s435, 1
      %p439 = scmp.eq.s32.totalorder %s44, 1
      %p440 = scmp.ne.s32.totalorder %s435, %s437
      %p441 = scmp.eq.s32.totalorder %s44, 0
      %p442 = por %p440, %p441
      %p443 = scmp.ne.s32.totalorder %s435, %s437
      %p444 = scmp.eq.s32.totalorder %s49, 1
      %p445 = por %p443, %p444
      %p446 = scmp.ne.s32.totalorder %s437, %s438
      %p447 = scmp.eq.s32.totalorder %s49, 0
      %p448 = por %p446, %p447
      %p449 = scmp.ne.s32.totalorder %s437, %s438
      %p450 = scmp.eq.s32.totalorder %s50, 1
      %p451 = por %p449, %p450
      %p453 = scmp.ne.s32.totalorder %s438, %s452
      %p454 = scmp.eq.s32.totalorder %s50, 0
      %p455 = por %p453, %p454
      %s457 = sadd.s32 %s456, 1
      %p460 = scmp.eq.s32.totalorder %s44, 1
      %p461 = scmp.ne.s32.totalorder %s456, %s458
      %p462 = scmp.eq.s32.totalorder %s44, 0
      %p463 = por %p461, %p462
      %p464 = scmp.ne.s32.totalorder %s456, %s458
      %p465 = scmp.eq.s32.totalorder %s49, 1
      %p466 = por %p464, %p465
      %p467 = scmp.ne.s32.totalorder %s458, %s459
      %p468 = scmp.eq.s32.totalorder %s49, 0
      %p469 = por %p467, %p468
      %p470 = scmp.ne.s32.totalorder %s458, %s459
      %p471 = scmp.eq.s32.totalorder %s50, 1
      %p472 = por %p470, %p471
      %p474 = scmp.ne.s32.totalorder %s459, %s473
      %p475 = scmp.eq.s32.totalorder %s50, 0
      %p476 = por %p474, %p475
      %s478 = sadd.s32 %s477, 1
      %p481 = scmp.eq.s32.totalorder %s44, 1
      %p482 = scmp.ne.s32.totalorder %s477, %s479
      %p483 = scmp.eq.s32.totalorder %s44, 0
      %p484 = por %p482, %p483
      %p485 = scmp.ne.s32.totalorder %s477, %s479
      %p486 = scmp.eq.s32.totalorder %s49, 1
      %p487 = por %p485, %p486
      %p488 = scmp.ne.s32.totalorder %s479, %s480
      %p489 = scmp.eq.s32.totalorder %s49, 0
      %p490 = por %p488, %p489
      %p491 = scmp.ne.s32.totalorder %s479, %s480
      %p492 = scmp.eq.s32.totalorder %s50, 1
      %p493 = por %p491, %p492
      %p495 = scmp.ne.s32.totalorder %s480, %s494
      %p496 = scmp.eq.s32.totalorder %s50, 0
      %p497 = por %p495, %p496
      %s499 = sadd.s32 %s498, 1
      %p502 = scmp.eq.s32.totalorder %s44, 1
      %p503 = scmp.ne.s32.totalorder %s498, %s500
      %p504 = scmp.eq.s32.totalorder %s44, 0
      %p505 = por %p503, %p504
      %p506 = scmp.ne.s32.totalorder %s498, %s500
      %p507 = scmp.eq.s32.totalorder %s49, 1
      %p508 = por %p506, %p507
      %p509 = scmp.ne.s32.totalorder %s500, %s501
      %p510 = scmp.eq.s32.totalorder %s49, 0
      %p511 = por %p509, %p510
      %p512 = scmp.ne.s32.totalorder %s500, %s501
      %p513 = scmp.eq.s32.totalorder %s50, 1
      %p514 = por %p512, %p513
      %p516 = scmp.ne.s32.totalorder %s501, %s515
      %p517 = scmp.eq.s32.totalorder %s50, 0
      %p518 = por %p516, %p517
      %s520 = sadd.s32 %s519, 1
      %p523 = scmp.eq.s32.totalorder %s44, 1
      %p524 = scmp.ne.s32.totalorder %s519, %s521
      %p525 = scmp.eq.s32.totalorder %s44, 0
      %p526 = por %p524, %p525
      %p527 = scmp.ne.s32.totalorder %s519, %s521
      %p528 = scmp.eq.s32.totalorder %s49, 1
      %p529 = por %p527, %p528
      %p530 = scmp.ne.s32.totalorder %s521, %s522
      %p531 = scmp.eq.s32.totalorder %s49, 0
      %p532 = por %p530, %p531
      %p533 = scmp.ne.s32.totalorder %s521, %s522
      %p534 = scmp.eq.s32.totalorder %s50, 1
      %p535 = por %p533, %p534
      %p537 = scmp.ne.s32.totalorder %s522, %s536
      %p538 = scmp.eq.s32.totalorder %s50, 0
      %p539 = por %p537, %p538
      %s541 = sadd.s32 %s540, 1
      %p544 = scmp.eq.s32.totalorder %s44, 1
      %p545 = scmp.ne.s32.totalorder %s540, %s542
      %p546 = scmp.eq.s32.totalorder %s44, 0
      %p547 = por %p545, %p546
      %p548 = scmp.ne.s32.totalorder %s540, %s542
      %p549 = scmp.eq.s32.totalorder %s49, 1
      %p550 = por %p548, %p549
      %p551 = scmp.ne.s32.totalorder %s542, %s543
      %p552 = scmp.eq.s32.totalorder %s49, 0
      %p553 = por %p551, %p552
      %p554 = scmp.ne.s32.totalorder %s542, %s543
      %p555 = scmp.eq.s32.totalorder %s50, 1
      %p556 = por %p554, %p555
      %p558 = scmp.ne.s32.totalorder %s543, %s557
      %p559 = scmp.eq.s32.totalorder %s50, 0
      %p560 = por %p558, %p559
      %s562 = sadd.s32 %s561, 1
      %p565 = scmp.eq.s32.totalorder %s44, 1
      %p566 = scmp.ne.s32.totalorder %s561, %s563
      %p567 = scmp.eq.s32.totalorder %s44, 0
      %p568 = por %p566, %p567
      %p569 = scmp.ne.s32.totalorder %s561, %s563
      %p570 = scmp.eq.s32.totalorder %s49, 1
      %p571 = por %p569, %p570
      %p572 = scmp.ne.s32.totalorder %s563, %s564
      %p573 = scmp.eq.s32.totalorder %s49, 0
      %p574 = por %p572, %p573
      %p575 = scmp.ne.s32.totalorder %s563, %s564
      %p576 = scmp.eq.s32.totalorder %s50, 1
      %p577 = por %p575, %p576
      %p579 = scmp.ne.s32.totalorder %s564, %s578
      %p580 = scmp.eq.s32.totalorder %s50, 0
      %p581 = por %p579, %p580
      %s583 = sadd.s32 %s582, 1
      %p586 = scmp.eq.s32.totalorder %s44, 1
      %p587 = scmp.ne.s32.totalorder %s582, %s584
      %p588 = scmp.eq.s32.totalorder %s44, 0
      %p589 = por %p587, %p588
      %p590 = scmp.ne.s32.totalorder %s582, %s584
      %p591 = scmp.eq.s32.totalorder %s49, 1
      %p592 = por %p590, %p591
      %p593 = scmp.ne.s32.totalorder %s584, %s585
      %p594 = scmp.eq.s32.totalorder %s49, 0
      %p595 = por %p593, %p594
      %p596 = scmp.ne.s32.totalorder %s584, %s585
      %p597 = scmp.eq.s32.totalorder %s50, 1
      %p598 = por %p596, %p597
      %p600 = scmp.ne.s32.totalorder %s585, %s599
      %p601 = scmp.eq.s32.totalorder %s50, 0
      %p602 = por %p600, %p601
      %s604 = sadd.s32 %s603, 1
      %p607 = scmp.eq.s32.totalorder %s44, 1
      %p608 = scmp.ne.s32.totalorder %s603, %s605
      %p609 = scmp.eq.s32.totalorder %s44, 0
      %p610 = por %p608, %p609
      %p611 = scmp.ne.s32.totalorder %s603, %s605
      %p612 = scmp.eq.s32.totalorder %s49, 1
      %p613 = por %p611, %p612
      %p614 = scmp.ne.s32.totalorder %s605, %s606
      %p615 = scmp.eq.s32.totalorder %s49, 0
      %p616 = por %p614, %p615
      %p617 = scmp.ne.s32.totalorder %s605, %s606
      %p618 = scmp.eq.s32.totalorder %s50, 1
      %p619 = por %p617, %p618
      %p621 = scmp.ne.s32.totalorder %s606, %s620
      %p622 = scmp.eq.s32.totalorder %s50, 0
      %p623 = por %p621, %p622
      %s624 = ssub.s32 %s44, %s51
      %p625 = scmp.eq.s32.totalorder %s624, 0
      %s627 = sadd.s32 %s626, 1
      %s628 = scalar_select %p625, %s626, %s627
      %p631 = pneg %p625
      %p632 = scmp.eq.s32.totalorder %s44, 1
      %p633 = por %p631, %p632
      %p634 = scmp.ne.s32.totalorder %s626, %s629
      %p635 = scmp.eq.s32.totalorder %s44, 0
      %p636 = por %p634, %p635
      %p637 = scmp.ne.s32.totalorder %s626, %s629
      %p638 = scmp.eq.s32.totalorder %s49, 1
      %p639 = por %p637, %p638
      %p640 = scmp.ne.s32.totalorder %s629, %s630
      %p641 = scmp.eq.s32.totalorder %s49, 0
      %p642 = por %p640, %p641
      %p643 = scmp.ne.s32.totalorder %s629, %s630
      %p644 = scmp.eq.s32.totalorder %s50, 1
      %p645 = por %p643, %p644
      %p647 = scmp.ne.s32.totalorder %s630, %s646
      %p648 = scmp.eq.s32.totalorder %s50, 0
      %p649 = por %p647, %p648
      %p650 = scmp.le.s32.totalorder 1, %s44
      %p651 = scmp.lt.s32.totalorder %s44, 3
      %p652 = pnand %p650, %p651
      %p653 = pneg %p652
      // Predicated region
      $region9: #{tpu_custom_call.1} parent=5 // pred_check
        _
      $region10: #{tpu_custom_call.1} parent=5 // pred_check_branch
        %655 = sbr.rel (%p652) target = $region12
      $region11: #{tpu_custom_call.1} parent=5 // pred_region
        %s656 = ssub.s32 %s44, 1
        // Predicated region
        $region13: #{tpu_custom_call.1} parent=11 // pred_check
          %p657 = pneg %p91
        $region14: #{tpu_custom_call.1} parent=11 // pred_check_branch
          %659 = sbr.rel (%p657) target = $region16
        $region15: #{tpu_custom_call.1} parent=11 // pred_region
          %s661 = ssub.s32 32, 32
          %662 = vsyncadd [#allocation3], %s661
          %s664 = sshll.u32 [#allocation2], 4
          %s665 = int_to_ptr.vmem [resolvable:$true] %s664
          %667 = dma.hbm_to_vmem [thread:$0]  %s1, 32, %s665, [#allocation3]
        $region16: #{tpu_custom_call.1} parent=11 // pred_fallthru
          _
        // Predicated region
        $region17: #{tpu_custom_call.1} parent=11 // pred_check
          %p668 = pneg %p112
        $region18: #{tpu_custom_call.1} parent=11 // pred_check_branch
          %670 = sbr.rel (%p668) target = $region20
        $region19: #{tpu_custom_call.1} parent=11 // pred_region
          _
        $region20: #{tpu_custom_call.1} parent=11 // pred_fallthru
          _
        // Predicated region
        $region21: #{tpu_custom_call.1} parent=11 // pred_check
          %p671 = pneg %p133
        $region22: #{tpu_custom_call.1} parent=11 // pred_check_branch
          %673 = sbr.rel (%p671) target = $region24
        $region23: #{tpu_custom_call.1} parent=11 // pred_region
          _
        $region24: #{tpu_custom_call.1} parent=11 // pred_fallthru
          _
        // Predicated region
        $region25: #{tpu_custom_call.1} parent=11 // pred_check
          %p674 = pneg %p154
        $region26: #{tpu_custom_call.1} parent=11 // pred_check_branch
          %676 = sbr.rel (%p674) target = $region28
        $region27: #{tpu_custom_call.1} parent=11 // pred_region
          %s678 = ssub.s32 32, 32
          %679 = vsyncadd [#allocation6], %s678
          %s680 = sshll.u32 [#allocation5], 4
          %s681 = int_to_ptr.vmem [resolvable:$true] %s680
          %686 = dma.hbm_to_vmem [thread:$0]  %s4, 32, %s681, [#allocation6], 16, 16, 1
        $region28: #{tpu_custom_call.1} parent=11 // pred_fallthru
          _
        // Predicated region
        $region29: #{tpu_custom_call.1} parent=11 // pred_check
          %p687 = pneg %p175
        $region30: #{tpu_custom_call.1} parent=11 // pred_check_branch
          %689 = sbr.rel (%p687) target = $region32
        $region31: #{tpu_custom_call.1} parent=11 // pred_region
          _
        $region32: #{tpu_custom_call.1} parent=11 // pred_fallthru
          _
        // Predicated region
        $region33: #{tpu_custom_call.1} parent=11 // pred_check
          %p690 = pneg %p196
        $region34: #{tpu_custom_call.1} parent=11 // pred_check_branch
          %692 = sbr.rel (%p690) target = $region36
        $region35: #{tpu_custom_call.1} parent=11 // pred_region
          %s694 = ssub.s32 32, 32
          %695 = vsyncadd [#allocation6], %s694
          %s696 = sshll.u32 [#allocation7], 4
          %s697 = int_to_ptr.vmem [resolvable:$true] %s696
          %702 = dma.hbm_to_vmem [thread:$0]  %s6, 32, %s697, [#allocation6], 16, 16, 1
        $region36: #{tpu_custom_call.1} parent=11 // pred_fallthru
          _
        // Predicated region
        $region37: #{tpu_custom_call.1} parent=11 // pred_check
          %p703 = pneg %p217
        $region38: #{tpu_custom_call.1} parent=11 // pred_check_branch
          %705 = sbr.rel (%p703) target = $region40
        $region39: #{tpu_custom_call.1} parent=11 // pred_region
          _
        $region40: #{tpu_custom_call.1} parent=11 // pred_fallthru
          _
        // Predicated region
        $region41: #{tpu_custom_call.1} parent=11 // pred_check
          %p706 = pneg %p238
        $region42: #{tpu_custom_call.1} parent=11 // pred_check_branch
          %708 = sbr.rel (%p706) target = $region44
        $region43: #{tpu_custom_call.1} parent=11 // pred_region
          %s710 = ssub.s32 32, 32
          %711 = vsyncadd [#allocation9], %s710
          %s712 = sshll.u32 [#allocation8], 4
          %s713 = int_to_ptr.vmem [resolvable:$true] %s712
          %718 = dma.hbm_to_vmem [thread:$0]  %s8, 32, %s713, [#allocation9], 16, 16, 1
        $region44: #{tpu_custom_call.1} parent=11 // pred_fallthru
          _
        // Predicated region
        $region45: #{tpu_custom_call.1} parent=11 // pred_check
          %p719 = pneg %p259
        $region46: #{tpu_custom_call.1} parent=11 // pred_check_branch
          %721 = sbr.rel (%p719) target = $region48
        $region47: #{tpu_custom_call.1} parent=11 // pred_region
          %s723 = ssub.s32 512, 512
          %724 = vsyncadd [#allocation9], %s723
          %s725 = sshll.u32 [#allocation10], 4
          %s726 = int_to_ptr.vmem [resolvable:$true] %s725
          %731 = dma.hbm_to_vmem [thread:$0]  %s9, 512, %s726, [#allocation9], 64, 64, 4
        $region48: #{tpu_custom_call.1} parent=11 // pred_fallthru
          _
        // Predicated region
        $region49: #{tpu_custom_call.1} parent=11 // pred_check
          %p732 = pneg %p280
        $region50: #{tpu_custom_call.1} parent=11 // pred_check_branch
          %734 = sbr.rel (%p732) target = $region52
        $region51: #{tpu_custom_call.1} parent=11 // pred_region
          %s736 = ssub.s32 32, 32
          %737 = vsyncadd [#allocation12], %s736
          %s738 = sshll.u32 [#allocation11], 4
          %s739 = int_to_ptr.vmem [resolvable:$true] %s738
          %744 = dma.hbm_to_vmem [thread:$0]  %s10, 32, %s739, [#allocation12], 16, 16, 1
        $region52: #{tpu_custom_call.1} parent=11 // pred_fallthru
          _
        // Predicated region
        $region53: #{tpu_custom_call.1} parent=11 // pred_check
          %p745 = pneg %p301
        $region54: #{tpu_custom_call.1} parent=11 // pred_check_branch
          %747 = sbr.rel (%p745) target = $region56
        $region55: #{tpu_custom_call.1} parent=11 // pred_region
          %s749 = ssub.s32 512, 512
          %750 = vsyncadd [#allocation12], %s749
          %s751 = sshll.u32 [#allocation13], 4
          %s752 = int_to_ptr.vmem [resolvable:$true] %s751
          %757 = dma.hbm_to_vmem [thread:$0]  %s11, 512, %s752, [#allocation12], 64, 64, 4
        $region56: #{tpu_custom_call.1} parent=11 // pred_fallthru
          _
        // Predicated region
        $region57: #{tpu_custom_call.1} parent=11 // pred_check
          %p758 = pneg %p322
        $region58: #{tpu_custom_call.1} parent=11 // pred_check_branch
          %760 = sbr.rel (%p758) target = $region60
        $region59: #{tpu_custom_call.1} parent=11 // pred_region
          %s762 = ssub.s32 32, 32
          %763 = vsyncadd [#allocation15], %s762
          %s764 = sshll.u32 [#allocation14], 4
          %s765 = int_to_ptr.vmem [resolvable:$true] %s764
          %770 = dma.hbm_to_vmem [thread:$0]  %s12, 32, %s765, [#allocation15], 16, 16, 1
        $region60: #{tpu_custom_call.1} parent=11 // pred_fallthru
          _
        // Predicated region
        $region61: #{tpu_custom_call.1} parent=11 // pred_check
          %p771 = pneg %p343
        $region62: #{tpu_custom_call.1} parent=11 // pred_check_branch
          %773 = sbr.rel (%p771) target = $region64
        $region63: #{tpu_custom_call.1} parent=11 // pred_region
          _
        $region64: #{tpu_custom_call.1} parent=11 // pred_fallthru
          _
        // Predicated region
        $region65: #{tpu_custom_call.1} parent=11 // pred_check
          %p774 = pneg %p364
        $region66: #{tpu_custom_call.1} parent=11 // pred_check_branch
          %776 = sbr.rel (%p774) target = $region68
        $region67: #{tpu_custom_call.1} parent=11 // pred_region
          %s778 = ssub.s32 32, 32
          %779 = vsyncadd [#allocation15], %s778
          %s780 = sshll.u32 [#allocation16], 4
          %s781 = int_to_ptr.vmem [resolvable:$true] %s780
          %786 = dma.hbm_to_vmem [thread:$0]  %s14, 32, %s781, [#allocation15], 16, 16, 1
        $region68: #{tpu_custom_call.1} parent=11 // pred_fallthru
          _
        // Predicated region
        $region69: #{tpu_custom_call.1} parent=11 // pred_check
          %p787 = pneg %p385
        $region70: #{tpu_custom_call.1} parent=11 // pred_check_branch
          %789 = sbr.rel (%p787) target = $region72
        $region71: #{tpu_custom_call.1} parent=11 // pred_region
          %s791 = ssub.s32 512, 512
          %792 = vsyncadd [#allocation18], %s791
          %s793 = sshll.u32 [#allocation17], 4
          %s794 = int_to_ptr.vmem [resolvable:$true] %s793
          %799 = dma.hbm_to_vmem [thread:$0]  %s15, 512, %s794, [#allocation18], 64, 64, 4
        $region72: #{tpu_custom_call.1} parent=11 // pred_fallthru
          _
        // Predicated region
        $region73: #{tpu_custom_call.1} parent=11 // pred_check
          %p800 = pneg %p406
        $region74: #{tpu_custom_call.1} parent=11 // pred_check_branch
          %802 = sbr.rel (%p800) target = $region76
        $region75: #{tpu_custom_call.1} parent=11 // pred_region
          %s804 = ssub.s32 32, 32
          %805 = vsyncadd [#allocation18], %s804
          %s806 = sshll.u32 [#allocation19], 4
          %s807 = int_to_ptr.vmem [resolvable:$true] %s806
          %812 = dma.hbm_to_vmem [thread:$0]  %s16, 32, %s807, [#allocation18], 16, 16, 1
        $region76: #{tpu_custom_call.1} parent=11 // pred_fallthru
          _
        // Predicated region
        $region77: #{tpu_custom_call.1} parent=11 // pred_check
          %p813 = pneg %p427
        $region78: #{tpu_custom_call.1} parent=11 // pred_check_branch
          %815 = sbr.rel (%p813) target = $region80
        $region79: #{tpu_custom_call.1} parent=11 // pred_region
          _
        $region80: #{tpu_custom_call.1} parent=11 // pred_fallthru
          _
        // Predicated region
        $region81: #{tpu_custom_call.1} parent=11 // pred_check
          %p816 = pneg %p448
        $region82: #{tpu_custom_call.1} parent=11 // pred_check_branch
          %818 = sbr.rel (%p816) target = $region84
        $region83: #{tpu_custom_call.1} parent=11 // pred_region
          %s820 = ssub.s32 32, 32
          %821 = vsyncadd [#allocation21], %s820
          %s822 = sshll.u32 [#allocation20], 4
          %s823 = int_to_ptr.vmem [resolvable:$true] %s822
          %828 = dma.hbm_to_vmem [thread:$0]  %s18, 32, %s823, [#allocation21], 16, 16, 1
        $region84: #{tpu_custom_call.1} parent=11 // pred_fallthru
          _
        // Predicated region
        $region85: #{tpu_custom_call.1} parent=11 // pred_check
          %p829 = pneg %p469
        $region86: #{tpu_custom_call.1} parent=11 // pred_check_branch
          %831 = sbr.rel (%p829) target = $region88
        $region87: #{tpu_custom_call.1} parent=11 // pred_region
          %s833 = ssub.s32 32, 32
          %834 = vsyncadd [#allocation21], %s833
          %s835 = sshll.u32 [#allocation22], 4
          %s836 = int_to_ptr.vmem [resolvable:$true] %s835
          %841 = dma.hbm_to_vmem [thread:$0]  %s19, 32, %s836, [#allocation21], 16, 16, 1
        $region88: #{tpu_custom_call.1} parent=11 // pred_fallthru
          _
        // Predicated region
        $region89: #{tpu_custom_call.1} parent=11 // pred_check
          %p842 = pneg %p490
        $region90: #{tpu_custom_call.1} parent=11 // pred_check_branch
          %844 = sbr.rel (%p842) target = $region92
        $region91: #{tpu_custom_call.1} parent=11 // pred_region
          %s846 = ssub.s32 32, 32
          %847 = vsyncadd [#allocation24], %s846
          %s848 = sshll.u32 [#allocation23], 4
          %s849 = int_to_ptr.vmem [resolvable:$true] %s848
          %854 = dma.hbm_to_vmem [thread:$0]  %s20, 32, %s849, [#allocation24], 16, 16, 1
        $region92: #{tpu_custom_call.1} parent=11 // pred_fallthru
          _
        // Predicated region
        $region93: #{tpu_custom_call.1} parent=11 // pred_check
          %p855 = pneg %p511
        $region94: #{tpu_custom_call.1} parent=11 // pred_check_branch
          %857 = sbr.rel (%p855) target = $region96
        $region95: #{tpu_custom_call.1} parent=11 // pred_region
          _
        $region96: #{tpu_custom_call.1} parent=11 // pred_fallthru
          _
        // Predicated region
        $region97: #{tpu_custom_call.1} parent=11 // pred_check
          %p858 = pneg %p532
        $region98: #{tpu_custom_call.1} parent=11 // pred_check_branch
          %860 = sbr.rel (%p858) target = $region100
        $region99: #{tpu_custom_call.1} parent=11 // pred_region
          _
        $region100: #{tpu_custom_call.1} parent=11 // pred_fallthru
          _
        // Predicated region
        $region101: #{tpu_custom_call.1} parent=11 // pred_check
          %p861 = pneg %p553
        $region102: #{tpu_custom_call.1} parent=11 // pred_check_branch
          %863 = sbr.rel (%p861) target = $region104
        $region103: #{tpu_custom_call.1} parent=11 // pred_region
          _
        $region104: #{tpu_custom_call.1} parent=11 // pred_fallthru
          _
        // Predicated region
        $region105: #{tpu_custom_call.1} parent=11 // pred_check
          %p864 = pneg %p574
        $region106: #{tpu_custom_call.1} parent=11 // pred_check_branch
          %866 = sbr.rel (%p864) target = $region108
        $region107: #{tpu_custom_call.1} parent=11 // pred_region
          _
        $region108: #{tpu_custom_call.1} parent=11 // pred_fallthru
          _
        // Predicated region
        $region109: #{tpu_custom_call.1} parent=11 // pred_check
          %p867 = pneg %p595
        $region110: #{tpu_custom_call.1} parent=11 // pred_check_branch
          %869 = sbr.rel (%p867) target = $region112
        $region111: #{tpu_custom_call.1} parent=11 // pred_region
          _
        $region112: #{tpu_custom_call.1} parent=11 // pred_fallthru
          _
        // Predicated region
        $region113: #{tpu_custom_call.1} parent=11 // pred_check
          %p870 = pneg %p616
        $region114: #{tpu_custom_call.1} parent=11 // pred_check_branch
          %872 = sbr.rel (%p870) target = $region116
        $region115: #{tpu_custom_call.1} parent=11 // pred_region
          _
        $region116: #{tpu_custom_call.1} parent=11 // pred_fallthru
          _
      $region12: #{tpu_custom_call.1} parent=5 // pred_fallthru
        _
      %p873 = scmp.lt.s32.totalorder %s44, 2
      // Predicated region
      $region117: #{tpu_custom_call.1} parent=5 // pred_check
        %p874 = pneg %p873
      $region118: #{tpu_custom_call.1} parent=5 // pred_check_branch
        %876 = sbr.rel (%p874) target = $region120
      $region119: #{tpu_custom_call.1} parent=5 // pred_region
        // Predicated region
        $region121: #{tpu_custom_call.1} parent=119 // pred_check
          %p877 = pneg %p64
        $region122: #{tpu_custom_call.1} parent=119 // pred_check_branch
          %879 = sbr.rel (%p877) target = $region124
        $region123: #{tpu_custom_call.1} parent=119 // pred_region
          %p880 = scmp.lt.s32.totalorder %s44, 1
          %s881 = scalar_select %p880, %s44, 1
          %s882 = smul.addr %s881, 8
          %s883 = scalar_lea.vmem %s0, %s882
        $region124: #{tpu_custom_call.1} parent=119 // pred_fallthru
          _
      $region120: #{tpu_custom_call.1} parent=5 // pred_fallthru
        _
      %p884 = scmp.le.s32.totalorder 1, %s44
      %p885 = scmp.lt.s32.totalorder %s44, 3
      %p886 = pnand %p884, %p885
      %p887 = pneg %p886
      // Predicated region
      $region125: #{tpu_custom_call.1} parent=5 // pred_check
        _
      $region126: #{tpu_custom_call.1} parent=5 // pred_check_branch
        %889 = sbr.rel (%p886) target = $region128
      $region127: #{tpu_custom_call.1} parent=5 // pred_region
        %s890 = ssub.s32 %s44, 1
        // Predicated region
        $region129: #{tpu_custom_call.1} parent=127 // pred_check
          %p891 = pneg %p91
        $region130: #{tpu_custom_call.1} parent=127 // pred_check_branch
          %893 = sbr.rel (%p891) target = $region132
        $region131: #{tpu_custom_call.1} parent=127 // pred_region
          %894 = dma.done [#allocation3], 32
        $region132: #{tpu_custom_call.1} parent=127 // pred_fallthru
          _
        // Predicated region
        $region133: #{tpu_custom_call.1} parent=127 // pred_check
          %p895 = pneg %p154
        $region134: #{tpu_custom_call.1} parent=127 // pred_check_branch
          %897 = sbr.rel (%p895) target = $region136
        $region135: #{tpu_custom_call.1} parent=127 // pred_region
          %898 = dma.done [#allocation6], 32
        $region136: #{tpu_custom_call.1} parent=127 // pred_fallthru
          _
        // Predicated region
        $region137: #{tpu_custom_call.1} parent=127 // pred_check
          %p899 = pneg %p196
        $region138: #{tpu_custom_call.1} parent=127 // pred_check_branch
          %901 = sbr.rel (%p899) target = $region140
        $region139: #{tpu_custom_call.1} parent=127 // pred_region
          %902 = dma.done [#allocation6], 32
        $region140: #{tpu_custom_call.1} parent=127 // pred_fallthru
          _
        // Predicated region
        $region141: #{tpu_custom_call.1} parent=127 // pred_check
          %p903 = pneg %p238
        $region142: #{tpu_custom_call.1} parent=127 // pred_check_branch
          %905 = sbr.rel (%p903) target = $region144
        $region143: #{tpu_custom_call.1} parent=127 // pred_region
          %906 = dma.done [#allocation9], 32
        $region144: #{tpu_custom_call.1} parent=127 // pred_fallthru
          _
        // Predicated region
        $region145: #{tpu_custom_call.1} parent=127 // pred_check
          %p907 = pneg %p259
        $region146: #{tpu_custom_call.1} parent=127 // pred_check_branch
          %909 = sbr.rel (%p907) target = $region148
        $region147: #{tpu_custom_call.1} parent=127 // pred_region
          %910 = dma.done [#allocation9], 512
        $region148: #{tpu_custom_call.1} parent=127 // pred_fallthru
          _
        // Predicated region
        $region149: #{tpu_custom_call.1} parent=127 // pred_check
          %p911 = pneg %p280
        $region150: #{tpu_custom_call.1} parent=127 // pred_check_branch
          %913 = sbr.rel (%p911) target = $region152
        $region151: #{tpu_custom_call.1} parent=127 // pred_region
          %914 = dma.done [#allocation12], 32
        $region152: #{tpu_custom_call.1} parent=127 // pred_fallthru
          _
        // Predicated region
        $region153: #{tpu_custom_call.1} parent=127 // pred_check
          %p915 = pneg %p301
        $region154: #{tpu_custom_call.1} parent=127 // pred_check_branch
          %917 = sbr.rel (%p915) target = $region156
        $region155: #{tpu_custom_call.1} parent=127 // pred_region
          %918 = dma.done [#allocation12], 512
        $region156: #{tpu_custom_call.1} parent=127 // pred_fallthru
          _
        // Predicated region
        $region157: #{tpu_custom_call.1} parent=127 // pred_check
          %p919 = pneg %p322
        $region158: #{tpu_custom_call.1} parent=127 // pred_check_branch
          %921 = sbr.rel (%p919) target = $region160
        $region159: #{tpu_custom_call.1} parent=127 // pred_region
          %922 = dma.done [#allocation15], 32
        $region160: #{tpu_custom_call.1} parent=127 // pred_fallthru
          _
        // Predicated region
        $region161: #{tpu_custom_call.1} parent=127 // pred_check
          %p923 = pneg %p364
        $region162: #{tpu_custom_call.1} parent=127 // pred_check_branch
          %925 = sbr.rel (%p923) target = $region164
        $region163: #{tpu_custom_call.1} parent=127 // pred_region
          %926 = dma.done [#allocation15], 32
        $region164: #{tpu_custom_call.1} parent=127 // pred_fallthru
          _
        // Predicated region
        $region165: #{tpu_custom_call.1} parent=127 // pred_check
          %p927 = pneg %p385
        $region166: #{tpu_custom_call.1} parent=127 // pred_check_branch
          %929 = sbr.rel (%p927) target = $region168
        $region167: #{tpu_custom_call.1} parent=127 // pred_region
          %930 = dma.done [#allocation18], 512
        $region168: #{tpu_custom_call.1} parent=127 // pred_fallthru
          _
        // Predicated region
        $region169: #{tpu_custom_call.1} parent=127 // pred_check
          %p931 = pneg %p406
        $region170: #{tpu_custom_call.1} parent=127 // pred_check_branch
          %933 = sbr.rel (%p931) target = $region172
        $region171: #{tpu_custom_call.1} parent=127 // pred_region
          %934 = dma.done [#allocation18], 32
        $region172: #{tpu_custom_call.1} parent=127 // pred_fallthru
          _
        // Predicated region
        $region173: #{tpu_custom_call.1} parent=127 // pred_check
          %p935 = pneg %p448
        $region174: #{tpu_custom_call.1} parent=127 // pred_check_branch
          %937 = sbr.rel (%p935) target = $region176
        $region175: #{tpu_custom_call.1} parent=127 // pred_region
          %938 = dma.done [#allocation21], 32
        $region176: #{tpu_custom_call.1} parent=127 // pred_fallthru
          _
        // Predicated region
        $region177: #{tpu_custom_call.1} parent=127 // pred_check
          %p939 = pneg %p469
        $region178: #{tpu_custom_call.1} parent=127 // pred_check_branch
          %941 = sbr.rel (%p939) target = $region180
        $region179: #{tpu_custom_call.1} parent=127 // pred_region
          %942 = dma.done [#allocation21], 32
        $region180: #{tpu_custom_call.1} parent=127 // pred_fallthru
          _
        // Predicated region
        $region181: #{tpu_custom_call.1} parent=127 // pred_check
          %p943 = pneg %p490
        $region182: #{tpu_custom_call.1} parent=127 // pred_check_branch
          %945 = sbr.rel (%p943) target = $region184
        $region183: #{tpu_custom_call.1} parent=127 // pred_region
          %946 = dma.done [#allocation24], 32
        $region184: #{tpu_custom_call.1} parent=127 // pred_fallthru
          _
        %p947 = scmp.lt.s32.totalorder %s49, 1
        %s948 = scalar_select %p947, %s49, 1
        %s949 = smul.addr %s948, 8
        %s950 = scalar_lea.vmem %s0, %s949
        %p951 = pneg %p70
        %p952 = pneg %p67
        %p953 = pneg %p91
        %p954 = pneg %p88
        %p955 = pneg %p112
        %p956 = pneg %p109
        %p957 = pneg %p133
        %p958 = pneg %p130
        %p959 = pneg %p154
        %p960 = pneg %p151
        %p961 = pneg %p175
        %p962 = pneg %p172
        %p963 = pneg %p196
        %p964 = pneg %p193
        %p965 = pneg %p217
        %p966 = pneg %p214
        %p967 = pneg %p238
        %p968 = pneg %p235
        %p969 = pneg %p259
        %p970 = pneg %p256
        %p971 = pneg %p280
        %p972 = pneg %p277
        %p973 = pneg %p301
        %p974 = pneg %p298
        %p975 = pneg %p322
        %p976 = pneg %p319
        %p977 = pneg %p343
        %p978 = pneg %p340
        %p979 = pneg %p364
        %p980 = pneg %p361
        %p981 = pneg %p385
        %p982 = pneg %p382
        %p983 = pneg %p406
        %p984 = pneg %p403
        %p985 = pneg %p427
        %p986 = pneg %p424
        %p987 = pneg %p448
        %p988 = pneg %p445
        %p989 = pneg %p469
        %p990 = pneg %p466
        %p991 = pneg %p490
        %p992 = pneg %p487
        %p993 = pneg %p511
        %p994 = pneg %p508
        %p995 = pneg %p532
        %p996 = pneg %p529
        %p997 = pneg %p553
        %p998 = pneg %p550
        %p999 = pneg %p574
        %p1000 = pneg %p571
        %p1001 = pneg %p595
        %p1002 = pneg %p592
        %p1003 = pneg %p616
        %p1004 = pneg %p613
        %p1005 = pneg %p642
        %p1006 = pneg %p639
        %s1007 = sand.u32 %s629, 1
        %s1008 = scalar_lea.sflag [#allocation4], %s1007
        %s1009 = sand.u32 %s629, 1
        %s1010 = smul.addr %s1009, 8
        %s1011 = scalar_lea.vmem [#allocation25], %s1010
        %p1012 = scmp.lt.s32.totalorder %s49, 1
        %s1013 = scalar_select %p1012, %s49, 1
        %s1014 = smul.addr %s1013, 8
        %s1015 = scalar_lea.vmem %s0, %s1014
        %v1017 = vld [vmem:[%s23] sm:$0xff]
        %v1018 = vld [vmem:[%s24] sm:$0xff]
        %v1019 = vld [vmem:[%s1015] sm:$0xff]
        %v1020 = vpack.c.bf16 %v1019, %v1019
        %v1021 = vld [vmem:[#allocation2] sm:$0x3]
        %v1022 = vld [vmem:[%s2] sm:$0x1]
        %v1024 = vlaneseq
        %v1025 = vshrl.u32 %v1024, 7
        %v1026 = vsub.s32 0, %v1025
        %v1027 = vrot.slane %v1022, %v1026
        %vm1029 = vcmask 23552
        %v1031 = vsel %vm1029, %v1020, 0
        %vm1033 = vcmask 1040384
        %vm1034 = vcmask 1041408
        %v1035 = vsel %vm1033, 4294967295, 65535
        %v1036 = vsel %vm1034, %v1035, 0
        %v1038 = vand.u32 %v1021, %v1036
        %1040 = vmatprep.subr.bf16.mxu0 0
        %1041 = vmatpush1.bf16.msra.mxu0 %v1038
        %1042 = vmatprep.subr.bf16.mxu0 0
        %1043 = vmatpush1.bf16.msra.mxu0 0
        %1044 = vmatprep.subr.bf16.mxu0 0
        %1045 = vmatpush1.bf16.msra.mxu0 0
        %1046 = vmatprep.subr.bf16.mxu0 0
        %1047 = vmatpush1.bf16.msra.mxu0 0
        %1048 = vmatprep.subr.bf16.mxu0 0
        %1049 = vmatpush1.bf16.msra.mxu0 0
        %1050 = vmatprep.subr.bf16.mxu0 0
        %1051 = vmatpush1.bf16.msra.mxu0 0
        %1052 = vmatprep.subr.bf16.mxu0 0
        %1053 = vmatpush1.bf16.msra.mxu0 0
        %1054 = vmatprep.subr.bf16.mxu0 0
        %1055 = vmatpush1.bf16.msra.mxu0 0
        %1056 = vmatprep.subr.bf16.mxu0 0
        %1057 = vmatpush1.bf16.msra.mxu0 0
        %1058 = vmatprep.subr.bf16.mxu0 0
        %1059 = vmatpush1.bf16.msra.mxu0 0
        %1060 = vmatprep.subr.bf16.mxu0 0
        %1061 = vmatpush1.bf16.msra.mxu0 0
        %1062 = vmatprep.subr.bf16.mxu0 0
        %1063 = vmatpush1.bf16.msra.mxu0 0
        %1064 = vmatprep.subr.bf16.mxu0 0
        %1065 = vmatpush1.bf16.msra.mxu0 0
        %1066 = vmatprep.subr.bf16.mxu0 0
        %1067 = vmatpush1.bf16.msra.mxu0 0
        %1068 = vmatprep.subr.bf16.mxu0 0
        %1069 = vmatpush1.bf16.msra.mxu0 0
        %1070 = vmatprep.subr.bf16.mxu0 0
        %1071 = vmatpush1.bf16.msra.mxu0 0
        %1072 = vmatprep.mubr.bf16.mxu0 0
        %1073 = vmatmul.mubr.bf16.gmra.mrb[0].mxu0 %v1031
        %v1074 = vpop.f32.mrb[0].mxu0
        %v1075 = vadd.f32 %v1027, %v1074
        %v1076 = vpop.f32.mrb[0].mxu0
        %v1077 = vpop.f32.mrb[0].mxu0
        %v1078 = vpop.f32.mrb[0].mxu0
        %1079 = vdwg.mxu0
        %v1080 = vpack.c.bf16 %v1075, %v1075
        %v1081 = vld [vmem:[%s3] sm:$0xf]
        %v1082 = vld [vmem:[%s3 + $0x4] sm:$0xf]
        %v1083 = vld [vmem:[%s3 + $0x8] sm:$0xf]
        %v1084 = vld [vmem:[%s3 + $0xc] sm:$0xf]
        %v1085 = vld [vmem:[#allocation5] sm:$0x1]
        %v1087 = vlaneseq
        %v1088 = vshrl.u32 %v1087, 7
        %v1089 = vsub.s32 0, %v1088
        %v1090 = vrot.slane %v1085, %v1089
        %v1096 = vunpack.c.l.b16 %v1081
        %v1097 = vunpack.c.l.b16 %v1082
        %v1098 = vunpack.c.l.b16 %v1083
        %v1099 = vunpack.c.l.b16 %v1084
        %v1100 = vpack.c.b16 %v1097, %v1096
        %v1101 = vpack.c.b16 %v1099, %v1098
        %vm1104 = vcmask 261120
        %v1106 = vsel %vm1104, %v1080, 0
        %1108 = vmatprep.subr.bf16.mxu0 0
        %1109 = vmatpush1.bf16.msra.mxu0 %v1100
        %1110 = vmatprep.subr.bf16.mxu0 0
        %1111 = vmatpush1.bf16.msra.mxu0 %v1101
        %1112 = vmatprep.subr.bf16.mxu0 0
        %1113 = vmatpush1.bf16.msra.mxu0 0
        %1114 = vmatprep.subr.bf16.mxu0 0
        %1115 = vmatpush1.bf16.msra.mxu0 0
        %1116 = vmatprep.subr.bf16.mxu0 0
        %1117 = vmatpush1.bf16.msra.mxu0 0
        %1118 = vmatprep.subr.bf16.mxu0 0
        %1119 = vmatpush1.bf16.msra.mxu0 0
        %1120 = vmatprep.subr.bf16.mxu0 0
        %1121 = vmatpush1.bf16.msra.mxu0 0
        %1122 = vmatprep.subr.bf16.mxu0 0
        %1123 = vmatpush1.bf16.msra.mxu0 0
        %1124 = vmatprep.subr.bf16.mxu0 0
        %1125 = vmatpush1.bf16.msra.mxu0 0
        %1126 = vmatprep.subr.bf16.mxu0 0
        %1127 = vmatpush1.bf16.msra.mxu0 0
        %1128 = vmatprep.subr.bf16.mxu0 0
        %1129 = vmatpush1.bf16.msra.mxu0 0
        %1130 = vmatprep.subr.bf16.mxu0 0
        %1131 = vmatpush1.bf16.msra.mxu0 0
        %1132 = vmatprep.subr.bf16.mxu0 0
        %1133 = vmatpush1.bf16.msra.mxu0 0
        %1134 = vmatprep.subr.bf16.mxu0 0
        %1135 = vmatpush1.bf16.msra.mxu0 0
        %1136 = vmatprep.subr.bf16.mxu0 0
        %1137 = vmatpush1.bf16.msra.mxu0 0
        %1138 = vmatprep.subr.bf16.mxu0 0
        %1139 = vmatpush1.bf16.msra.mxu0 0
        %1140 = vmatprep.mubr.bf16.mxu0 0
        %1141 = vmatmul.mubr.bf16.gmra.mrb[0].mxu0 %v1106
        %v1142 = vpop.f32.mrb[0].mxu0
        %v1143 = vadd.f32 %v1090, %v1142
        %v1144 = vpop.f32.mrb[0].mxu0
        %v1145 = vpop.f32.mrb[0].mxu0
        %v1146 = vpop.f32.mrb[0].mxu0
        %1147 = vdwg.mxu0
        %v1148 = vld [vmem:[%s5] sm:$0xf]
        %v1149 = vld [vmem:[%s5 + $0x4] sm:$0xf]
        %v1150 = vld [vmem:[%s5 + $0x8] sm:$0xf]
        %v1151 = vld [vmem:[%s5 + $0xc] sm:$0xf]
        %v1152 = vld [vmem:[#allocation7] sm:$0x1]
        %v1154 = vlaneseq
        %v1155 = vshrl.u32 %v1154, 7
        %v1156 = vsub.s32 0, %v1155
        %v1157 = vrot.slane %v1152, %v1156
        %v1163 = vunpack.c.l.b16 %v1148
        %v1164 = vunpack.c.l.b16 %v1149
        %v1165 = vunpack.c.l.b16 %v1150
        %v1166 = vunpack.c.l.b16 %v1151
        %v1167 = vpack.c.b16 %v1164, %v1163
        %v1168 = vpack.c.b16 %v1166, %v1165
        %1171 = vmatprep.subr.bf16.mxu0 0
        %1172 = vmatpush1.bf16.msra.mxu0 %v1167
        %1173 = vmatprep.subr.bf16.mxu0 0
        %1174 = vmatpush1.bf16.msra.mxu0 %v1168
        %1175 = vmatprep.subr.bf16.mxu0 0
        %1176 = vmatpush1.bf16.msra.mxu0 0
        %1177 = vmatprep.subr.bf16.mxu0 0
        %1178 = vmatpush1.bf16.msra.mxu0 0
        %1179 = vmatprep.subr.bf16.mxu0 0
        %1180 = vmatpush1.bf16.msra.mxu0 0
        %1181 = vmatprep.subr.bf16.mxu0 0
        %1182 = vmatpush1.bf16.msra.mxu0 0
        %1183 = vmatprep.subr.bf16.mxu0 0
        %1184 = vmatpush1.bf16.msra.mxu0 0
        %1185 = vmatprep.subr.bf16.mxu0 0
        %1186 = vmatpush1.bf16.msra.mxu0 0
        %1187 = vmatprep.subr.bf16.mxu0 0
        %1188 = vmatpush1.bf16.msra.mxu0 0
        %1189 = vmatprep.subr.bf16.mxu0 0
        %1190 = vmatpush1.bf16.msra.mxu0 0
        %1191 = vmatprep.subr.bf16.mxu0 0
        %1192 = vmatpush1.bf16.msra.mxu0 0
        %1193 = vmatprep.subr.bf16.mxu0 0
        %1194 = vmatpush1.bf16.msra.mxu0 0
        %1195 = vmatprep.subr.bf16.mxu0 0
        %1196 = vmatpush1.bf16.msra.mxu0 0
        %1197 = vmatprep.subr.bf16.mxu0 0
        %1198 = vmatpush1.bf16.msra.mxu0 0
        %1199 = vmatprep.subr.bf16.mxu0 0
        %1200 = vmatpush1.bf16.msra.mxu0 0
        %1201 = vmatprep.subr.bf16.mxu0 0
        %1202 = vmatpush1.bf16.msra.mxu0 0
        %1203 = vmatprep.mubr.bf16.mxu0 0
        %1204 = vmatmul.mubr.bf16.gmra.mrb[0].mxu0 %v1106
        %v1205 = vpop.f32.mrb[0].mxu0
        %v1206 = vadd.f32 %v1157, %v1205
        %v1207 = vpop.f32.mrb[0].mxu0
        %v1208 = vpop.f32.mrb[0].mxu0
        %v1209 = vpop.f32.mrb[0].mxu0
        %1210 = vdwg.mxu0
        %v1211 = vld [vmem:[%s7] sm:$0xf]
        %v1212 = vld [vmem:[%s7 + $0x4] sm:$0xf]
        %v1213 = vld [vmem:[%s7 + $0x8] sm:$0xf]
        %v1214 = vld [vmem:[%s7 + $0xc] sm:$0xf]
        %v1215 = vld [vmem:[#allocation8] sm:$0x1]
        %v1217 = vlaneseq
        %v1218 = vshrl.u32 %v1217, 7
        %v1219 = vsub.s32 0, %v1218
        %v1220 = vrot.slane %v1215, %v1219
        %v1226 = vunpack.c.l.b16 %v1211
        %v1227 = vunpack.c.l.b16 %v1212
        %v1228 = vunpack.c.l.b16 %v1213
        %v1229 = vunpack.c.l.b16 %v1214
        %v1230 = vpack.c.b16 %v1227, %v1226
        %v1231 = vpack.c.b16 %v1229, %v1228
        %1234 = vmatprep.subr.bf16.mxu0 0
        %1235 = vmatpush1.bf16.msra.mxu0 %v1230
        %1236 = vmatprep.subr.bf16.mxu0 0
        %1237 = vmatpush1.bf16.msra.mxu0 %v1231
        %1238 = vmatprep.subr.bf16.mxu0 0
        %1239 = vmatpush1.bf16.msra.mxu0 0
        %1240 = vmatprep.subr.bf16.mxu0 0
        %1241 = vmatpush1.bf16.msra.mxu0 0
        %1242 = vmatprep.subr.bf16.mxu0 0
        %1243 = vmatpush1.bf16.msra.mxu0 0
        %1244 = vmatprep.subr.bf16.mxu0 0
        %1245 = vmatpush1.bf16.msra.mxu0 0
        %1246 = vmatprep.subr.bf16.mxu0 0
        %1247 = vmatpush1.bf16.msra.mxu0 0
        %1248 = vmatprep.subr.bf16.mxu0 0
        %1249 = vmatpush1.bf16.msra.mxu0 0
        %1250 = vmatprep.subr.bf16.mxu0 0
        %1251 = vmatpush1.bf16.msra.mxu0 0
        %1252 = vmatprep.subr.bf16.mxu0 0
        %1253 = vmatpush1.bf16.msra.mxu0 0
        %1254 = vmatprep.subr.bf16.mxu0 0
        %1255 = vmatpush1.bf16.msra.mxu0 0
        %1256 = vmatprep.subr.bf16.mxu0 0
        %1257 = vmatpush1.bf16.msra.mxu0 0
        %1258 = vmatprep.subr.bf16.mxu0 0
        %1259 = vmatpush1.bf16.msra.mxu0 0
        %1260 = vmatprep.subr.bf16.mxu0 0
        %1261 = vmatpush1.bf16.msra.mxu0 0
        %1262 = vmatprep.subr.bf16.mxu0 0
        %1263 = vmatpush1.bf16.msra.mxu0 0
        %1264 = vmatprep.subr.bf16.mxu0 0
        %1265 = vmatpush1.bf16.msra.mxu0 0
        %1266 = vmatprep.mubr.bf16.mxu0 0
        %1267 = vmatmul.mubr.bf16.gmra.mrb[0].mxu0 %v1106
        %v1268 = vpop.f32.mrb[0].mxu0
        %v1269 = vadd.f32 %v1220, %v1268
        %v1270 = vpop.f32.mrb[0].mxu0
        %v1271 = vpop.f32.mrb[0].mxu0
        %v1272 = vpop.f32.mrb[0].mxu0
        %1273 = vdwg.mxu0
        %v1274 = vld [vmem:[#allocation10] sm:$0xf]
        %v1275 = vld [vmem:[#allocation10 + $0x4] sm:$0xf]
        %v1276 = vld [vmem:[#allocation10 + $0x8] sm:$0xf]
        %v1277 = vld [vmem:[#allocation10 + $0xc] sm:$0xf]
        %v1278 = vld [vmem:[#allocation11] sm:$0x1]
        %v1280 = vlaneseq
        %v1281 = vshrl.u32 %v1280, 7
        %v1282 = vsub.s32 0, %v1281
        %v1283 = vrot.slane %v1278, %v1282
        %v1289 = vunpack.c.l.b16 %v1274
        %v1290 = vunpack.c.l.b16 %v1275
        %v1291 = vunpack.c.l.b16 %v1276
        %v1292 = vunpack.c.l.b16 %v1277
        %v1293 = vpack.c.b16 %v1290, %v1289
        %v1294 = vpack.c.b16 %v1292, %v1291
        %1297 = vmatprep.subr.bf16.mxu0 0
        %1298 = vmatpush1.bf16.msra.mxu0 %v1293
        %1299 = vmatprep.subr.bf16.mxu0 0
        %1300 = vmatpush1.bf16.msra.mxu0 %v1294
        %1301 = vmatprep.subr.bf16.mxu0 0
        %1302 = vmatpush1.bf16.msra.mxu0 0
        %1303 = vmatprep.subr.bf16.mxu0 0
        %1304 = vmatpush1.bf16.msra.mxu0 0
        %1305 = vmatprep.subr.bf16.mxu0 0
        %1306 = vmatpush1.bf16.msra.mxu0 0
        %1307 = vmatprep.subr.bf16.mxu0 0
        %1308 = vmatpush1.bf16.msra.mxu0 0
        %1309 = vmatprep.subr.bf16.mxu0 0
        %1310 = vmatpush1.bf16.msra.mxu0 0
        %1311 = vmatprep.subr.bf16.mxu0 0
        %1312 = vmatpush1.bf16.msra.mxu0 0
        %1313 = vmatprep.subr.bf16.mxu0 0
        %1314 = vmatpush1.bf16.msra.mxu0 0
        %1315 = vmatprep.subr.bf16.mxu0 0
        %1316 = vmatpush1.bf16.msra.mxu0 0
        %1317 = vmatprep.subr.bf16.mxu0 0
        %1318 = vmatpush1.bf16.msra.mxu0 0
        %1319 = vmatprep.subr.bf16.mxu0 0
        %1320 = vmatpush1.bf16.msra.mxu0 0
        %1321 = vmatprep.subr.bf16.mxu0 0
        %1322 = vmatpush1.bf16.msra.mxu0 0
        %1323 = vmatprep.subr.bf16.mxu0 0
        %1324 = vmatpush1.bf16.msra.mxu0 0
        %1325 = vmatprep.subr.bf16.mxu0 0
        %1326 = vmatpush1.bf16.msra.mxu0 0
        %1327 = vmatprep.subr.bf16.mxu0 0
        %1328 = vmatpush1.bf16.msra.mxu0 0
        %1329 = vmatprep.mubr.bf16.mxu0 0
        %1330 = vmatmul.mubr.bf16.gmra.mrb[0].mxu0 %v1106
        %v1331 = vpop.f32.mrb[0].mxu0
        %v1332 = vadd.f32 %v1283, %v1331
        %v1333 = vpop.f32.mrb[0].mxu0
        %v1334 = vpop.f32.mrb[0].mxu0
        %v1335 = vpop.f32.mrb[0].mxu0
        %1336 = vdwg.mxu0
        %v1337 = vld [vmem:[#allocation13] sm:$0xf]
        %v1338 = vld [vmem:[#allocation13 + $0x4] sm:$0xf]
        %v1339 = vld [vmem:[#allocation13 + $0x8] sm:$0xf]
        %v1340 = vld [vmem:[#allocation13 + $0xc] sm:$0xf]
        %v1341 = vld [vmem:[#allocation14] sm:$0x1]
        %v1343 = vlaneseq
        %v1344 = vshrl.u32 %v1343, 7
        %v1345 = vsub.s32 0, %v1344
        %v1346 = vrot.slane %v1341, %v1345
        %v1352 = vunpack.c.l.b16 %v1337
        %v1353 = vunpack.c.l.b16 %v1338
        %v1354 = vunpack.c.l.b16 %v1339
        %v1355 = vunpack.c.l.b16 %v1340
        %v1356 = vpack.c.b16 %v1353, %v1352
        %v1357 = vpack.c.b16 %v1355, %v1354
        %1360 = vmatprep.subr.bf16.mxu0 0
        %1361 = vmatpush1.bf16.msra.mxu0 %v1356
        %1362 = vmatprep.subr.bf16.mxu0 0
        %1363 = vmatpush1.bf16.msra.mxu0 %v1357
        %1364 = vmatprep.subr.bf16.mxu0 0
        %1365 = vmatpush1.bf16.msra.mxu0 0
        %1366 = vmatprep.subr.bf16.mxu0 0
        %1367 = vmatpush1.bf16.msra.mxu0 0
        %1368 = vmatprep.subr.bf16.mxu0 0
        %1369 = vmatpush1.bf16.msra.mxu0 0
        %1370 = vmatprep.subr.bf16.mxu0 0
        %1371 = vmatpush1.bf16.msra.mxu0 0
        %1372 = vmatprep.subr.bf16.mxu0 0
        %1373 = vmatpush1.bf16.msra.mxu0 0
        %1374 = vmatprep.subr.bf16.mxu0 0
        %1375 = vmatpush1.bf16.msra.mxu0 0
        %1376 = vmatprep.subr.bf16.mxu0 0
        %1377 = vmatpush1.bf16.msra.mxu0 0
        %1378 = vmatprep.subr.bf16.mxu0 0
        %1379 = vmatpush1.bf16.msra.mxu0 0
        %1380 = vmatprep.subr.bf16.mxu0 0
        %1381 = vmatpush1.bf16.msra.mxu0 0
        %1382 = vmatprep.subr.bf16.mxu0 0
        %1383 = vmatpush1.bf16.msra.mxu0 0
        %1384 = vmatprep.subr.bf16.mxu0 0
        %1385 = vmatpush1.bf16.msra.mxu0 0
        %1386 = vmatprep.subr.bf16.mxu0 0
        %1387 = vmatpush1.bf16.msra.mxu0 0
        %1388 = vmatprep.subr.bf16.mxu0 0
        %1389 = vmatpush1.bf16.msra.mxu0 0
        %1390 = vmatprep.subr.bf16.mxu0 0
        %1391 = vmatpush1.bf16.msra.mxu0 0
        %1392 = vmatprep.mubr.bf16.mxu0 0
        %1393 = vmatmul.mubr.bf16.gmra.mrb[0].mxu0 %v1106
        %v1394 = vpop.f32.mrb[0].mxu0
        %v1395 = vadd.f32 %v1346, %v1394
        %v1396 = vpop.f32.mrb[0].mxu0
        %v1397 = vpop.f32.mrb[0].mxu0
        %v1398 = vpop.f32.mrb[0].mxu0
        %1399 = vdwg.mxu0
        %v1400 = vld [vmem:[%s13] sm:$0xf]
        %v1401 = vld [vmem:[%s13 + $0x4] sm:$0xf]
        %v1402 = vld [vmem:[%s13 + $0x8] sm:$0xf]
        %v1403 = vld [vmem:[%s13 + $0xc] sm:$0xf]
        %v1404 = vmul.f32 %v1143, %v1017
        %v1405 = vmul.f32 %v1206, %v1018
        %v1406 = vadd.f32 %v1404, %v1405
        %v1407 = vmul.f32 %v1269, %v1017
        %v1408 = vmul.f32 %v1332, %v1018
        %v1409 = vadd.f32 %v1407, %v1408
        %v1410 = vpack.c.bf16 %v1406, %v1406
        %v1411 = vpack.c.bf16 %v1409, %v1409
        %vm1412 = vcmask 64512
        %v1414 = vsel %vm1412, %v1410, 0
        %v1417 = vsel %vm1412, %v1411, 0
        %1419 = vmatprep.subr.bf16.mxu0 0
        %1420 = vmatpush1.bf16.xpose.msra.mxu0 %v1417
        %1421 = vmatprep.subr.bf16.mxu0 0
        %1422 = vmatpush1.bf16.xpose.msra.mxu0 0
        %1423 = vmatprep.subr.bf16.mxu0 0
        %1424 = vmatpush1.bf16.xpose.msra.mxu0 0
        %1425 = vmatprep.subr.bf16.mxu0 0
        %1426 = vmatpush1.bf16.xpose.msra.mxu0 0
        %1427 = vmatprep.subr.bf16.mxu0 0
        %1428 = vmatpush1.bf16.xpose.msra.mxu0 0
        %1429 = vmatprep.subr.bf16.mxu0 0
        %1430 = vmatpush1.bf16.xpose.msra.mxu0 0
        %1431 = vmatprep.subr.bf16.mxu0 0
        %1432 = vmatpush1.bf16.xpose.msra.mxu0 0
        %1433 = vmatprep.subr.bf16.mxu0 0
        %1434 = vmatpush1.bf16.xpose.msra.mxu0 0
        %1435 = vmatprep.subr.bf16.mxu0 0
        %1436 = vmatpush1.bf16.xpose.msra.mxu0 0
        %1437 = vmatprep.subr.bf16.mxu0 0
        %1438 = vmatpush1.bf16.xpose.msra.mxu0 0
        %1439 = vmatprep.subr.bf16.mxu0 0
        %1440 = vmatpush1.bf16.xpose.msra.mxu0 0
        %1441 = vmatprep.subr.bf16.mxu0 0
        %1442 = vmatpush1.bf16.xpose.msra.mxu0 0
        %1443 = vmatprep.subr.bf16.mxu0 0
        %1444 = vmatpush1.bf16.xpose.msra.mxu0 0
        %1445 = vmatprep.subr.bf16.mxu0 0
        %1446 = vmatpush1.bf16.xpose.msra.mxu0 0
        %1447 = vmatprep.subr.bf16.mxu0 0
        %1448 = vmatpush1.bf16.xpose.msra.mxu0 0
        %1449 = vmatprep.subr.bf16.mxu0 0
        %1450 = vmatpush1.bf16.xpose.msra.mxu0 0
        %1451 = vmatprep.mubr.bf16.mxu0 0
        %1452 = vmatmul.mubr.bf16.gmra.mrb[0].mxu0 %v1414
        %v1453 = vpop.f32.mrb[0].mxu0
        %v1454 = vadd.f32 0.0, %v1453
        %v1455 = vpop.f32.mrb[0].mxu0
        %v1456 = vpop.f32.mrb[0].mxu0
        %v1457 = vpop.f32.mrb[0].mxu0
        %1458 = vdwg.mxu0
        %v1459 = vsel %vm1412, %v1454, -inf
        %1460 = vmax.xlane.f32.xlu0 %v1459
        %v1461 = vpop.xlane.xlu0 %1460
        %v1462 = vsub.f32 %v1454, %v1461
        %v1463 = vmul.f32 %v1462, 1.442695
        %v1464 = vpow.pop %v1463
        %v1465 = vsel %vm1412, %v1464, 0.0
        %1466 = vadd.xlane.f32.xlu0 %v1465
        %v1467 = vpop.xlane.xlu0 %1466
        %v1468 = vrcp.pop %v1467
        %v1469 = vmul.f32 %v1464, %v1468
        %v1470 = vpack.c.bf16 %v1469, %v1469
        %v1471 = vpack.c.bf16 %v1395, %v1395
        %v1473 = vsel %vm1412, %v1470, 0
        %vm1475 = vcmask 1043456
        %v1477 = vsel %vm1475, %v1471, 0
        %1479 = vmatprep.subr.bf16.mxu0 0
        %1480 = vmatpush1.bf16.msra.mxu0 %v1477
        %1481 = vmatprep.subr.bf16.mxu0 0
        %1482 = vmatpush1.bf16.msra.mxu0 0
        %1483 = vmatprep.subr.bf16.mxu0 0
        %1484 = vmatpush1.bf16.msra.mxu0 0
        %1485 = vmatprep.subr.bf16.mxu0 0
        %1486 = vmatpush1.bf16.msra.mxu0 0
        %1487 = vmatprep.subr.bf16.mxu0 0
        %1488 = vmatpush1.bf16.msra.mxu0 0
        %1489 = vmatprep.subr.bf16.mxu0 0
        %1490 = vmatpush1.bf16.msra.mxu0 0
        %1491 = vmatprep.subr.bf16.mxu0 0
        %1492 = vmatpush1.bf16.msra.mxu0 0
        %1493 = vmatprep.subr.bf16.mxu0 0
        %1494 = vmatpush1.bf16.msra.mxu0 0
        %1495 = vmatprep.subr.bf16.mxu0 0
        %1496 = vmatpush1.bf16.msra.mxu0 0
        %1497 = vmatprep.subr.bf16.mxu0 0
        %1498 = vmatpush1.bf16.msra.mxu0 0
        %1499 = vmatprep.subr.bf16.mxu0 0
        %1500 = vmatpush1.bf16.msra.mxu0 0
        %1501 = vmatprep.subr.bf16.mxu0 0
        %1502 = vmatpush1.bf16.msra.mxu0 0
        %1503 = vmatprep.subr.bf16.mxu0 0
        %1504 = vmatpush1.bf16.msra.mxu0 0
        %1505 = vmatprep.subr.bf16.mxu0 0
        %1506 = vmatpush1.bf16.msra.mxu0 0
        %1507 = vmatprep.subr.bf16.mxu0 0
        %1508 = vmatpush1.bf16.msra.mxu0 0
        %1509 = vmatprep.subr.bf16.mxu0 0
        %1510 = vmatpush1.bf16.msra.mxu0 0
        %1511 = vmatprep.mubr.bf16.mxu0 0
        %1512 = vmatmul.mubr.bf16.gmra.mrb[0].mxu0 %v1473
        %v1513 = vpop.f32.mrb[0].mxu0
        %v1514 = vadd.f32 0.0, %v1513
        %v1515 = vpop.f32.mrb[0].mxu0
        %v1516 = vpop.f32.mrb[0].mxu0
        %v1517 = vpop.f32.mrb[0].mxu0
        %1518 = vdwg.mxu0
        %v1519 = vpack.c.bf16 %v1514, %v1514
        %1521 = vrot.lane.b32.xlu0 %v1410, 120
        %v1522 = vpop.permute.xlu0 %1521
        %1524 = vrot.lane.b32.xlu0 %v1411, 120
        %v1525 = vpop.permute.xlu0 %1524
        %v1527 = vsel %vm1412, %v1522, 0
        %v1530 = vsel %vm1412, %v1525, 0
        %1532 = vmatprep.subr.bf16.mxu0 0
        %1533 = vmatpush1.bf16.xpose.msra.mxu0 %v1530
        %1534 = vmatprep.subr.bf16.mxu0 0
        %1535 = vmatpush1.bf16.xpose.msra.mxu0 0
        %1536 = vmatprep.subr.bf16.mxu0 0
        %1537 = vmatpush1.bf16.xpose.msra.mxu0 0
        %1538 = vmatprep.subr.bf16.mxu0 0
        %1539 = vmatpush1.bf16.xpose.msra.mxu0 0
        %1540 = vmatprep.subr.bf16.mxu0 0
        %1541 = vmatpush1.bf16.xpose.msra.mxu0 0
        %1542 = vmatprep.subr.bf16.mxu0 0
        %1543 = vmatpush1.bf16.xpose.msra.mxu0 0
        %1544 = vmatprep.subr.bf16.mxu0 0
        %1545 = vmatpush1.bf16.xpose.msra.mxu0 0
        %1546 = vmatprep.subr.bf16.mxu0 0
        %1547 = vmatpush1.bf16.xpose.msra.mxu0 0
        %1548 = vmatprep.subr.bf16.mxu0 0
        %1549 = vmatpush1.bf16.xpose.msra.mxu0 0
        %1550 = vmatprep.subr.bf16.mxu0 0
        %1551 = vmatpush1.bf16.xpose.msra.mxu0 0
        %1552 = vmatprep.subr.bf16.mxu0 0
        %1553 = vmatpush1.bf16.xpose.msra.mxu0 0
        %1554 = vmatprep.subr.bf16.mxu0 0
        %1555 = vmatpush1.bf16.xpose.msra.mxu0 0
        %1556 = vmatprep.subr.bf16.mxu0 0
        %1557 = vmatpush1.bf16.xpose.msra.mxu0 0
        %1558 = vmatprep.subr.bf16.mxu0 0
        %1559 = vmatpush1.bf16.xpose.msra.mxu0 0
        %1560 = vmatprep.subr.bf16.mxu0 0
        %1561 = vmatpush1.bf16.xpose.msra.mxu0 0
        %1562 = vmatprep.subr.bf16.mxu0 0
        %1563 = vmatpush1.bf16.xpose.msra.mxu0 0
        %1564 = vmatprep.mubr.bf16.mxu0 0
        %1565 = vmatmul.mubr.bf16.gmra.mrb[0].mxu0 %v1527
        %v1566 = vpop.f32.mrb[0].mxu0
        %v1567 = vadd.f32 0.0, %v1566
        %v1568 = vpop.f32.mrb[0].mxu0
        %v1569 = vpop.f32.mrb[0].mxu0
        %v1570 = vpop.f32.mrb[0].mxu0
        %1571 = vdwg.mxu0
        %v1572 = vsel %vm1412, %v1567, -inf
        %1573 = vmax.xlane.f32.xlu0 %v1572
        %v1574 = vpop.xlane.xlu0 %1573
        %v1575 = vsub.f32 %v1567, %v1574
        %v1576 = vmul.f32 %v1575, 1.442695
        %v1577 = vpow.pop %v1576
        %v1578 = vsel %vm1412, %v1577, 0.0
        %1579 = vadd.xlane.f32.xlu0 %v1578
        %v1580 = vpop.xlane.xlu0 %1579
        %v1581 = vrcp.pop %v1580
        %v1582 = vmul.f32 %v1577, %v1581
        %v1583 = vpack.c.bf16 %v1582, %v1582
        %1585 = vrot.lane.b32.xlu0 %v1471, 120
        %v1586 = vpop.permute.xlu0 %1585
        %v1588 = vsel %vm1412, %v1583, 0
        %v1591 = vsel %vm1475, %v1586, 0
        %1593 = vmatprep.subr.bf16.mxu0 0
        %1594 = vmatpush1.bf16.msra.mxu0 %v1591
        %1595 = vmatprep.subr.bf16.mxu0 0
        %1596 = vmatpush1.bf16.msra.mxu0 0
        %1597 = vmatprep.subr.bf16.mxu0 0
        %1598 = vmatpush1.bf16.msra.mxu0 0
        %1599 = vmatprep.subr.bf16.mxu0 0
        %1600 = vmatpush1.bf16.msra.mxu0 0
        %1601 = vmatprep.subr.bf16.mxu0 0
        %1602 = vmatpush1.bf16.msra.mxu0 0
        %1603 = vmatprep.subr.bf16.mxu0 0
        %1604 = vmatpush1.bf16.msra.mxu0 0
        %1605 = vmatprep.subr.bf16.mxu0 0
        %1606 = vmatpush1.bf16.msra.mxu0 0
        %1607 = vmatprep.subr.bf16.mxu0 0
        %1608 = vmatpush1.bf16.msra.mxu0 0
        %1609 = vmatprep.subr.bf16.mxu0 0
        %1610 = vmatpush1.bf16.msra.mxu0 0
        %1611 = vmatprep.subr.bf16.mxu0 0
        %1612 = vmatpush1.bf16.msra.mxu0 0
        %1613 = vmatprep.subr.bf16.mxu0 0
        %1614 = vmatpush1.bf16.msra.mxu0 0
        %1615 = vmatprep.subr.bf16.mxu0 0
        %1616 = vmatpush1.bf16.msra.mxu0 0
        %1617 = vmatprep.subr.bf16.mxu0 0
        %1618 = vmatpush1.bf16.msra.mxu0 0
        %1619 = vmatprep.subr.bf16.mxu0 0
        %1620 = vmatpush1.bf16.msra.mxu0 0
        %1621 = vmatprep.subr.bf16.mxu0 0
        %1622 = vmatpush1.bf16.msra.mxu0 0
        %1623 = vmatprep.subr.bf16.mxu0 0
        %1624 = vmatpush1.bf16.msra.mxu0 0
        %1625 = vmatprep.mubr.bf16.mxu0 0
        %1626 = vmatmul.mubr.bf16.gmra.mrb[0].mxu0 %v1588
        %v1627 = vpop.f32.mrb[0].mxu0
        %v1628 = vadd.f32 0.0, %v1627
        %v1629 = vpop.f32.mrb[0].mxu0
        %v1630 = vpop.f32.mrb[0].mxu0
        %v1631 = vpop.f32.mrb[0].mxu0
        %1632 = vdwg.mxu0
        %v1633 = vpack.c.bf16 %v1628, %v1628
        %v1635 = vsel %vm1412, %v1633, 0
        %v1638 = vsel %vm1475, %v1401, 0
        %1640 = vmatprep.subr.bf16.mxu0 0
        %1641 = vmatpush1.bf16.msra.mxu0 %v1638
        %1642 = vmatprep.subr.bf16.mxu0 0
        %1643 = vmatpush1.bf16.msra.mxu0 0
        %1644 = vmatprep.subr.bf16.mxu0 0
        %1645 = vmatpush1.bf16.msra.mxu0 0
        %1646 = vmatprep.subr.bf16.mxu0 0
        %1647 = vmatpush1.bf16.msra.mxu0 0
        %1648 = vmatprep.subr.bf16.mxu0 0
        %1649 = vmatpush1.bf16.msra.mxu0 0
        %1650 = vmatprep.subr.bf16.mxu0 0
        %1651 = vmatpush1.bf16.msra.mxu0 0
        %1652 = vmatprep.subr.bf16.mxu0 0
        %1653 = vmatpush1.bf16.msra.mxu0 0
        %1654 = vmatprep.subr.bf16.mxu0 0
        %1655 = vmatpush1.bf16.msra.mxu0 0
        %1656 = vmatprep.subr.bf16.mxu0 0
        %1657 = vmatpush1.bf16.msra.mxu0 0
        %1658 = vmatprep.subr.bf16.mxu0 0
        %1659 = vmatpush1.bf16.msra.mxu0 0
        %1660 = vmatprep.subr.bf16.mxu0 0
        %1661 = vmatpush1.bf16.msra.mxu0 0
        %1662 = vmatprep.subr.bf16.mxu0 0
        %1663 = vmatpush1.bf16.msra.mxu0 0
        %1664 = vmatprep.subr.bf16.mxu0 0
        %1665 = vmatpush1.bf16.msra.mxu0 0
        %1666 = vmatprep.subr.bf16.mxu0 0
        %1667 = vmatpush1.bf16.msra.mxu0 0
        %1668 = vmatprep.subr.bf16.mxu0 0
        %1669 = vmatpush1.bf16.msra.mxu0 0
        %1670 = vmatprep.subr.bf16.mxu0 0
        %1671 = vmatpush1.bf16.msra.mxu0 0
        %1672 = vmatprep.mubr.bf16.mxu0 0
        %1673 = vmatmul.mubr.bf16.gmra.mrb[0].mxu0 %v1635
        %v1674 = vpop.f32.mrb[0].mxu0
        %v1675 = vadd.f32 0.0, %v1674
        %v1676 = vpop.f32.mrb[0].mxu0
        %v1677 = vpop.f32.mrb[0].mxu0
        %v1678 = vpop.f32.mrb[0].mxu0
        %1679 = vdwg.mxu0
        %v1681 = vsel %vm1412, %v1519, 0
        %v1684 = vsel %vm1475, %v1400, 0
        %1686 = vmatprep.subr.bf16.mxu0 0
        %1687 = vmatpush1.bf16.msra.mxu0 %v1684
        %1688 = vmatprep.subr.bf16.mxu0 0
        %1689 = vmatpush1.bf16.msra.mxu0 0
        %1690 = vmatprep.subr.bf16.mxu0 0
        %1691 = vmatpush1.bf16.msra.mxu0 0
        %1692 = vmatprep.subr.bf16.mxu0 0
        %1693 = vmatpush1.bf16.msra.mxu0 0
        %1694 = vmatprep.subr.bf16.mxu0 0
        %1695 = vmatpush1.bf16.msra.mxu0 0
        %1696 = vmatprep.subr.bf16.mxu0 0
        %1697 = vmatpush1.bf16.msra.mxu0 0
        %1698 = vmatprep.subr.bf16.mxu0 0
        %1699 = vmatpush1.bf16.msra.mxu0 0
        %1700 = vmatprep.subr.bf16.mxu0 0
        %1701 = vmatpush1.bf16.msra.mxu0 0
        %1702 = vmatprep.subr.bf16.mxu0 0
        %1703 = vmatpush1.bf16.msra.mxu0 0
        %1704 = vmatprep.subr.bf16.mxu0 0
        %1705 = vmatpush1.bf16.msra.mxu0 0
        %1706 = vmatprep.subr.bf16.mxu0 0
        %1707 = vmatpush1.bf16.msra.mxu0 0
        %1708 = vmatprep.subr.bf16.mxu0 0
        %1709 = vmatpush1.bf16.msra.mxu0 0
        %1710 = vmatprep.subr.bf16.mxu0 0
        %1711 = vmatpush1.bf16.msra.mxu0 0
        %1712 = vmatprep.subr.bf16.mxu0 0
        %1713 = vmatpush1.bf16.msra.mxu0 0
        %1714 = vmatprep.subr.bf16.mxu0 0
        %1715 = vmatpush1.bf16.msra.mxu0 0
        %1716 = vmatprep.subr.bf16.mxu0 0
        %1717 = vmatpush1.bf16.msra.mxu0 0
        %1718 = vmatprep.mubr.bf16.mxu0 0
        %1719 = vmatmul.mubr.bf16.gmra.mrb[0].mxu0 %v1681
        %v1720 = vpop.f32.mrb[0].mxu0
        %v1721 = vadd.f32 %v1675, %v1720
        %v1722 = vpop.f32.mrb[0].mxu0
        %v1723 = vpop.f32.mrb[0].mxu0
        %v1724 = vpop.f32.mrb[0].mxu0
        %1725 = vdwg.mxu0
        %1726 = vrot.lane.b32.xlu0 %v1410, 112
        %v1727 = vpop.permute.xlu0 %1726
        %1728 = vrot.lane.b32.xlu0 %v1411, 112
        %v1729 = vpop.permute.xlu0 %1728
        %v1731 = vsel %vm1412, %v1727, 0
        %v1734 = vsel %vm1412, %v1729, 0
        %1736 = vmatprep.subr.bf16.mxu0 0
        %1737 = vmatpush1.bf16.xpose.msra.mxu0 %v1734
        %1738 = vmatprep.subr.bf16.mxu0 0
        %1739 = vmatpush1.bf16.xpose.msra.mxu0 0
        %1740 = vmatprep.subr.bf16.mxu0 0
        %1741 = vmatpush1.bf16.xpose.msra.mxu0 0
        %1742 = vmatprep.subr.bf16.mxu0 0
        %1743 = vmatpush1.bf16.xpose.msra.mxu0 0
        %1744 = vmatprep.subr.bf16.mxu0 0
        %1745 = vmatpush1.bf16.xpose.msra.mxu0 0
        %1746 = vmatprep.subr.bf16.mxu0 0
        %1747 = vmatpush1.bf16.xpose.msra.mxu0 0
        %1748 = vmatprep.subr.bf16.mxu0 0
        %1749 = vmatpush1.bf16.xpose.msra.mxu0 0
        %1750 = vmatprep.subr.bf16.mxu0 0
        %1751 = vmatpush1.bf16.xpose.msra.mxu0 0
        %1752 = vmatprep.subr.bf16.mxu0 0
        %1753 = vmatpush1.bf16.xpose.msra.mxu0 0
        %1754 = vmatprep.subr.bf16.mxu0 0
        %1755 = vmatpush1.bf16.xpose.msra.mxu0 0
        %1756 = vmatprep.subr.bf16.mxu0 0
        %1757 = vmatpush1.bf16.xpose.msra.mxu0 0
        %1758 = vmatprep.subr.bf16.mxu0 0
        %1759 = vmatpush1.bf16.xpose.msra.mxu0 0
        %1760 = vmatprep.subr.bf16.mxu0 0
        %1761 = vmatpush1.bf16.xpose.msra.mxu0 0
        %1762 = vmatprep.subr.bf16.mxu0 0
        %1763 = vmatpush1.bf16.xpose.msra.mxu0 0
        %1764 = vmatprep.subr.bf16.mxu0 0
        %1765 = vmatpush1.bf16.xpose.msra.mxu0 0
        %1766 = vmatprep.subr.bf16.mxu0 0
        %1767 = vmatpush1.bf16.xpose.msra.mxu0 0
        %1768 = vmatprep.mubr.bf16.mxu0 0
        %1769 = vmatmul.mubr.bf16.gmra.mrb[0].mxu0 %v1731
        %v1770 = vpop.f32.mrb[0].mxu0
        %v1771 = vadd.f32 0.0, %v1770
        %v1772 = vpop.f32.mrb[0].mxu0
        %v1773 = vpop.f32.mrb[0].mxu0
        %v1774 = vpop.f32.mrb[0].mxu0
        %1775 = vdwg.mxu0
        %v1776 = vsel %vm1412, %v1771, -inf
        %1777 = vmax.xlane.f32.xlu0 %v1776
        %v1778 = vpop.xlane.xlu0 %1777
        %v1779 = vsub.f32 %v1771, %v1778
        %v1780 = vmul.f32 %v1779, 1.442695
        %v1781 = vpow.pop %v1780
        %v1782 = vsel %vm1412, %v1781, 0.0
        %1783 = vadd.xlane.f32.xlu0 %v1782
        %v1784 = vpop.xlane.xlu0 %1783
        %v1785 = vrcp.pop %v1784
        %v1786 = vmul.f32 %v1781, %v1785
        %v1787 = vpack.c.bf16 %v1786, %v1786
        %1788 = vrot.lane.b32.xlu0 %v1471, 112
        %v1789 = vpop.permute.xlu0 %1788
        %v1791 = vsel %vm1412, %v1787, 0
        %v1794 = vsel %vm1475, %v1789, 0
        %1796 = vmatprep.subr.bf16.mxu0 0
        %1797 = vmatpush1.bf16.msra.mxu0 %v1794
        %1798 = vmatprep.subr.bf16.mxu0 0
        %1799 = vmatpush1.bf16.msra.mxu0 0
        %1800 = vmatprep.subr.bf16.mxu0 0
        %1801 = vmatpush1.bf16.msra.mxu0 0
        %1802 = vmatprep.subr.bf16.mxu0 0
        %1803 = vmatpush1.bf16.msra.mxu0 0
        %1804 = vmatprep.subr.bf16.mxu0 0
        %1805 = vmatpush1.bf16.msra.mxu0 0
        %1806 = vmatprep.subr.bf16.mxu0 0
        %1807 = vmatpush1.bf16.msra.mxu0 0
        %1808 = vmatprep.subr.bf16.mxu0 0
        %1809 = vmatpush1.bf16.msra.mxu0 0
        %1810 = vmatprep.subr.bf16.mxu0 0
        %1811 = vmatpush1.bf16.msra.mxu0 0
        %1812 = vmatprep.subr.bf16.mxu0 0
        %1813 = vmatpush1.bf16.msra.mxu0 0
        %1814 = vmatprep.subr.bf16.mxu0 0
        %1815 = vmatpush1.bf16.msra.mxu0 0
        %1816 = vmatprep.subr.bf16.mxu0 0
        %1817 = vmatpush1.bf16.msra.mxu0 0
        %1818 = vmatprep.subr.bf16.mxu0 0
        %1819 = vmatpush1.bf16.msra.mxu0 0
        %1820 = vmatprep.subr.bf16.mxu0 0
        %1821 = vmatpush1.bf16.msra.mxu0 0
        %1822 = vmatprep.subr.bf16.mxu0 0
        %1823 = vmatpush1.bf16.msra.mxu0 0
        %1824 = vmatprep.subr.bf16.mxu0 0
        %1825 = vmatpush1.bf16.msra.mxu0 0
        %1826 = vmatprep.subr.bf16.mxu0 0
        %1827 = vmatpush1.bf16.msra.mxu0 0
        %1828 = vmatprep.mubr.bf16.mxu0 0
        %1829 = vmatmul.mubr.bf16.gmra.mrb[0].mxu0 %v1791
        %v1830 = vpop.f32.mrb[0].mxu0
        %v1831 = vadd.f32 0.0, %v1830
        %v1832 = vpop.f32.mrb[0].mxu0
        %v1833 = vpop.f32.mrb[0].mxu0
        %v1834 = vpop.f32.mrb[0].mxu0
        %1835 = vdwg.mxu0
        %v1836 = vpack.c.bf16 %v1831, %v1831
        %v1838 = vsel %vm1412, %v1836, 0
        %v1841 = vsel %vm1475, %v1402, 0
        %1843 = vmatprep.subr.bf16.mxu0 0
        %1844 = vmatpush1.bf16.msra.mxu0 %v1841
        %1845 = vmatprep.subr.bf16.mxu0 0
        %1846 = vmatpush1.bf16.msra.mxu0 0
        %1847 = vmatprep.subr.bf16.mxu0 0
        %1848 = vmatpush1.bf16.msra.mxu0 0
        %1849 = vmatprep.subr.bf16.mxu0 0
        %1850 = vmatpush1.bf16.msra.mxu0 0
        %1851 = vmatprep.subr.bf16.mxu0 0
        %1852 = vmatpush1.bf16.msra.mxu0 0
        %1853 = vmatprep.subr.bf16.mxu0 0
        %1854 = vmatpush1.bf16.msra.mxu0 0
        %1855 = vmatprep.subr.bf16.mxu0 0
        %1856 = vmatpush1.bf16.msra.mxu0 0
        %1857 = vmatprep.subr.bf16.mxu0 0
        %1858 = vmatpush1.bf16.msra.mxu0 0
        %1859 = vmatprep.subr.bf16.mxu0 0
        %1860 = vmatpush1.bf16.msra.mxu0 0
        %1861 = vmatprep.subr.bf16.mxu0 0
        %1862 = vmatpush1.bf16.msra.mxu0 0
        %1863 = vmatprep.subr.bf16.mxu0 0
        %1864 = vmatpush1.bf16.msra.mxu0 0
        %1865 = vmatprep.subr.bf16.mxu0 0
        %1866 = vmatpush1.bf16.msra.mxu0 0
        %1867 = vmatprep.subr.bf16.mxu0 0
        %1868 = vmatpush1.bf16.msra.mxu0 0
        %1869 = vmatprep.subr.bf16.mxu0 0
        %1870 = vmatpush1.bf16.msra.mxu0 0
        %1871 = vmatprep.subr.bf16.mxu0 0
        %1872 = vmatpush1.bf16.msra.mxu0 0
        %1873 = vmatprep.subr.bf16.mxu0 0
        %1874 = vmatpush1.bf16.msra.mxu0 0
        %1875 = vmatprep.mubr.bf16.mxu0 0
        %1876 = vmatmul.mubr.bf16.gmra.mrb[0].mxu0 %v1838
        %v1877 = vpop.f32.mrb[0].mxu0
        %v1878 = vadd.f32 0.0, %v1877
        %v1879 = vpop.f32.mrb[0].mxu0
        %v1880 = vpop.f32.mrb[0].mxu0
        %v1881 = vpop.f32.mrb[0].mxu0
        %1882 = vdwg.mxu0
        %v1883 = vadd.f32 %v1721, %v1878
        %1884 = vrot.lane.b32.xlu0 %v1410, 104
        %v1885 = vpop.permute.xlu0 %1884
        %1886 = vrot.lane.b32.xlu0 %v1411, 104
        %v1887 = vpop.permute.xlu0 %1886
        %v1889 = vsel %vm1412, %v1885, 0
        %v1892 = vsel %vm1412, %v1887, 0
        %1894 = vmatprep.subr.bf16.mxu0 0
        %1895 = vmatpush1.bf16.xpose.msra.mxu0 %v1892
        %1896 = vmatprep.subr.bf16.mxu0 0
        %1897 = vmatpush1.bf16.xpose.msra.mxu0 0
        %1898 = vmatprep.subr.bf16.mxu0 0
        %1899 = vmatpush1.bf16.xpose.msra.mxu0 0
        %1900 = vmatprep.subr.bf16.mxu0 0
        %1901 = vmatpush1.bf16.xpose.msra.mxu0 0
        %1902 = vmatprep.subr.bf16.mxu0 0
        %1903 = vmatpush1.bf16.xpose.msra.mxu0 0
        %1904 = vmatprep.subr.bf16.mxu0 0
        %1905 = vmatpush1.bf16.xpose.msra.mxu0 0
        %1906 = vmatprep.subr.bf16.mxu0 0
        %1907 = vmatpush1.bf16.xpose.msra.mxu0 0
        %1908 = vmatprep.subr.bf16.mxu0 0
        %1909 = vmatpush1.bf16.xpose.msra.mxu0 0
        %1910 = vmatprep.subr.bf16.mxu0 0
        %1911 = vmatpush1.bf16.xpose.msra.mxu0 0
        %1912 = vmatprep.subr.bf16.mxu0 0
        %1913 = vmatpush1.bf16.xpose.msra.mxu0 0
        %1914 = vmatprep.subr.bf16.mxu0 0
        %1915 = vmatpush1.bf16.xpose.msra.mxu0 0
        %1916 = vmatprep.subr.bf16.mxu0 0
        %1917 = vmatpush1.bf16.xpose.msra.mxu0 0
        %1918 = vmatprep.subr.bf16.mxu0 0
        %1919 = vmatpush1.bf16.xpose.msra.mxu0 0
        %1920 = vmatprep.subr.bf16.mxu0 0
        %1921 = vmatpush1.bf16.xpose.msra.mxu0 0
        %1922 = vmatprep.subr.bf16.mxu0 0
        %1923 = vmatpush1.bf16.xpose.msra.mxu0 0
        %1924 = vmatprep.subr.bf16.mxu0 0
        %1925 = vmatpush1.bf16.xpose.msra.mxu0 0
        %1926 = vmatprep.mubr.bf16.mxu0 0
        %1927 = vmatmul.mubr.bf16.gmra.mrb[0].mxu0 %v1889
        %v1928 = vpop.f32.mrb[0].mxu0
        %v1929 = vadd.f32 0.0, %v1928
        %v1930 = vpop.f32.mrb[0].mxu0
        %v1931 = vpop.f32.mrb[0].mxu0
        %v1932 = vpop.f32.mrb[0].mxu0
        %1933 = vdwg.mxu0
        %v1934 = vsel %vm1412, %v1929, -inf
        %1935 = vmax.xlane.f32.xlu0 %v1934
        %v1936 = vpop.xlane.xlu0 %1935
        %v1937 = vsub.f32 %v1929, %v1936
        %v1938 = vmul.f32 %v1937, 1.442695
        %v1939 = vpow.pop %v1938
        %v1940 = vsel %vm1412, %v1939, 0.0
        %1941 = vadd.xlane.f32.xlu0 %v1940
        %v1942 = vpop.xlane.xlu0 %1941
        %v1943 = vrcp.pop %v1942
        %v1944 = vmul.f32 %v1939, %v1943
        %v1945 = vpack.c.bf16 %v1944, %v1944
        %1946 = vrot.lane.b32.xlu0 %v1471, 104
        %v1947 = vpop.permute.xlu0 %1946
        %v1949 = vsel %vm1412, %v1945, 0
        %v1952 = vsel %vm1475, %v1947, 0
        %1954 = vmatprep.subr.bf16.mxu0 0
        %1955 = vmatpush1.bf16.msra.mxu0 %v1952
        %1956 = vmatprep.subr.bf16.mxu0 0
        %1957 = vmatpush1.bf16.msra.mxu0 0
        %1958 = vmatprep.subr.bf16.mxu0 0
        %1959 = vmatpush1.bf16.msra.mxu0 0
        %1960 = vmatprep.subr.bf16.mxu0 0
        %1961 = vmatpush1.bf16.msra.mxu0 0
        %1962 = vmatprep.subr.bf16.mxu0 0
        %1963 = vmatpush1.bf16.msra.mxu0 0
        %1964 = vmatprep.subr.bf16.mxu0 0
        %1965 = vmatpush1.bf16.msra.mxu0 0
        %1966 = vmatprep.subr.bf16.mxu0 0
        %1967 = vmatpush1.bf16.msra.mxu0 0
        %1968 = vmatprep.subr.bf16.mxu0 0
        %1969 = vmatpush1.bf16.msra.mxu0 0
        %1970 = vmatprep.subr.bf16.mxu0 0
        %1971 = vmatpush1.bf16.msra.mxu0 0
        %1972 = vmatprep.subr.bf16.mxu0 0
        %1973 = vmatpush1.bf16.msra.mxu0 0
        %1974 = vmatprep.subr.bf16.mxu0 0
        %1975 = vmatpush1.bf16.msra.mxu0 0
        %1976 = vmatprep.subr.bf16.mxu0 0
        %1977 = vmatpush1.bf16.msra.mxu0 0
        %1978 = vmatprep.subr.bf16.mxu0 0
        %1979 = vmatpush1.bf16.msra.mxu0 0
        %1980 = vmatprep.subr.bf16.mxu0 0
        %1981 = vmatpush1.bf16.msra.mxu0 0
        %1982 = vmatprep.subr.bf16.mxu0 0
        %1983 = vmatpush1.bf16.msra.mxu0 0
        %1984 = vmatprep.subr.bf16.mxu0 0
        %1985 = vmatpush1.bf16.msra.mxu0 0
        %1986 = vmatprep.mubr.bf16.mxu0 0
        %1987 = vmatmul.mubr.bf16.gmra.mrb[0].mxu0 %v1949
        %v1988 = vpop.f32.mrb[0].mxu0
        %v1989 = vadd.f32 0.0, %v1988
        %v1990 = vpop.f32.mrb[0].mxu0
        %v1991 = vpop.f32.mrb[0].mxu0
        %v1992 = vpop.f32.mrb[0].mxu0
        %1993 = vdwg.mxu0
        %v1994 = vpack.c.bf16 %v1989, %v1989
        %v1996 = vsel %vm1412, %v1994, 0
        %v1999 = vsel %vm1475, %v1403, 0
        %2001 = vmatprep.subr.bf16.mxu0 0
        %2002 = vmatpush1.bf16.msra.mxu0 %v1999
        %2003 = vmatprep.subr.bf16.mxu0 0
        %2004 = vmatpush1.bf16.msra.mxu0 0
        %2005 = vmatprep.subr.bf16.mxu0 0
        %2006 = vmatpush1.bf16.msra.mxu0 0
        %2007 = vmatprep.subr.bf16.mxu0 0
        %2008 = vmatpush1.bf16.msra.mxu0 0
        %2009 = vmatprep.subr.bf16.mxu0 0
        %2010 = vmatpush1.bf16.msra.mxu0 0
        %2011 = vmatprep.subr.bf16.mxu0 0
        %2012 = vmatpush1.bf16.msra.mxu0 0
        %2013 = vmatprep.subr.bf16.mxu0 0
        %2014 = vmatpush1.bf16.msra.mxu0 0
        %2015 = vmatprep.subr.bf16.mxu0 0
        %2016 = vmatpush1.bf16.msra.mxu0 0
        %2017 = vmatprep.subr.bf16.mxu0 0
        %2018 = vmatpush1.bf16.msra.mxu0 0
        %2019 = vmatprep.subr.bf16.mxu0 0
        %2020 = vmatpush1.bf16.msra.mxu0 0
        %2021 = vmatprep.subr.bf16.mxu0 0
        %2022 = vmatpush1.bf16.msra.mxu0 0
        %2023 = vmatprep.subr.bf16.mxu0 0
        %2024 = vmatpush1.bf16.msra.mxu0 0
        %2025 = vmatprep.subr.bf16.mxu0 0
        %2026 = vmatpush1.bf16.msra.mxu0 0
        %2027 = vmatprep.subr.bf16.mxu0 0
        %2028 = vmatpush1.bf16.msra.mxu0 0
        %2029 = vmatprep.subr.bf16.mxu0 0
        %2030 = vmatpush1.bf16.msra.mxu0 0
        %2031 = vmatprep.subr.bf16.mxu0 0
        %2032 = vmatpush1.bf16.msra.mxu0 0
        %2033 = vmatprep.mubr.bf16.mxu0 0
        %2034 = vmatmul.mubr.bf16.gmra.mrb[0].mxu0 %v1996
        %v2035 = vpop.f32.mrb[0].mxu0
        %v2036 = vadd.f32 0.0, %v2035
        %v2037 = vpop.f32.mrb[0].mxu0
        %v2038 = vpop.f32.mrb[0].mxu0
        %v2039 = vpop.f32.mrb[0].mxu0
        %2040 = vdwg.mxu0
        %v2041 = vadd.f32 %v1883, %v2036
        %v2042 = vld [vmem:[#allocation16] sm:$0x1]
        %v2044 = vlaneseq
        %v2045 = vshrl.u32 %v2044, 7
        %v2046 = vsub.s32 0, %v2045
        %v2047 = vrot.slane %v2042, %v2046
        %v2049 = vadd.f32 %v2041, %v2047
        %v2050 = vadd.f32 %v1075, %v2049
        %v2051 = vld [vmem:[#allocation22] sm:$0x1]
        %v2052 = vld [vmem:[#allocation23] sm:$0x1]
        %v2053 = vsel %vm1104, %v2050, 0.0
        %2054 = vadd.xlane.f32.xlu0 %v2053
        %v2055 = vpop.xlane.xlu0 %2054
        %v2056 = vrcp.pop 32.0
        %v2057 = vmul.f32 %v2055, %v2056
        %v2058 = vsub.f32 %v2050, %v2057
        %v2059 = vmul.f32 %v2058, %v2058
        %v2060 = vsel %vm1104, %v2059, 0.0
        %2061 = vadd.xlane.f32.xlu0 %v2060
        %v2062 = vpop.xlane.xlu0 %2061
        %v2063 = vmul.f32 %v2062, %v2056
        %v2064 = vadd.f32 %v2063, 1e-05
        %v2065 = vrsqrt.pop %v2064
        %v2066 = vmul.f32 %v2058, %v2065
        %v2068 = vlaneseq
        %v2069 = vshrl.u32 %v2068, 7
        %v2070 = vsub.s32 0, %v2069
        %v2071 = vrot.slane %v2051, %v2070
        %v2073 = vmul.f32 %v2066, %v2071
        %v2075 = vlaneseq
        %v2076 = vshrl.u32 %v2075, 7
        %v2077 = vsub.s32 0, %v2076
        %v2078 = vrot.slane %v2052, %v2077
        %v2080 = vadd.f32 %v2073, %v2078
        %v2081 = vpack.c.bf16 %v2080, %v2080
        %v2082 = vld [vmem:[#allocation17] sm:$0xf]
        %v2083 = vld [vmem:[#allocation17 + $0x4] sm:$0xf]
        %v2084 = vld [vmem:[#allocation17 + $0x8] sm:$0xf]
        %v2085 = vld [vmem:[#allocation17 + $0xc] sm:$0xf]
        %v2086 = vld [vmem:[#allocation19] sm:$0x1]
        %v2088 = vlaneseq
        %v2089 = vshrl.u32 %v2088, 7
        %v2090 = vsub.s32 0, %v2089
        %v2091 = vrot.slane %v2086, %v2090
        %v2097 = vunpack.c.l.b16 %v2082
        %v2098 = vunpack.c.l.b16 %v2083
        %v2099 = vunpack.c.l.b16 %v2084
        %v2100 = vunpack.c.l.b16 %v2085
        %v2101 = vpack.c.b16 %v2098, %v2097
        %v2102 = vpack.c.b16 %v2100, %v2099
        %v2106 = vsel %vm1104, %v2081, 0
        %2108 = vmatprep.subr.bf16.mxu0 0
        %2109 = vmatpush1.bf16.msra.mxu0 %v2101
        %2110 = vmatprep.subr.bf16.mxu0 0
        %2111 = vmatpush1.bf16.msra.mxu0 %v2102
        %2112 = vmatprep.subr.bf16.mxu0 0
        %2113 = vmatpush1.bf16.msra.mxu0 0
        %2114 = vmatprep.subr.bf16.mxu0 0
        %2115 = vmatpush1.bf16.msra.mxu0 0
        %2116 = vmatprep.subr.bf16.mxu0 0
        %2117 = vmatpush1.bf16.msra.mxu0 0
        %2118 = vmatprep.subr.bf16.mxu0 0
        %2119 = vmatpush1.bf16.msra.mxu0 0
        %2120 = vmatprep.subr.bf16.mxu0 0
        %2121 = vmatpush1.bf16.msra.mxu0 0
        %2122 = vmatprep.subr.bf16.mxu0 0
        %2123 = vmatpush1.bf16.msra.mxu0 0
        %2124 = vmatprep.subr.bf16.mxu0 0
        %2125 = vmatpush1.bf16.msra.mxu0 0
        %2126 = vmatprep.subr.bf16.mxu0 0
        %2127 = vmatpush1.bf16.msra.mxu0 0
        %2128 = vmatprep.subr.bf16.mxu0 0
        %2129 = vmatpush1.bf16.msra.mxu0 0
        %2130 = vmatprep.subr.bf16.mxu0 0
        %2131 = vmatpush1.bf16.msra.mxu0 0
        %2132 = vmatprep.subr.bf16.mxu0 0
        %2133 = vmatpush1.bf16.msra.mxu0 0
        %2134 = vmatprep.subr.bf16.mxu0 0
        %2135 = vmatpush1.bf16.msra.mxu0 0
        %2136 = vmatprep.subr.bf16.mxu0 0
        %2137 = vmatpush1.bf16.msra.mxu0 0
        %2138 = vmatprep.subr.bf16.mxu0 0
        %2139 = vmatpush1.bf16.msra.mxu0 0
        %2140 = vmatprep.mubr.bf16.mxu0 0
        %2141 = vmatmul.mubr.bf16.gmra.mrb[0].mxu0 %v2106
        %v2142 = vpop.f32.mrb[0].mxu0
        %v2143 = vadd.f32 %v2091, %v2142
        %v2144 = vpop.f32.mrb[0].mxu0
        %v2145 = vpop.f32.mrb[0].mxu0
        %v2146 = vpop.f32.mrb[0].mxu0
        %2147 = vdwg.mxu0
        %v2148 = vmax.f32 %v2143, 0.0
        %v2149 = vpack.c.bf16 %v2148, %v2148
        %v2150 = vld [vmem:[%s17] sm:$0xf]
        %v2151 = vld [vmem:[%s17 + $0x4] sm:$0xf]
        %v2152 = vld [vmem:[%s17 + $0x8] sm:$0xf]
        %v2153 = vld [vmem:[%s17 + $0xc] sm:$0xf]
        %v2154 = vld [vmem:[%s17 + $0x10] sm:$0xf]
        %v2155 = vld [vmem:[%s17 + $0x14] sm:$0xf]
        %v2156 = vld [vmem:[%s17 + $0x18] sm:$0xf]
        %v2157 = vld [vmem:[%s17 + $0x1c] sm:$0xf]
        %v2158 = vld [vmem:[#allocation20] sm:$0x1]
        %v2160 = vlaneseq
        %v2161 = vshrl.u32 %v2160, 7
        %v2162 = vsub.s32 0, %v2161
        %v2163 = vrot.slane %v2158, %v2162
        %v2173 = vunpack.c.l.b16 %v2150
        %v2174 = vunpack.c.l.b16 %v2151
        %v2175 = vunpack.c.l.b16 %v2152
        %v2176 = vunpack.c.l.b16 %v2153
        %v2177 = vunpack.c.l.b16 %v2154
        %v2178 = vunpack.c.l.b16 %v2155
        %v2179 = vunpack.c.l.b16 %v2156
        %v2180 = vunpack.c.l.b16 %v2157
        %v2181 = vpack.c.b16 %v2174, %v2173
        %v2182 = vpack.c.b16 %v2176, %v2175
        %v2183 = vpack.c.b16 %v2178, %v2177
        %v2184 = vpack.c.b16 %v2180, %v2179
        %vm2189 = vcmask 523264
        %v2191 = vsel %vm2189, %v2149, 0
        %2193 = vmatprep.subr.bf16.mxu0 0
        %2194 = vmatpush1.bf16.msra.mxu0 %v2181
        %2195 = vmatprep.subr.bf16.mxu0 0
        %2196 = vmatpush1.bf16.msra.mxu0 %v2182
        %2197 = vmatprep.subr.bf16.mxu0 0
        %2198 = vmatpush1.bf16.msra.mxu0 %v2183
        %2199 = vmatprep.subr.bf16.mxu0 0
        %2200 = vmatpush1.bf16.msra.mxu0 %v2184
        %2201 = vmatprep.subr.bf16.mxu0 0
        %2202 = vmatpush1.bf16.msra.mxu0 0
        %2203 = vmatprep.subr.bf16.mxu0 0
        %2204 = vmatpush1.bf16.msra.mxu0 0
        %2205 = vmatprep.subr.bf16.mxu0 0
        %2206 = vmatpush1.bf16.msra.mxu0 0
        %2207 = vmatprep.subr.bf16.mxu0 0
        %2208 = vmatpush1.bf16.msra.mxu0 0
        %2209 = vmatprep.subr.bf16.mxu0 0
        %2210 = vmatpush1.bf16.msra.mxu0 0
        %2211 = vmatprep.subr.bf16.mxu0 0
        %2212 = vmatpush1.bf16.msra.mxu0 0
        %2213 = vmatprep.subr.bf16.mxu0 0
        %2214 = vmatpush1.bf16.msra.mxu0 0
        %2215 = vmatprep.subr.bf16.mxu0 0
        %2216 = vmatpush1.bf16.msra.mxu0 0
        %2217 = vmatprep.subr.bf16.mxu0 0
        %2218 = vmatpush1.bf16.msra.mxu0 0
        %2219 = vmatprep.subr.bf16.mxu0 0
        %2220 = vmatpush1.bf16.msra.mxu0 0
        %2221 = vmatprep.subr.bf16.mxu0 0
        %2222 = vmatpush1.bf16.msra.mxu0 0
        %2223 = vmatprep.subr.bf16.mxu0 0
        %2224 = vmatpush1.bf16.msra.mxu0 0
        %2225 = vmatprep.mubr.bf16.mxu0 0
        %2226 = vmatmul.mubr.bf16.gmra.mrb[0].mxu0 %v2191
        %v2227 = vpop.f32.mrb[0].mxu0
        %v2228 = vadd.f32 %v2163, %v2227
        %v2229 = vpop.f32.mrb[0].mxu0
        %v2230 = vpop.f32.mrb[0].mxu0
        %v2231 = vpop.f32.mrb[0].mxu0
        %2232 = vdwg.mxu0
        %v2233 = vadd.f32 %v2080, %v2228
        %v2234 = vld [vmem:[%s21] sm:$0x1]
        %v2235 = vld [vmem:[%s22] sm:$0x1]
        %v2236 = vsel %vm1104, %v2233, 0.0
        %2237 = vadd.xlane.f32.xlu0 %v2236
        %v2238 = vpop.xlane.xlu0 %2237
        %v2239 = vmul.f32 %v2238, %v2056
        %v2240 = vsub.f32 %v2233, %v2239
        %v2241 = vmul.f32 %v2240, %v2240
        %v2242 = vsel %vm1104, %v2241, 0.0
        %2243 = vadd.xlane.f32.xlu0 %v2242
        %v2244 = vpop.xlane.xlu0 %2243
        %v2245 = vmul.f32 %v2244, %v2056
        %v2246 = vadd.f32 %v2245, 1e-05
        %v2247 = vrsqrt.pop %v2246
        %v2248 = vmul.f32 %v2240, %v2247
        %v2250 = vlaneseq
        %v2251 = vshrl.u32 %v2250, 7
        %v2252 = vsub.s32 0, %v2251
        %v2253 = vrot.slane %v2234, %v2252
        %v2255 = vmul.f32 %v2248, %v2253
        %v2257 = vlaneseq
        %v2258 = vshrl.u32 %v2257, 7
        %v2259 = vsub.s32 0, %v2258
        %v2260 = vrot.slane %v2235, %v2259
        %v2262 = vadd.f32 %v2255, %v2260
        %v2263 = vpack.c.bf16 %v2262, %v2262
        %s2264 = scalar_lea.vmem %s3, 16
        %v2265 = vld [vmem:[%s2264] sm:$0xf]
        %v2266 = vld [vmem:[%s2264 + $0x4] sm:$0xf]
        %v2267 = vld [vmem:[%s2264 + $0x8] sm:$0xf]
        %v2268 = vld [vmem:[%s2264 + $0xc] sm:$0xf]
        %s2269 = scalar_lea.vmem [#allocation5], 1
        %v2270 = vld [vmem:[%s2269] sm:$0x1]
        %v2272 = vlaneseq
        %v2273 = vshrl.u32 %v2272, 7
        %v2274 = vsub.s32 0, %v2273
        %v2275 = vrot.slane %v2270, %v2274
        %v2281 = vunpack.c.l.b16 %v2265
        %v2282 = vunpack.c.l.b16 %v2266
        %v2283 = vunpack.c.l.b16 %v2267
        %v2284 = vunpack.c.l.b16 %v2268
        %v2285 = vpack.c.b16 %v2282, %v2281
        %v2286 = vpack.c.b16 %v2284, %v2283
        %v2290 = vsel %vm1104, %v2263, 0
        %2292 = vmatprep.subr.bf16.mxu0 0
        %2293 = vmatpush1.bf16.msra.mxu0 %v2285
        %2294 = vmatprep.subr.bf16.mxu0 0
        %2295 = vmatpush1.bf16.msra.mxu0 %v2286
        %2296 = vmatprep.subr.bf16.mxu0 0
        %2297 = vmatpush1.bf16.msra.mxu0 0
        %2298 = vmatprep.subr.bf16.mxu0 0
        %2299 = vmatpush1.bf16.msra.mxu0 0
        %2300 = vmatprep.subr.bf16.mxu0 0
        %2301 = vmatpush1.bf16.msra.mxu0 0
        %2302 = vmatprep.subr.bf16.mxu0 0
        %2303 = vmatpush1.bf16.msra.mxu0 0
        %2304 = vmatprep.subr.bf16.mxu0 0
        %2305 = vmatpush1.bf16.msra.mxu0 0
        %2306 = vmatprep.subr.bf16.mxu0 0
        %2307 = vmatpush1.bf16.msra.mxu0 0
        %2308 = vmatprep.subr.bf16.mxu0 0
        %2309 = vmatpush1.bf16.msra.mxu0 0
        %2310 = vmatprep.subr.bf16.mxu0 0
        %2311 = vmatpush1.bf16.msra.mxu0 0
        %2312 = vmatprep.subr.bf16.mxu0 0
        %2313 = vmatpush1.bf16.msra.mxu0 0
        %2314 = vmatprep.subr.bf16.mxu0 0
        %2315 = vmatpush1.bf16.msra.mxu0 0
        %2316 = vmatprep.subr.bf16.mxu0 0
        %2317 = vmatpush1.bf16.msra.mxu0 0
        %2318 = vmatprep.subr.bf16.mxu0 0
        %2319 = vmatpush1.bf16.msra.mxu0 0
        %2320 = vmatprep.subr.bf16.mxu0 0
        %2321 = vmatpush1.bf16.msra.mxu0 0
        %2322 = vmatprep.subr.bf16.mxu0 0
        %2323 = vmatpush1.bf16.msra.mxu0 0
        %2324 = vmatprep.mubr.bf16.mxu0 0
        %2325 = vmatmul.mubr.bf16.gmra.mrb[0].mxu0 %v2290
        %v2326 = vpop.f32.mrb[0].mxu0
        %v2327 = vadd.f32 %v2275, %v2326
        %v2328 = vpop.f32.mrb[0].mxu0
        %v2329 = vpop.f32.mrb[0].mxu0
        %v2330 = vpop.f32.mrb[0].mxu0
        %2331 = vdwg.mxu0
        %s2332 = scalar_lea.vmem %s5, 16
        %v2333 = vld [vmem:[%s2332] sm:$0xf]
        %v2334 = vld [vmem:[%s2332 + $0x4] sm:$0xf]
        %v2335 = vld [vmem:[%s2332 + $0x8] sm:$0xf]
        %v2336 = vld [vmem:[%s2332 + $0xc] sm:$0xf]
        %s2337 = scalar_lea.vmem [#allocation7], 1
        %v2338 = vld [vmem:[%s2337] sm:$0x1]
        %v2340 = vlaneseq
        %v2341 = vshrl.u32 %v2340, 7
        %v2342 = vsub.s32 0, %v2341
        %v2343 = vrot.slane %v2338, %v2342
        %v2349 = vunpack.c.l.b16 %v2333
        %v2350 = vunpack.c.l.b16 %v2334
        %v2351 = vunpack.c.l.b16 %v2335
        %v2352 = vunpack.c.l.b16 %v2336
        %v2353 = vpack.c.b16 %v2350, %v2349
        %v2354 = vpack.c.b16 %v2352, %v2351
        %2357 = vmatprep.subr.bf16.mxu0 0
        %2358 = vmatpush1.bf16.msra.mxu0 %v2353
        %2359 = vmatprep.subr.bf16.mxu0 0
        %2360 = vmatpush1.bf16.msra.mxu0 %v2354
        %2361 = vmatprep.subr.bf16.mxu0 0
        %2362 = vmatpush1.bf16.msra.mxu0 0
        %2363 = vmatprep.subr.bf16.mxu0 0
        %2364 = vmatpush1.bf16.msra.mxu0 0
        %2365 = vmatprep.subr.bf16.mxu0 0
        %2366 = vmatpush1.bf16.msra.mxu0 0
        %2367 = vmatprep.subr.bf16.mxu0 0
        %2368 = vmatpush1.bf16.msra.mxu0 0
        %2369 = vmatprep.subr.bf16.mxu0 0
        %2370 = vmatpush1.bf16.msra.mxu0 0
        %2371 = vmatprep.subr.bf16.mxu0 0
        %2372 = vmatpush1.bf16.msra.mxu0 0
        %2373 = vmatprep.subr.bf16.mxu0 0
        %2374 = vmatpush1.bf16.msra.mxu0 0
        %2375 = vmatprep.subr.bf16.mxu0 0
        %2376 = vmatpush1.bf16.msra.mxu0 0
        %2377 = vmatprep.subr.bf16.mxu0 0
        %2378 = vmatpush1.bf16.msra.mxu0 0
        %2379 = vmatprep.subr.bf16.mxu0 0
        %2380 = vmatpush1.bf16.msra.mxu0 0
        %2381 = vmatprep.subr.bf16.mxu0 0
        %2382 = vmatpush1.bf16.msra.mxu0 0
        %2383 = vmatprep.subr.bf16.mxu0 0
        %2384 = vmatpush1.bf16.msra.mxu0 0
        %2385 = vmatprep.subr.bf16.mxu0 0
        %2386 = vmatpush1.bf16.msra.mxu0 0
        %2387 = vmatprep.subr.bf16.mxu0 0
        %2388 = vmatpush1.bf16.msra.mxu0 0
        %2389 = vmatprep.mubr.bf16.mxu0 0
        %2390 = vmatmul.mubr.bf16.gmra.mrb[0].mxu0 %v2290
        %v2391 = vpop.f32.mrb[0].mxu0
        %v2392 = vadd.f32 %v2343, %v2391
        %v2393 = vpop.f32.mrb[0].mxu0
        %v2394 = vpop.f32.mrb[0].mxu0
        %v2395 = vpop.f32.mrb[0].mxu0
        %2396 = vdwg.mxu0
        %s2397 = scalar_lea.vmem %s7, 16
        %v2398 = vld [vmem:[%s2397] sm:$0xf]
        %v2399 = vld [vmem:[%s2397 + $0x4] sm:$0xf]
        %v2400 = vld [vmem:[%s2397 + $0x8] sm:$0xf]
        %v2401 = vld [vmem:[%s2397 + $0xc] sm:$0xf]
        %s2402 = scalar_lea.vmem [#allocation8], 1
        %v2403 = vld [vmem:[%s2402] sm:$0x1]
        %v2405 = vlaneseq
        %v2406 = vshrl.u32 %v2405, 7
        %v2407 = vsub.s32 0, %v2406
        %v2408 = vrot.slane %v2403, %v2407
        %v2414 = vunpack.c.l.b16 %v2398
        %v2415 = vunpack.c.l.b16 %v2399
        %v2416 = vunpack.c.l.b16 %v2400
        %v2417 = vunpack.c.l.b16 %v2401
        %v2418 = vpack.c.b16 %v2415, %v2414
        %v2419 = vpack.c.b16 %v2417, %v2416
        %2422 = vmatprep.subr.bf16.mxu0 0
        %2423 = vmatpush1.bf16.msra.mxu0 %v2418
        %2424 = vmatprep.subr.bf16.mxu0 0
        %2425 = vmatpush1.bf16.msra.mxu0 %v2419
        %2426 = vmatprep.subr.bf16.mxu0 0
        %2427 = vmatpush1.bf16.msra.mxu0 0
        %2428 = vmatprep.subr.bf16.mxu0 0
        %2429 = vmatpush1.bf16.msra.mxu0 0
        %2430 = vmatprep.subr.bf16.mxu0 0
        %2431 = vmatpush1.bf16.msra.mxu0 0
        %2432 = vmatprep.subr.bf16.mxu0 0
        %2433 = vmatpush1.bf16.msra.mxu0 0
        %2434 = vmatprep.subr.bf16.mxu0 0
        %2435 = vmatpush1.bf16.msra.mxu0 0
        %2436 = vmatprep.subr.bf16.mxu0 0
        %2437 = vmatpush1.bf16.msra.mxu0 0
        %2438 = vmatprep.subr.bf16.mxu0 0
        %2439 = vmatpush1.bf16.msra.mxu0 0
        %2440 = vmatprep.subr.bf16.mxu0 0
        %2441 = vmatpush1.bf16.msra.mxu0 0
        %2442 = vmatprep.subr.bf16.mxu0 0
        %2443 = vmatpush1.bf16.msra.mxu0 0
        %2444 = vmatprep.subr.bf16.mxu0 0
        %2445 = vmatpush1.bf16.msra.mxu0 0
        %2446 = vmatprep.subr.bf16.mxu0 0
        %2447 = vmatpush1.bf16.msra.mxu0 0
        %2448 = vmatprep.subr.bf16.mxu0 0
        %2449 = vmatpush1.bf16.msra.mxu0 0
        %2450 = vmatprep.subr.bf16.mxu0 0
        %2451 = vmatpush1.bf16.msra.mxu0 0
        %2452 = vmatprep.subr.bf16.mxu0 0
        %2453 = vmatpush1.bf16.msra.mxu0 0
        %2454 = vmatprep.mubr.bf16.mxu0 0
        %2455 = vmatmul.mubr.bf16.gmra.mrb[0].mxu0 %v2290
        %v2456 = vpop.f32.mrb[0].mxu0
        %v2457 = vadd.f32 %v2408, %v2456
        %v2458 = vpop.f32.mrb[0].mxu0
        %v2459 = vpop.f32.mrb[0].mxu0
        %v2460 = vpop.f32.mrb[0].mxu0
        %2461 = vdwg.mxu0
        %s2462 = scalar_lea.vmem [#allocation10], 16
        %v2463 = vld [vmem:[%s2462] sm:$0xf]
        %v2464 = vld [vmem:[%s2462 + $0x4] sm:$0xf]
        %v2465 = vld [vmem:[%s2462 + $0x8] sm:$0xf]
        %v2466 = vld [vmem:[%s2462 + $0xc] sm:$0xf]
        %s2467 = scalar_lea.vmem [#allocation11], 1
        %v2468 = vld [vmem:[%s2467] sm:$0x1]
        %v2470 = vlaneseq
        %v2471 = vshrl.u32 %v2470, 7
        %v2472 = vsub.s32 0, %v2471
        %v2473 = vrot.slane %v2468, %v2472
        %v2479 = vunpack.c.l.b16 %v2463
        %v2480 = vunpack.c.l.b16 %v2464
        %v2481 = vunpack.c.l.b16 %v2465
        %v2482 = vunpack.c.l.b16 %v2466
        %v2483 = vpack.c.b16 %v2480, %v2479
        %v2484 = vpack.c.b16 %v2482, %v2481
        %2487 = vmatprep.subr.bf16.mxu0 0
        %2488 = vmatpush1.bf16.msra.mxu0 %v2483
        %2489 = vmatprep.subr.bf16.mxu0 0
        %2490 = vmatpush1.bf16.msra.mxu0 %v2484
        %2491 = vmatprep.subr.bf16.mxu0 0
        %2492 = vmatpush1.bf16.msra.mxu0 0
        %2493 = vmatprep.subr.bf16.mxu0 0
        %2494 = vmatpush1.bf16.msra.mxu0 0
        %2495 = vmatprep.subr.bf16.mxu0 0
        %2496 = vmatpush1.bf16.msra.mxu0 0
        %2497 = vmatprep.subr.bf16.mxu0 0
        %2498 = vmatpush1.bf16.msra.mxu0 0
        %2499 = vmatprep.subr.bf16.mxu0 0
        %2500 = vmatpush1.bf16.msra.mxu0 0
        %2501 = vmatprep.subr.bf16.mxu0 0
        %2502 = vmatpush1.bf16.msra.mxu0 0
        %2503 = vmatprep.subr.bf16.mxu0 0
        %2504 = vmatpush1.bf16.msra.mxu0 0
        %2505 = vmatprep.subr.bf16.mxu0 0
        %2506 = vmatpush1.bf16.msra.mxu0 0
        %2507 = vmatprep.subr.bf16.mxu0 0
        %2508 = vmatpush1.bf16.msra.mxu0 0
        %2509 = vmatprep.subr.bf16.mxu0 0
        %2510 = vmatpush1.bf16.msra.mxu0 0
        %2511 = vmatprep.subr.bf16.mxu0 0
        %2512 = vmatpush1.bf16.msra.mxu0 0
        %2513 = vmatprep.subr.bf16.mxu0 0
        %2514 = vmatpush1.bf16.msra.mxu0 0
        %2515 = vmatprep.subr.bf16.mxu0 0
        %2516 = vmatpush1.bf16.msra.mxu0 0
        %2517 = vmatprep.subr.bf16.mxu0 0
        %2518 = vmatpush1.bf16.msra.mxu0 0
        %2519 = vmatprep.mubr.bf16.mxu0 0
        %2520 = vmatmul.mubr.bf16.gmra.mrb[0].mxu0 %v2290
        %v2521 = vpop.f32.mrb[0].mxu0
        %v2522 = vadd.f32 %v2473, %v2521
        %v2523 = vpop.f32.mrb[0].mxu0
        %v2524 = vpop.f32.mrb[0].mxu0
        %v2525 = vpop.f32.mrb[0].mxu0
        %2526 = vdwg.mxu0
        %s2527 = scalar_lea.vmem [#allocation13], 16
        %v2528 = vld [vmem:[%s2527] sm:$0xf]
        %v2529 = vld [vmem:[%s2527 + $0x4] sm:$0xf]
        %v2530 = vld [vmem:[%s2527 + $0x8] sm:$0xf]
        %v2531 = vld [vmem:[%s2527 + $0xc] sm:$0xf]
        %s2532 = scalar_lea.vmem [#allocation14], 1
        %v2533 = vld [vmem:[%s2532] sm:$0x1]
        %v2535 = vlaneseq
        %v2536 = vshrl.u32 %v2535, 7
        %v2537 = vsub.s32 0, %v2536
        %v2538 = vrot.slane %v2533, %v2537
        %v2544 = vunpack.c.l.b16 %v2528
        %v2545 = vunpack.c.l.b16 %v2529
        %v2546 = vunpack.c.l.b16 %v2530
        %v2547 = vunpack.c.l.b16 %v2531
        %v2548 = vpack.c.b16 %v2545, %v2544
        %v2549 = vpack.c.b16 %v2547, %v2546
        %2552 = vmatprep.subr.bf16.mxu0 0
        %2553 = vmatpush1.bf16.msra.mxu0 %v2548
        %2554 = vmatprep.subr.bf16.mxu0 0
        %2555 = vmatpush1.bf16.msra.mxu0 %v2549
        %2556 = vmatprep.subr.bf16.mxu0 0
        %2557 = vmatpush1.bf16.msra.mxu0 0
        %2558 = vmatprep.subr.bf16.mxu0 0
        %2559 = vmatpush1.bf16.msra.mxu0 0
        %2560 = vmatprep.subr.bf16.mxu0 0
        %2561 = vmatpush1.bf16.msra.mxu0 0
        %2562 = vmatprep.subr.bf16.mxu0 0
        %2563 = vmatpush1.bf16.msra.mxu0 0
        %2564 = vmatprep.subr.bf16.mxu0 0
        %2565 = vmatpush1.bf16.msra.mxu0 0
        %2566 = vmatprep.subr.bf16.mxu0 0
        %2567 = vmatpush1.bf16.msra.mxu0 0
        %2568 = vmatprep.subr.bf16.mxu0 0
        %2569 = vmatpush1.bf16.msra.mxu0 0
        %2570 = vmatprep.subr.bf16.mxu0 0
        %2571 = vmatpush1.bf16.msra.mxu0 0
        %2572 = vmatprep.subr.bf16.mxu0 0
        %2573 = vmatpush1.bf16.msra.mxu0 0
        %2574 = vmatprep.subr.bf16.mxu0 0
        %2575 = vmatpush1.bf16.msra.mxu0 0
        %2576 = vmatprep.subr.bf16.mxu0 0
        %2577 = vmatpush1.bf16.msra.mxu0 0
        %2578 = vmatprep.subr.bf16.mxu0 0
        %2579 = vmatpush1.bf16.msra.mxu0 0
        %2580 = vmatprep.subr.bf16.mxu0 0
        %2581 = vmatpush1.bf16.msra.mxu0 0
        %2582 = vmatprep.subr.bf16.mxu0 0
        %2583 = vmatpush1.bf16.msra.mxu0 0
        %2584 = vmatprep.mubr.bf16.mxu0 0
        %2585 = vmatmul.mubr.bf16.gmra.mrb[0].mxu0 %v2290
        %v2586 = vpop.f32.mrb[0].mxu0
        %v2587 = vadd.f32 %v2538, %v2586
        %v2588 = vpop.f32.mrb[0].mxu0
        %v2589 = vpop.f32.mrb[0].mxu0
        %v2590 = vpop.f32.mrb[0].mxu0
        %2591 = vdwg.mxu0
        %s2592 = scalar_lea.vmem %s13, 16
        %v2593 = vld [vmem:[%s2592] sm:$0xf]
        %v2594 = vld [vmem:[%s2592 + $0x4] sm:$0xf]
        %v2595 = vld [vmem:[%s2592 + $0x8] sm:$0xf]
        %v2596 = vld [vmem:[%s2592 + $0xc] sm:$0xf]
        %v2597 = vmul.f32 %v2327, %v1017
        %v2598 = vmul.f32 %v2392, %v1018
        %v2599 = vadd.f32 %v2597, %v2598
        %v2600 = vmul.f32 %v2457, %v1017
        %v2601 = vmul.f32 %v2522, %v1018
        %v2602 = vadd.f32 %v2600, %v2601
        %v2603 = vpack.c.bf16 %v2599, %v2599
        %v2604 = vpack.c.bf16 %v2602, %v2602
        %v2606 = vsel %vm1412, %v2603, 0
        %v2609 = vsel %vm1412, %v2604, 0
        %2611 = vmatprep.subr.bf16.mxu0 0
        %2612 = vmatpush1.bf16.xpose.msra.mxu0 %v2609
        %2613 = vmatprep.subr.bf16.mxu0 0
        %2614 = vmatpush1.bf16.xpose.msra.mxu0 0
        %2615 = vmatprep.subr.bf16.mxu0 0
        %2616 = vmatpush1.bf16.xpose.msra.mxu0 0
        %2617 = vmatprep.subr.bf16.mxu0 0
        %2618 = vmatpush1.bf16.xpose.msra.mxu0 0
        %2619 = vmatprep.subr.bf16.mxu0 0
        %2620 = vmatpush1.bf16.xpose.msra.mxu0 0
        %2621 = vmatprep.subr.bf16.mxu0 0
        %2622 = vmatpush1.bf16.xpose.msra.mxu0 0
        %2623 = vmatprep.subr.bf16.mxu0 0
        %2624 = vmatpush1.bf16.xpose.msra.mxu0 0
        %2625 = vmatprep.subr.bf16.mxu0 0
        %2626 = vmatpush1.bf16.xpose.msra.mxu0 0
        %2627 = vmatprep.subr.bf16.mxu0 0
        %2628 = vmatpush1.bf16.xpose.msra.mxu0 0
        %2629 = vmatprep.subr.bf16.mxu0 0
        %2630 = vmatpush1.bf16.xpose.msra.mxu0 0
        %2631 = vmatprep.subr.bf16.mxu0 0
        %2632 = vmatpush1.bf16.xpose.msra.mxu0 0
        %2633 = vmatprep.subr.bf16.mxu0 0
        %2634 = vmatpush1.bf16.xpose.msra.mxu0 0
        %2635 = vmatprep.subr.bf16.mxu0 0
        %2636 = vmatpush1.bf16.xpose.msra.mxu0 0
        %2637 = vmatprep.subr.bf16.mxu0 0
        %2638 = vmatpush1.bf16.xpose.msra.mxu0 0
        %2639 = vmatprep.subr.bf16.mxu0 0
        %2640 = vmatpush1.bf16.xpose.msra.mxu0 0
        %2641 = vmatprep.subr.bf16.mxu0 0
        %2642 = vmatpush1.bf16.xpose.msra.mxu0 0
        %2643 = vmatprep.mubr.bf16.mxu0 0
        %2644 = vmatmul.mubr.bf16.gmra.mrb[0].mxu0 %v2606
        %v2645 = vpop.f32.mrb[0].mxu0
        %v2646 = vadd.f32 0.0, %v2645
        %v2647 = vpop.f32.mrb[0].mxu0
        %v2648 = vpop.f32.mrb[0].mxu0
        %v2649 = vpop.f32.mrb[0].mxu0
        %2650 = vdwg.mxu0
        %v2651 = vsel %vm1412, %v2646, -inf
        %2652 = vmax.xlane.f32.xlu0 %v2651
        %v2653 = vpop.xlane.xlu0 %2652
        %v2654 = vsub.f32 %v2646, %v2653
        %v2655 = vmul.f32 %v2654, 1.442695
        %v2656 = vpow.pop %v2655
        %v2657 = vsel %vm1412, %v2656, 0.0
        %2658 = vadd.xlane.f32.xlu0 %v2657
        %v2659 = vpop.xlane.xlu0 %2658
        %v2660 = vrcp.pop %v2659
        %v2661 = vmul.f32 %v2656, %v2660
        %v2662 = vpack.c.bf16 %v2661, %v2661
        %v2663 = vpack.c.bf16 %v2587, %v2587
        %v2665 = vsel %vm1412, %v2662, 0
        %v2668 = vsel %vm1475, %v2663, 0
        %2670 = vmatprep.subr.bf16.mxu0 0
        %2671 = vmatpush1.bf16.msra.mxu0 %v2668
        %2672 = vmatprep.subr.bf16.mxu0 0
        %2673 = vmatpush1.bf16.msra.mxu0 0
        %2674 = vmatprep.subr.bf16.mxu0 0
        %2675 = vmatpush1.bf16.msra.mxu0 0
        %2676 = vmatprep.subr.bf16.mxu0 0
        %2677 = vmatpush1.bf16.msra.mxu0 0
        %2678 = vmatprep.subr.bf16.mxu0 0
        %2679 = vmatpush1.bf16.msra.mxu0 0
        %2680 = vmatprep.subr.bf16.mxu0 0
        %2681 = vmatpush1.bf16.msra.mxu0 0
        %2682 = vmatprep.subr.bf16.mxu0 0
        %2683 = vmatpush1.bf16.msra.mxu0 0
        %2684 = vmatprep.subr.bf16.mxu0 0
        %2685 = vmatpush1.bf16.msra.mxu0 0
        %2686 = vmatprep.subr.bf16.mxu0 0
        %2687 = vmatpush1.bf16.msra.mxu0 0
        %2688 = vmatprep.subr.bf16.mxu0 0
        %2689 = vmatpush1.bf16.msra.mxu0 0
        %2690 = vmatprep.subr.bf16.mxu0 0
        %2691 = vmatpush1.bf16.msra.mxu0 0
        %2692 = vmatprep.subr.bf16.mxu0 0
        %2693 = vmatpush1.bf16.msra.mxu0 0
        %2694 = vmatprep.subr.bf16.mxu0 0
        %2695 = vmatpush1.bf16.msra.mxu0 0
        %2696 = vmatprep.subr.bf16.mxu0 0
        %2697 = vmatpush1.bf16.msra.mxu0 0
        %2698 = vmatprep.subr.bf16.mxu0 0
        %2699 = vmatpush1.bf16.msra.mxu0 0
        %2700 = vmatprep.subr.bf16.mxu0 0
        %2701 = vmatpush1.bf16.msra.mxu0 0
        %2702 = vmatprep.mubr.bf16.mxu0 0
        %2703 = vmatmul.mubr.bf16.gmra.mrb[0].mxu0 %v2665
        %v2704 = vpop.f32.mrb[0].mxu0
        %v2705 = vadd.f32 0.0, %v2704
        %v2706 = vpop.f32.mrb[0].mxu0
        %v2707 = vpop.f32.mrb[0].mxu0
        %v2708 = vpop.f32.mrb[0].mxu0
        %2709 = vdwg.mxu0
        %v2710 = vpack.c.bf16 %v2705, %v2705
        %2712 = vrot.lane.b32.xlu0 %v2603, 120
        %v2713 = vpop.permute.xlu0 %2712
        %2715 = vrot.lane.b32.xlu0 %v2604, 120
        %v2716 = vpop.permute.xlu0 %2715
        %v2718 = vsel %vm1412, %v2713, 0
        %v2721 = vsel %vm1412, %v2716, 0
        %2723 = vmatprep.subr.bf16.mxu0 0
        %2724 = vmatpush1.bf16.xpose.msra.mxu0 %v2721
        %2725 = vmatprep.subr.bf16.mxu0 0
        %2726 = vmatpush1.bf16.xpose.msra.mxu0 0
        %2727 = vmatprep.subr.bf16.mxu0 0
        %2728 = vmatpush1.bf16.xpose.msra.mxu0 0
        %2729 = vmatprep.subr.bf16.mxu0 0
        %2730 = vmatpush1.bf16.xpose.msra.mxu0 0
        %2731 = vmatprep.subr.bf16.mxu0 0
        %2732 = vmatpush1.bf16.xpose.msra.mxu0 0
        %2733 = vmatprep.subr.bf16.mxu0 0
        %2734 = vmatpush1.bf16.xpose.msra.mxu0 0
        %2735 = vmatprep.subr.bf16.mxu0 0
        %2736 = vmatpush1.bf16.xpose.msra.mxu0 0
        %2737 = vmatprep.subr.bf16.mxu0 0
        %2738 = vmatpush1.bf16.xpose.msra.mxu0 0
        %2739 = vmatprep.subr.bf16.mxu0 0
        %2740 = vmatpush1.bf16.xpose.msra.mxu0 0
        %2741 = vmatprep.subr.bf16.mxu0 0
        %2742 = vmatpush1.bf16.xpose.msra.mxu0 0
        %2743 = vmatprep.subr.bf16.mxu0 0
        %2744 = vmatpush1.bf16.xpose.msra.mxu0 0
        %2745 = vmatprep.subr.bf16.mxu0 0
        %2746 = vmatpush1.bf16.xpose.msra.mxu0 0
        %2747 = vmatprep.subr.bf16.mxu0 0
        %2748 = vmatpush1.bf16.xpose.msra.mxu0 0
        %2749 = vmatprep.subr.bf16.mxu0 0
        %2750 = vmatpush1.bf16.xpose.msra.mxu0 0
        %2751 = vmatprep.subr.bf16.mxu0 0
        %2752 = vmatpush1.bf16.xpose.msra.mxu0 0
        %2753 = vmatprep.subr.bf16.mxu0 0
        %2754 = vmatpush1.bf16.xpose.msra.mxu0 0
        %2755 = vmatprep.mubr.bf16.mxu0 0
        %2756 = vmatmul.mubr.bf16.gmra.mrb[0].mxu0 %v2718
        %v2757 = vpop.f32.mrb[0].mxu0
        %v2758 = vadd.f32 0.0, %v2757
        %v2759 = vpop.f32.mrb[0].mxu0
        %v2760 = vpop.f32.mrb[0].mxu0
        %v2761 = vpop.f32.mrb[0].mxu0
        %2762 = vdwg.mxu0
        %v2763 = vsel %vm1412, %v2758, -inf
        %2764 = vmax.xlane.f32.xlu0 %v2763
        %v2765 = vpop.xlane.xlu0 %2764
        %v2766 = vsub.f32 %v2758, %v2765
        %v2767 = vmul.f32 %v2766, 1.442695
        %v2768 = vpow.pop %v2767
        %v2769 = vsel %vm1412, %v2768, 0.0
        %2770 = vadd.xlane.f32.xlu0 %v2769
        %v2771 = vpop.xlane.xlu0 %2770
        %v2772 = vrcp.pop %v2771
        %v2773 = vmul.f32 %v2768, %v2772
        %v2774 = vpack.c.bf16 %v2773, %v2773
        %2776 = vrot.lane.b32.xlu0 %v2663, 120
        %v2777 = vpop.permute.xlu0 %2776
        %v2779 = vsel %vm1412, %v2774, 0
        %v2782 = vsel %vm1475, %v2777, 0
        %2784 = vmatprep.subr.bf16.mxu0 0
        %2785 = vmatpush1.bf16.msra.mxu0 %v2782
        %2786 = vmatprep.subr.bf16.mxu0 0
        %2787 = vmatpush1.bf16.msra.mxu0 0
        %2788 = vmatprep.subr.bf16.mxu0 0
        %2789 = vmatpush1.bf16.msra.mxu0 0
        %2790 = vmatprep.subr.bf16.mxu0 0
        %2791 = vmatpush1.bf16.msra.mxu0 0
        %2792 = vmatprep.subr.bf16.mxu0 0
        %2793 = vmatpush1.bf16.msra.mxu0 0
        %2794 = vmatprep.subr.bf16.mxu0 0
        %2795 = vmatpush1.bf16.msra.mxu0 0
        %2796 = vmatprep.subr.bf16.mxu0 0
        %2797 = vmatpush1.bf16.msra.mxu0 0
        %2798 = vmatprep.subr.bf16.mxu0 0
        %2799 = vmatpush1.bf16.msra.mxu0 0
        %2800 = vmatprep.subr.bf16.mxu0 0
        %2801 = vmatpush1.bf16.msra.mxu0 0
        %2802 = vmatprep.subr.bf16.mxu0 0
        %2803 = vmatpush1.bf16.msra.mxu0 0
        %2804 = vmatprep.subr.bf16.mxu0 0
        %2805 = vmatpush1.bf16.msra.mxu0 0
        %2806 = vmatprep.subr.bf16.mxu0 0
        %2807 = vmatpush1.bf16.msra.mxu0 0
        %2808 = vmatprep.subr.bf16.mxu0 0
        %2809 = vmatpush1.bf16.msra.mxu0 0
        %2810 = vmatprep.subr.bf16.mxu0 0
        %2811 = vmatpush1.bf16.msra.mxu0 0
        %2812 = vmatprep.subr.bf16.mxu0 0
        %2813 = vmatpush1.bf16.msra.mxu0 0
        %2814 = vmatprep.subr.bf16.mxu0 0
        %2815 = vmatpush1.bf16.msra.mxu0 0
        %2816 = vmatprep.mubr.bf16.mxu0 0
        %2817 = vmatmul.mubr.bf16.gmra.mrb[0].mxu0 %v2779
        %v2818 = vpop.f32.mrb[0].mxu0
        %v2819 = vadd.f32 0.0, %v2818
        %v2820 = vpop.f32.mrb[0].mxu0
        %v2821 = vpop.f32.mrb[0].mxu0
        %v2822 = vpop.f32.mrb[0].mxu0
        %2823 = vdwg.mxu0
        %v2824 = vpack.c.bf16 %v2819, %v2819
        %v2826 = vsel %vm1412, %v2824, 0
        %v2829 = vsel %vm1475, %v2594, 0
        %2831 = vmatprep.subr.bf16.mxu0 0
        %2832 = vmatpush1.bf16.msra.mxu0 %v2829
        %2833 = vmatprep.subr.bf16.mxu0 0
        %2834 = vmatpush1.bf16.msra.mxu0 0
        %2835 = vmatprep.subr.bf16.mxu0 0
        %2836 = vmatpush1.bf16.msra.mxu0 0
        %2837 = vmatprep.subr.bf16.mxu0 0
        %2838 = vmatpush1.bf16.msra.mxu0 0
        %2839 = vmatprep.subr.bf16.mxu0 0
        %2840 = vmatpush1.bf16.msra.mxu0 0
        %2841 = vmatprep.subr.bf16.mxu0 0
        %2842 = vmatpush1.bf16.msra.mxu0 0
        %2843 = vmatprep.subr.bf16.mxu0 0
        %2844 = vmatpush1.bf16.msra.mxu0 0
        %2845 = vmatprep.subr.bf16.mxu0 0
        %2846 = vmatpush1.bf16.msra.mxu0 0
        %2847 = vmatprep.subr.bf16.mxu0 0
        %2848 = vmatpush1.bf16.msra.mxu0 0
        %2849 = vmatprep.subr.bf16.mxu0 0
        %2850 = vmatpush1.bf16.msra.mxu0 0
        %2851 = vmatprep.subr.bf16.mxu0 0
        %2852 = vmatpush1.bf16.msra.mxu0 0
        %2853 = vmatprep.subr.bf16.mxu0 0
        %2854 = vmatpush1.bf16.msra.mxu0 0
        %2855 = vmatprep.subr.bf16.mxu0 0
        %2856 = vmatpush1.bf16.msra.mxu0 0
        %2857 = vmatprep.subr.bf16.mxu0 0
        %2858 = vmatpush1.bf16.msra.mxu0 0
        %2859 = vmatprep.subr.bf16.mxu0 0
        %2860 = vmatpush1.bf16.msra.mxu0 0
        %2861 = vmatprep.subr.bf16.mxu0 0
        %2862 = vmatpush1.bf16.msra.mxu0 0
        %2863 = vmatprep.mubr.bf16.mxu0 0
        %2864 = vmatmul.mubr.bf16.gmra.mrb[0].mxu0 %v2826
        %v2865 = vpop.f32.mrb[0].mxu0
        %v2866 = vadd.f32 0.0, %v2865
        %v2867 = vpop.f32.mrb[0].mxu0
        %v2868 = vpop.f32.mrb[0].mxu0
        %v2869 = vpop.f32.mrb[0].mxu0
        %2870 = vdwg.mxu0
        %v2872 = vsel %vm1412, %v2710, 0
        %v2875 = vsel %vm1475, %v2593, 0
        %2877 = vmatprep.subr.bf16.mxu0 0
        %2878 = vmatpush1.bf16.msra.mxu0 %v2875
        %2879 = vmatprep.subr.bf16.mxu0 0
        %2880 = vmatpush1.bf16.msra.mxu0 0
        %2881 = vmatprep.subr.bf16.mxu0 0
        %2882 = vmatpush1.bf16.msra.mxu0 0
        %2883 = vmatprep.subr.bf16.mxu0 0
        %2884 = vmatpush1.bf16.msra.mxu0 0
        %2885 = vmatprep.subr.bf16.mxu0 0
        %2886 = vmatpush1.bf16.msra.mxu0 0
        %2887 = vmatprep.subr.bf16.mxu0 0
        %2888 = vmatpush1.bf16.msra.mxu0 0
        %2889 = vmatprep.subr.bf16.mxu0 0
        %2890 = vmatpush1.bf16.msra.mxu0 0
        %2891 = vmatprep.subr.bf16.mxu0 0
        %2892 = vmatpush1.bf16.msra.mxu0 0
        %2893 = vmatprep.subr.bf16.mxu0 0
        %2894 = vmatpush1.bf16.msra.mxu0 0
        %2895 = vmatprep.subr.bf16.mxu0 0
        %2896 = vmatpush1.bf16.msra.mxu0 0
        %2897 = vmatprep.subr.bf16.mxu0 0
        %2898 = vmatpush1.bf16.msra.mxu0 0
        %2899 = vmatprep.subr.bf16.mxu0 0
        %2900 = vmatpush1.bf16.msra.mxu0 0
        %2901 = vmatprep.subr.bf16.mxu0 0
        %2902 = vmatpush1.bf16.msra.mxu0 0
        %2903 = vmatprep.subr.bf16.mxu0 0
        %2904 = vmatpush1.bf16.msra.mxu0 0
        %2905 = vmatprep.subr.bf16.mxu0 0
        %2906 = vmatpush1.bf16.msra.mxu0 0
        %2907 = vmatprep.subr.bf16.mxu0 0
        %2908 = vmatpush1.bf16.msra.mxu0 0
        %2909 = vmatprep.mubr.bf16.mxu0 0
        %2910 = vmatmul.mubr.bf16.gmra.mrb[0].mxu0 %v2872
        %v2911 = vpop.f32.mrb[0].mxu0
        %v2912 = vadd.f32 %v2866, %v2911
        %v2913 = vpop.f32.mrb[0].mxu0
        %v2914 = vpop.f32.mrb[0].mxu0
        %v2915 = vpop.f32.mrb[0].mxu0
        %2916 = vdwg.mxu0
        %2917 = vrot.lane.b32.xlu0 %v2603, 112
        %v2918 = vpop.permute.xlu0 %2917
        %2919 = vrot.lane.b32.xlu0 %v2604, 112
        %v2920 = vpop.permute.xlu0 %2919
        %v2922 = vsel %vm1412, %v2918, 0
        %v2925 = vsel %vm1412, %v2920, 0
        %2927 = vmatprep.subr.bf16.mxu0 0
        %2928 = vmatpush1.bf16.xpose.msra.mxu0 %v2925
        %2929 = vmatprep.subr.bf16.mxu0 0
        %2930 = vmatpush1.bf16.xpose.msra.mxu0 0
        %2931 = vmatprep.subr.bf16.mxu0 0
        %2932 = vmatpush1.bf16.xpose.msra.mxu0 0
        %2933 = vmatprep.subr.bf16.mxu0 0
        %2934 = vmatpush1.bf16.xpose.msra.mxu0 0
        %2935 = vmatprep.subr.bf16.mxu0 0
        %2936 = vmatpush1.bf16.xpose.msra.mxu0 0
        %2937 = vmatprep.subr.bf16.mxu0 0
        %2938 = vmatpush1.bf16.xpose.msra.mxu0 0
        %2939 = vmatprep.subr.bf16.mxu0 0
        %2940 = vmatpush1.bf16.xpose.msra.mxu0 0
        %2941 = vmatprep.subr.bf16.mxu0 0
        %2942 = vmatpush1.bf16.xpose.msra.mxu0 0
        %2943 = vmatprep.subr.bf16.mxu0 0
        %2944 = vmatpush1.bf16.xpose.msra.mxu0 0
        %2945 = vmatprep.subr.bf16.mxu0 0
        %2946 = vmatpush1.bf16.xpose.msra.mxu0 0
        %2947 = vmatprep.subr.bf16.mxu0 0
        %2948 = vmatpush1.bf16.xpose.msra.mxu0 0
        %2949 = vmatprep.subr.bf16.mxu0 0
        %2950 = vmatpush1.bf16.xpose.msra.mxu0 0
        %2951 = vmatprep.subr.bf16.mxu0 0
        %2952 = vmatpush1.bf16.xpose.msra.mxu0 0
        %2953 = vmatprep.subr.bf16.mxu0 0
        %2954 = vmatpush1.bf16.xpose.msra.mxu0 0
        %2955 = vmatprep.subr.bf16.mxu0 0
        %2956 = vmatpush1.bf16.xpose.msra.mxu0 0
        %2957 = vmatprep.subr.bf16.mxu0 0
        %2958 = vmatpush1.bf16.xpose.msra.mxu0 0
        %2959 = vmatprep.mubr.bf16.mxu0 0
        %2960 = vmatmul.mubr.bf16.gmra.mrb[0].mxu0 %v2922
        %v2961 = vpop.f32.mrb[0].mxu0
        %v2962 = vadd.f32 0.0, %v2961
        %v2963 = vpop.f32.mrb[0].mxu0
        %v2964 = vpop.f32.mrb[0].mxu0
        %v2965 = vpop.f32.mrb[0].mxu0
        %2966 = vdwg.mxu0
        %v2967 = vsel %vm1412, %v2962, -inf
        %2968 = vmax.xlane.f32.xlu0 %v2967
        %v2969 = vpop.xlane.xlu0 %2968
        %v2970 = vsub.f32 %v2962, %v2969
        %v2971 = vmul.f32 %v2970, 1.442695
        %v2972 = vpow.pop %v2971
        %v2973 = vsel %vm1412, %v2972, 0.0
        %2974 = vadd.xlane.f32.xlu0 %v2973
        %v2975 = vpop.xlane.xlu0 %2974
        %v2976 = vrcp.pop %v2975
        %v2977 = vmul.f32 %v2972, %v2976
        %v2978 = vpack.c.bf16 %v2977, %v2977
        %2979 = vrot.lane.b32.xlu0 %v2663, 112
        %v2980 = vpop.permute.xlu0 %2979
        %v2982 = vsel %vm1412, %v2978, 0
        %v2985 = vsel %vm1475, %v2980, 0
        %2987 = vmatprep.subr.bf16.mxu0 0
        %2988 = vmatpush1.bf16.msra.mxu0 %v2985
        %2989 = vmatprep.subr.bf16.mxu0 0
        %2990 = vmatpush1.bf16.msra.mxu0 0
        %2991 = vmatprep.subr.bf16.mxu0 0
        %2992 = vmatpush1.bf16.msra.mxu0 0
        %2993 = vmatprep.subr.bf16.mxu0 0
        %2994 = vmatpush1.bf16.msra.mxu0 0
        %2995 = vmatprep.subr.bf16.mxu0 0
        %2996 = vmatpush1.bf16.msra.mxu0 0
        %2997 = vmatprep.subr.bf16.mxu0 0
        %2998 = vmatpush1.bf16.msra.mxu0 0
        %2999 = vmatprep.subr.bf16.mxu0 0
        %3000 = vmatpush1.bf16.msra.mxu0 0
        %3001 = vmatprep.subr.bf16.mxu0 0
        %3002 = vmatpush1.bf16.msra.mxu0 0
        %3003 = vmatprep.subr.bf16.mxu0 0
        %3004 = vmatpush1.bf16.msra.mxu0 0
        %3005 = vmatprep.subr.bf16.mxu0 0
        %3006 = vmatpush1.bf16.msra.mxu0 0
        %3007 = vmatprep.subr.bf16.mxu0 0
        %3008 = vmatpush1.bf16.msra.mxu0 0
        %3009 = vmatprep.subr.bf16.mxu0 0
        %3010 = vmatpush1.bf16.msra.mxu0 0
        %3011 = vmatprep.subr.bf16.mxu0 0
        %3012 = vmatpush1.bf16.msra.mxu0 0
        %3013 = vmatprep.subr.bf16.mxu0 0
        %3014 = vmatpush1.bf16.msra.mxu0 0
        %3015 = vmatprep.subr.bf16.mxu0 0
        %3016 = vmatpush1.bf16.msra.mxu0 0
        %3017 = vmatprep.subr.bf16.mxu0 0
        %3018 = vmatpush1.bf16.msra.mxu0 0
        %3019 = vmatprep.mubr.bf16.mxu0 0
        %3020 = vmatmul.mubr.bf16.gmra.mrb[0].mxu0 %v2982
        %v3021 = vpop.f32.mrb[0].mxu0
        %v3022 = vadd.f32 0.0, %v3021
        %v3023 = vpop.f32.mrb[0].mxu0
        %v3024 = vpop.f32.mrb[0].mxu0
        %v3025 = vpop.f32.mrb[0].mxu0
        %3026 = vdwg.mxu0
        %v3027 = vpack.c.bf16 %v3022, %v3022
        %v3029 = vsel %vm1412, %v3027, 0
        %v3032 = vsel %vm1475, %v2595, 0
        %3034 = vmatprep.subr.bf16.mxu0 0
        %3035 = vmatpush1.bf16.msra.mxu0 %v3032
        %3036 = vmatprep.subr.bf16.mxu0 0
        %3037 = vmatpush1.bf16.msra.mxu0 0
        %3038 = vmatprep.subr.bf16.mxu0 0
        %3039 = vmatpush1.bf16.msra.mxu0 0
        %3040 = vmatprep.subr.bf16.mxu0 0
        %3041 = vmatpush1.bf16.msra.mxu0 0
        %3042 = vmatprep.subr.bf16.mxu0 0
        %3043 = vmatpush1.bf16.msra.mxu0 0
        %3044 = vmatprep.subr.bf16.mxu0 0
        %3045 = vmatpush1.bf16.msra.mxu0 0
        %3046 = vmatprep.subr.bf16.mxu0 0
        %3047 = vmatpush1.bf16.msra.mxu0 0
        %3048 = vmatprep.subr.bf16.mxu0 0
        %3049 = vmatpush1.bf16.msra.mxu0 0
        %3050 = vmatprep.subr.bf16.mxu0 0
        %3051 = vmatpush1.bf16.msra.mxu0 0
        %3052 = vmatprep.subr.bf16.mxu0 0
        %3053 = vmatpush1.bf16.msra.mxu0 0
        %3054 = vmatprep.subr.bf16.mxu0 0
        %3055 = vmatpush1.bf16.msra.mxu0 0
        %3056 = vmatprep.subr.bf16.mxu0 0
        %3057 = vmatpush1.bf16.msra.mxu0 0
        %3058 = vmatprep.subr.bf16.mxu0 0
        %3059 = vmatpush1.bf16.msra.mxu0 0
        %3060 = vmatprep.subr.bf16.mxu0 0
        %3061 = vmatpush1.bf16.msra.mxu0 0
        %3062 = vmatprep.subr.bf16.mxu0 0
        %3063 = vmatpush1.bf16.msra.mxu0 0
        %3064 = vmatprep.subr.bf16.mxu0 0
        %3065 = vmatpush1.bf16.msra.mxu0 0
        %3066 = vmatprep.mubr.bf16.mxu0 0
        %3067 = vmatmul.mubr.bf16.gmra.mrb[0].mxu0 %v3029
        %v3068 = vpop.f32.mrb[0].mxu0
        %v3069 = vadd.f32 0.0, %v3068
        %v3070 = vpop.f32.mrb[0].mxu0
        %v3071 = vpop.f32.mrb[0].mxu0
        %v3072 = vpop.f32.mrb[0].mxu0
        %3073 = vdwg.mxu0
        %v3074 = vadd.f32 %v2912, %v3069
        %3075 = vrot.lane.b32.xlu0 %v2603, 104
        %v3076 = vpop.permute.xlu0 %3075
        %3077 = vrot.lane.b32.xlu0 %v2604, 104
        %v3078 = vpop.permute.xlu0 %3077
        %v3080 = vsel %vm1412, %v3076, 0
        %v3083 = vsel %vm1412, %v3078, 0
        %3085 = vmatprep.subr.bf16.mxu0 0
        %3086 = vmatpush1.bf16.xpose.msra.mxu0 %v3083
        %3087 = vmatprep.subr.bf16.mxu0 0
        %3088 = vmatpush1.bf16.xpose.msra.mxu0 0
        %3089 = vmatprep.subr.bf16.mxu0 0
        %3090 = vmatpush1.bf16.xpose.msra.mxu0 0
        %3091 = vmatprep.subr.bf16.mxu0 0
        %3092 = vmatpush1.bf16.xpose.msra.mxu0 0
        %3093 = vmatprep.subr.bf16.mxu0 0
        %3094 = vmatpush1.bf16.xpose.msra.mxu0 0
        %3095 = vmatprep.subr.bf16.mxu0 0
        %3096 = vmatpush1.bf16.xpose.msra.mxu0 0
        %3097 = vmatprep.subr.bf16.mxu0 0
        %3098 = vmatpush1.bf16.xpose.msra.mxu0 0
        %3099 = vmatprep.subr.bf16.mxu0 0
        %3100 = vmatpush1.bf16.xpose.msra.mxu0 0
        %3101 = vmatprep.subr.bf16.mxu0 0
        %3102 = vmatpush1.bf16.xpose.msra.mxu0 0
        %3103 = vmatprep.subr.bf16.mxu0 0
        %3104 = vmatpush1.bf16.xpose.msra.mxu0 0
        %3105 = vmatprep.subr.bf16.mxu0 0
        %3106 = vmatpush1.bf16.xpose.msra.mxu0 0
        %3107 = vmatprep.subr.bf16.mxu0 0
        %3108 = vmatpush1.bf16.xpose.msra.mxu0 0
        %3109 = vmatprep.subr.bf16.mxu0 0
        %3110 = vmatpush1.bf16.xpose.msra.mxu0 0
        %3111 = vmatprep.subr.bf16.mxu0 0
        %3112 = vmatpush1.bf16.xpose.msra.mxu0 0
        %3113 = vmatprep.subr.bf16.mxu0 0
        %3114 = vmatpush1.bf16.xpose.msra.mxu0 0
        %3115 = vmatprep.subr.bf16.mxu0 0
        %3116 = vmatpush1.bf16.xpose.msra.mxu0 0
        %3117 = vmatprep.mubr.bf16.mxu0 0
        %3118 = vmatmul.mubr.bf16.gmra.mrb[0].mxu0 %v3080
        %v3119 = vpop.f32.mrb[0].mxu0
        %v3120 = vadd.f32 0.0, %v3119
        %v3121 = vpop.f32.mrb[0].mxu0
        %v3122 = vpop.f32.mrb[0].mxu0
        %v3123 = vpop.f32.mrb[0].mxu0
        %3124 = vdwg.mxu0
        %v3125 = vsel %vm1412, %v3120, -inf
        %3126 = vmax.xlane.f32.xlu0 %v3125
        %v3127 = vpop.xlane.xlu0 %3126
        %v3128 = vsub.f32 %v3120, %v3127
        %v3129 = vmul.f32 %v3128, 1.442695
        %v3130 = vpow.pop %v3129
        %v3131 = vsel %vm1412, %v3130, 0.0
        %3132 = vadd.xlane.f32.xlu0 %v3131
        %v3133 = vpop.xlane.xlu0 %3132
        %v3134 = vrcp.pop %v3133
        %v3135 = vmul.f32 %v3130, %v3134
        %v3136 = vpack.c.bf16 %v3135, %v3135
        %3137 = vrot.lane.b32.xlu0 %v2663, 104
        %v3138 = vpop.permute.xlu0 %3137
        %v3140 = vsel %vm1412, %v3136, 0
        %v3143 = vsel %vm1475, %v3138, 0
        %3145 = vmatprep.subr.bf16.mxu0 0
        %3146 = vmatpush1.bf16.msra.mxu0 %v3143
        %3147 = vmatprep.subr.bf16.mxu0 0
        %3148 = vmatpush1.bf16.msra.mxu0 0
        %3149 = vmatprep.subr.bf16.mxu0 0
        %3150 = vmatpush1.bf16.msra.mxu0 0
        %3151 = vmatprep.subr.bf16.mxu0 0
        %3152 = vmatpush1.bf16.msra.mxu0 0
        %3153 = vmatprep.subr.bf16.mxu0 0
        %3154 = vmatpush1.bf16.msra.mxu0 0
        %3155 = vmatprep.subr.bf16.mxu0 0
        %3156 = vmatpush1.bf16.msra.mxu0 0
        %3157 = vmatprep.subr.bf16.mxu0 0
        %3158 = vmatpush1.bf16.msra.mxu0 0
        %3159 = vmatprep.subr.bf16.mxu0 0
        %3160 = vmatpush1.bf16.msra.mxu0 0
        %3161 = vmatprep.subr.bf16.mxu0 0
        %3162 = vmatpush1.bf16.msra.mxu0 0
        %3163 = vmatprep.subr.bf16.mxu0 0
        %3164 = vmatpush1.bf16.msra.mxu0 0
        %3165 = vmatprep.subr.bf16.mxu0 0
        %3166 = vmatpush1.bf16.msra.mxu0 0
        %3167 = vmatprep.subr.bf16.mxu0 0
        %3168 = vmatpush1.bf16.msra.mxu0 0
        %3169 = vmatprep.subr.bf16.mxu0 0
        %3170 = vmatpush1.bf16.msra.mxu0 0
        %3171 = vmatprep.subr.bf16.mxu0 0
        %3172 = vmatpush1.bf16.msra.mxu0 0
        %3173 = vmatprep.subr.bf16.mxu0 0
        %3174 = vmatpush1.bf16.msra.mxu0 0
        %3175 = vmatprep.subr.bf16.mxu0 0
        %3176 = vmatpush1.bf16.msra.mxu0 0
        %3177 = vmatprep.mubr.bf16.mxu0 0
        %3178 = vmatmul.mubr.bf16.gmra.mrb[0].mxu0 %v3140
        %v3179 = vpop.f32.mrb[0].mxu0
        %v3180 = vadd.f32 0.0, %v3179
        %v3181 = vpop.f32.mrb[0].mxu0
        %v3182 = vpop.f32.mrb[0].mxu0
        %v3183 = vpop.f32.mrb[0].mxu0
        %3184 = vdwg.mxu0
        %v3185 = vpack.c.bf16 %v3180, %v3180
        %v3187 = vsel %vm1412, %v3185, 0
        %v3190 = vsel %vm1475, %v2596, 0
        %3192 = vmatprep.subr.bf16.mxu0 0
        %3193 = vmatpush1.bf16.msra.mxu0 %v3190
        %3194 = vmatprep.subr.bf16.mxu0 0
        %3195 = vmatpush1.bf16.msra.mxu0 0
        %3196 = vmatprep.subr.bf16.mxu0 0
        %3197 = vmatpush1.bf16.msra.mxu0 0
        %3198 = vmatprep.subr.bf16.mxu0 0
        %3199 = vmatpush1.bf16.msra.mxu0 0
        %3200 = vmatprep.subr.bf16.mxu0 0
        %3201 = vmatpush1.bf16.msra.mxu0 0
        %3202 = vmatprep.subr.bf16.mxu0 0
        %3203 = vmatpush1.bf16.msra.mxu0 0
        %3204 = vmatprep.subr.bf16.mxu0 0
        %3205 = vmatpush1.bf16.msra.mxu0 0
        %3206 = vmatprep.subr.bf16.mxu0 0
        %3207 = vmatpush1.bf16.msra.mxu0 0
        %3208 = vmatprep.subr.bf16.mxu0 0
        %3209 = vmatpush1.bf16.msra.mxu0 0
        %3210 = vmatprep.subr.bf16.mxu0 0
        %3211 = vmatpush1.bf16.msra.mxu0 0
        %3212 = vmatprep.subr.bf16.mxu0 0
        %3213 = vmatpush1.bf16.msra.mxu0 0
        %3214 = vmatprep.subr.bf16.mxu0 0
        %3215 = vmatpush1.bf16.msra.mxu0 0
        %3216 = vmatprep.subr.bf16.mxu0 0
        %3217 = vmatpush1.bf16.msra.mxu0 0
        %3218 = vmatprep.subr.bf16.mxu0 0
        %3219 = vmatpush1.bf16.msra.mxu0 0
        %3220 = vmatprep.subr.bf16.mxu0 0
        %3221 = vmatpush1.bf16.msra.mxu0 0
        %3222 = vmatprep.subr.bf16.mxu0 0
        %3223 = vmatpush1.bf16.msra.mxu0 0
        %3224 = vmatprep.mubr.bf16.mxu0 0
        %3225 = vmatmul.mubr.bf16.gmra.mrb[0].mxu0 %v3187
        %v3226 = vpop.f32.mrb[0].mxu0
        %v3227 = vadd.f32 0.0, %v3226
        %v3228 = vpop.f32.mrb[0].mxu0
        %v3229 = vpop.f32.mrb[0].mxu0
        %v3230 = vpop.f32.mrb[0].mxu0
        %3231 = vdwg.mxu0
        %v3232 = vadd.f32 %v3074, %v3227
        %s3233 = scalar_lea.vmem [#allocation16], 1
        %v3234 = vld [vmem:[%s3233] sm:$0x1]
        %v3236 = vlaneseq
        %v3237 = vshrl.u32 %v3236, 7
        %v3238 = vsub.s32 0, %v3237
        %v3239 = vrot.slane %v3234, %v3238
        %v3241 = vadd.f32 %v3232, %v3239
        %v3242 = vadd.f32 %v2262, %v3241
        %s3243 = scalar_lea.vmem [#allocation22], 1
        %v3244 = vld [vmem:[%s3243] sm:$0x1]
        %s3245 = scalar_lea.vmem [#allocation23], 1
        %v3246 = vld [vmem:[%s3245] sm:$0x1]
        %v3247 = vsel %vm1104, %v3242, 0.0
        %3248 = vadd.xlane.f32.xlu0 %v3247
        %v3249 = vpop.xlane.xlu0 %3248
        %v3250 = vmul.f32 %v3249, %v2056
        %v3251 = vsub.f32 %v3242, %v3250
        %v3252 = vmul.f32 %v3251, %v3251
        %v3253 = vsel %vm1104, %v3252, 0.0
        %3254 = vadd.xlane.f32.xlu0 %v3253
        %v3255 = vpop.xlane.xlu0 %3254
        %v3256 = vmul.f32 %v3255, %v2056
        %v3257 = vadd.f32 %v3256, 1e-05
        %v3258 = vrsqrt.pop %v3257
        %v3259 = vmul.f32 %v3251, %v3258
        %v3261 = vlaneseq
        %v3262 = vshrl.u32 %v3261, 7
        %v3263 = vsub.s32 0, %v3262
        %v3264 = vrot.slane %v3244, %v3263
        %v3266 = vmul.f32 %v3259, %v3264
        %v3268 = vlaneseq
        %v3269 = vshrl.u32 %v3268, 7
        %v3270 = vsub.s32 0, %v3269
        %v3271 = vrot.slane %v3246, %v3270
        %v3273 = vadd.f32 %v3266, %v3271
        %v3274 = vpack.c.bf16 %v3273, %v3273
        %s3275 = scalar_lea.vmem [#allocation17], 16
        %v3276 = vld [vmem:[%s3275] sm:$0xf]
        %v3277 = vld [vmem:[%s3275 + $0x4] sm:$0xf]
        %v3278 = vld [vmem:[%s3275 + $0x8] sm:$0xf]
        %v3279 = vld [vmem:[%s3275 + $0xc] sm:$0xf]
        %s3280 = scalar_lea.vmem [#allocation19], 1
        %v3281 = vld [vmem:[%s3280] sm:$0x1]
        %v3283 = vlaneseq
        %v3284 = vshrl.u32 %v3283, 7
        %v3285 = vsub.s32 0, %v3284
        %v3286 = vrot.slane %v3281, %v3285
        %v3292 = vunpack.c.l.b16 %v3276
        %v3293 = vunpack.c.l.b16 %v3277
        %v3294 = vunpack.c.l.b16 %v3278
        %v3295 = vunpack.c.l.b16 %v3279
        %v3296 = vpack.c.b16 %v3293, %v3292
        %v3297 = vpack.c.b16 %v3295, %v3294
        %v3301 = vsel %vm1104, %v3274, 0
        %3303 = vmatprep.subr.bf16.mxu0 0
        %3304 = vmatpush1.bf16.msra.mxu0 %v3296
        %3305 = vmatprep.subr.bf16.mxu0 0
        %3306 = vmatpush1.bf16.msra.mxu0 %v3297
        %3307 = vmatprep.subr.bf16.mxu0 0
        %3308 = vmatpush1.bf16.msra.mxu0 0
        %3309 = vmatprep.subr.bf16.mxu0 0
        %3310 = vmatpush1.bf16.msra.mxu0 0
        %3311 = vmatprep.subr.bf16.mxu0 0
        %3312 = vmatpush1.bf16.msra.mxu0 0
        %3313 = vmatprep.subr.bf16.mxu0 0
        %3314 = vmatpush1.bf16.msra.mxu0 0
        %3315 = vmatprep.subr.bf16.mxu0 0
        %3316 = vmatpush1.bf16.msra.mxu0 0
        %3317 = vmatprep.subr.bf16.mxu0 0
        %3318 = vmatpush1.bf16.msra.mxu0 0
        %3319 = vmatprep.subr.bf16.mxu0 0
        %3320 = vmatpush1.bf16.msra.mxu0 0
        %3321 = vmatprep.subr.bf16.mxu0 0
        %3322 = vmatpush1.bf16.msra.mxu0 0
        %3323 = vmatprep.subr.bf16.mxu0 0
        %3324 = vmatpush1.bf16.msra.mxu0 0
        %3325 = vmatprep.subr.bf16.mxu0 0
        %3326 = vmatpush1.bf16.msra.mxu0 0
        %3327 = vmatprep.subr.bf16.mxu0 0
        %3328 = vmatpush1.bf16.msra.mxu0 0
        %3329 = vmatprep.subr.bf16.mxu0 0
        %3330 = vmatpush1.bf16.msra.mxu0 0
        %3331 = vmatprep.subr.bf16.mxu0 0
        %3332 = vmatpush1.bf16.msra.mxu0 0
        %3333 = vmatprep.subr.bf16.mxu0 0
        %3334 = vmatpush1.bf16.msra.mxu0 0
        %3335 = vmatprep.mubr.bf16.mxu0 0
        %3336 = vmatmul.mubr.bf16.gmra.mrb[0].mxu0 %v3301
        %v3337 = vpop.f32.mrb[0].mxu0
        %v3338 = vadd.f32 %v3286, %v3337
        %v3339 = vpop.f32.mrb[0].mxu0
        %v3340 = vpop.f32.mrb[0].mxu0
        %v3341 = vpop.f32.mrb[0].mxu0
        %3342 = vdwg.mxu0
        %v3343 = vmax.f32 %v3338, 0.0
        %v3344 = vpack.c.bf16 %v3343, %v3343
        %s3345 = scalar_lea.vmem %s17, 32
        %v3346 = vld [vmem:[%s3345] sm:$0xf]
        %v3347 = vld [vmem:[%s3345 + $0x4] sm:$0xf]
        %v3348 = vld [vmem:[%s3345 + $0x8] sm:$0xf]
        %v3349 = vld [vmem:[%s3345 + $0xc] sm:$0xf]
        %v3350 = vld [vmem:[%s3345 + $0x10] sm:$0xf]
        %v3351 = vld [vmem:[%s3345 + $0x14] sm:$0xf]
        %v3352 = vld [vmem:[%s3345 + $0x18] sm:$0xf]
        %v3353 = vld [vmem:[%s3345 + $0x1c] sm:$0xf]
        %s3354 = scalar_lea.vmem [#allocation20], 1
        %v3355 = vld [vmem:[%s3354] sm:$0x1]
        %v3357 = vlaneseq
        %v3358 = vshrl.u32 %v3357, 7
        %v3359 = vsub.s32 0, %v3358
        %v3360 = vrot.slane %v3355, %v3359
        %v3370 = vunpack.c.l.b16 %v3346
        %v3371 = vunpack.c.l.b16 %v3347
        %v3372 = vunpack.c.l.b16 %v3348
        %v3373 = vunpack.c.l.b16 %v3349
        %v3374 = vunpack.c.l.b16 %v3350
        %v3375 = vunpack.c.l.b16 %v3351
        %v3376 = vunpack.c.l.b16 %v3352
        %v3377 = vunpack.c.l.b16 %v3353
        %v3378 = vpack.c.b16 %v3371, %v3370
        %v3379 = vpack.c.b16 %v3373, %v3372
        %v3380 = vpack.c.b16 %v3375, %v3374
        %v3381 = vpack.c.b16 %v3377, %v3376
        %v3387 = vsel %vm2189, %v3344, 0
        %3389 = vmatprep.subr.bf16.mxu0 0
        %3390 = vmatpush1.bf16.msra.mxu0 %v3378
        %3391 = vmatprep.subr.bf16.mxu0 0
        %3392 = vmatpush1.bf16.msra.mxu0 %v3379
        %3393 = vmatprep.subr.bf16.mxu0 0
        %3394 = vmatpush1.bf16.msra.mxu0 %v3380
        %3395 = vmatprep.subr.bf16.mxu0 0
        %3396 = vmatpush1.bf16.msra.mxu0 %v3381
        %3397 = vmatprep.subr.bf16.mxu0 0
        %3398 = vmatpush1.bf16.msra.mxu0 0
        %3399 = vmatprep.subr.bf16.mxu0 0
        %3400 = vmatpush1.bf16.msra.mxu0 0
        %3401 = vmatprep.subr.bf16.mxu0 0
        %3402 = vmatpush1.bf16.msra.mxu0 0
        %3403 = vmatprep.subr.bf16.mxu0 0
        %3404 = vmatpush1.bf16.msra.mxu0 0
        %3405 = vmatprep.subr.bf16.mxu0 0
        %3406 = vmatpush1.bf16.msra.mxu0 0
        %3407 = vmatprep.subr.bf16.mxu0 0
        %3408 = vmatpush1.bf16.msra.mxu0 0
        %3409 = vmatprep.subr.bf16.mxu0 0
        %3410 = vmatpush1.bf16.msra.mxu0 0
        %3411 = vmatprep.subr.bf16.mxu0 0
        %3412 = vmatpush1.bf16.msra.mxu0 0
        %3413 = vmatprep.subr.bf16.mxu0 0
        %3414 = vmatpush1.bf16.msra.mxu0 0
        %3415 = vmatprep.subr.bf16.mxu0 0
        %3416 = vmatpush1.bf16.msra.mxu0 0
        %3417 = vmatprep.subr.bf16.mxu0 0
        %3418 = vmatpush1.bf16.msra.mxu0 0
        %3419 = vmatprep.subr.bf16.mxu0 0
        %3420 = vmatpush1.bf16.msra.mxu0 0
        %3421 = vmatprep.mubr.bf16.mxu0 0
        %3422 = vmatmul.mubr.bf16.gmra.mrb[0].mxu0 %v3387
        %v3423 = vpop.f32.mrb[0].mxu0
        %v3424 = vadd.f32 %v3360, %v3423
        %v3425 = vpop.f32.mrb[0].mxu0
        %v3426 = vpop.f32.mrb[0].mxu0
        %v3427 = vpop.f32.mrb[0].mxu0
        %3428 = vdwg.mxu0
        %v3429 = vadd.f32 %v3273, %v3424
        %s3430 = scalar_lea.vmem %s21, 1
        %v3431 = vld [vmem:[%s3430] sm:$0x1]
        %s3432 = scalar_lea.vmem %s22, 1
        %v3433 = vld [vmem:[%s3432] sm:$0x1]
        %v3434 = vsel %vm1104, %v3429, 0.0
        %3435 = vadd.xlane.f32.xlu0 %v3434
        %v3436 = vpop.xlane.xlu0 %3435
        %v3437 = vmul.f32 %v3436, %v2056
        %v3438 = vsub.f32 %v3429, %v3437
        %v3439 = vmul.f32 %v3438, %v3438
        %v3440 = vsel %vm1104, %v3439, 0.0
        %3441 = vadd.xlane.f32.xlu0 %v3440
        %v3442 = vpop.xlane.xlu0 %3441
        %v3443 = vmul.f32 %v3442, %v2056
        %v3444 = vadd.f32 %v3443, 1e-05
        %v3445 = vrsqrt.pop %v3444
        %v3446 = vmul.f32 %v3438, %v3445
        %v3448 = vlaneseq
        %v3449 = vshrl.u32 %v3448, 7
        %v3450 = vsub.s32 0, %v3449
        %v3451 = vrot.slane %v3431, %v3450
        %v3453 = vmul.f32 %v3446, %v3451
        %v3455 = vlaneseq
        %v3456 = vshrl.u32 %v3455, 7
        %v3457 = vsub.s32 0, %v3456
        %v3458 = vrot.slane %v3433, %v3457
        %v3460 = vadd.f32 %v3453, %v3458
        %v3461 = vpack.c.bf16 %v3460, %v3460
        %v3462 = vld [vmem:[%s25] sm:$0xf]
        %v3463 = vld [vmem:[%s25 + $0x4] sm:$0xf]
        %v3464 = vld [vmem:[%s25 + $0x8] sm:$0xf]
        %v3465 = vld [vmem:[%s25 + $0xc] sm:$0xf]
        %v3466 = vld [vmem:[%s26] sm:$0x1]
        %v3468 = vlaneseq
        %v3469 = vshrl.u32 %v3468, 7
        %v3470 = vsub.s32 0, %v3469
        %v3471 = vrot.slane %v3466, %v3470
        %v3477 = vunpack.c.l.b16 %v3462
        %v3478 = vunpack.c.l.b16 %v3463
        %v3479 = vunpack.c.l.b16 %v3464
        %v3480 = vunpack.c.l.b16 %v3465
        %v3481 = vpack.c.b16 %v3478, %v3477
        %v3482 = vpack.c.b16 %v3480, %v3479
        %v3486 = vsel %vm1104, %v3461, 0
        %3488 = vmatprep.subr.bf16.mxu0 0
        %3489 = vmatpush1.bf16.msra.mxu0 %v3481
        %3490 = vmatprep.subr.bf16.mxu0 0
        %3491 = vmatpush1.bf16.msra.mxu0 %v3482
        %3492 = vmatprep.subr.bf16.mxu0 0
        %3493 = vmatpush1.bf16.msra.mxu0 0
        %3494 = vmatprep.subr.bf16.mxu0 0
        %3495 = vmatpush1.bf16.msra.mxu0 0
        %3496 = vmatprep.subr.bf16.mxu0 0
        %3497 = vmatpush1.bf16.msra.mxu0 0
        %3498 = vmatprep.subr.bf16.mxu0 0
        %3499 = vmatpush1.bf16.msra.mxu0 0
        %3500 = vmatprep.subr.bf16.mxu0 0
        %3501 = vmatpush1.bf16.msra.mxu0 0
        %3502 = vmatprep.subr.bf16.mxu0 0
        %3503 = vmatpush1.bf16.msra.mxu0 0
        %3504 = vmatprep.subr.bf16.mxu0 0
        %3505 = vmatpush1.bf16.msra.mxu0 0
        %3506 = vmatprep.subr.bf16.mxu0 0
        %3507 = vmatpush1.bf16.msra.mxu0 0
        %3508 = vmatprep.subr.bf16.mxu0 0
        %3509 = vmatpush1.bf16.msra.mxu0 0
        %3510 = vmatprep.subr.bf16.mxu0 0
        %3511 = vmatpush1.bf16.msra.mxu0 0
        %3512 = vmatprep.subr.bf16.mxu0 0
        %3513 = vmatpush1.bf16.msra.mxu0 0
        %3514 = vmatprep.subr.bf16.mxu0 0
        %3515 = vmatpush1.bf16.msra.mxu0 0
        %3516 = vmatprep.subr.bf16.mxu0 0
        %3517 = vmatpush1.bf16.msra.mxu0 0
        %3518 = vmatprep.subr.bf16.mxu0 0
        %3519 = vmatpush1.bf16.msra.mxu0 0
        %3520 = vmatprep.mubr.bf16.mxu0 0
        %3521 = vmatmul.mubr.bf16.gmra.mrb[0].mxu0 %v3486
        %v3522 = vpop.f32.mrb[0].mxu0
        %v3523 = vadd.f32 %v3471, %v3522
        %v3524 = vpop.f32.mrb[0].mxu0
        %v3525 = vpop.f32.mrb[0].mxu0
        %v3526 = vpop.f32.mrb[0].mxu0
        %3527 = vdwg.mxu0
        %3528 = vst [vmem:[%s1011] sm:$0xff] %v3523
        %s3529 = sand.u32 %s629, 1
        %s3530 = scalar_lea.sflag [#allocation4], %s3529
        %s3531 = sand.u32 %s629, 1
        %s3532 = smul.addr %s3531, 8
        %s3533 = scalar_lea.vmem [#allocation25], %s3532
        // Predicated region
        $region185: #{tpu_custom_call.1} parent=127 // pred_check
          %p3534 = pneg %p639
        $region186: #{tpu_custom_call.1} parent=127 // pred_check_branch
          %3536 = sbr.rel (%p3534) target = $region188
        $region187: #{tpu_custom_call.1} parent=127 // pred_region
          %s3538 = ssub.s32 128, 128
          %3539 = vsyncadd %s3530, %s3538
          %s3540 = smul.addr %s49, 128
          %s3541 = scalar_lea.hbm %s27, %s3540
          %s3543 = sshll.u32 %s3533, 4
          %s3544 = int_to_ptr.vmem [resolvable:$true] %s3543
          %3546 = dma.vmem_to_hbm [thread:$0]  %s3544, 128, %s3541, %s3530
        $region188: #{tpu_custom_call.1} parent=127 // pred_fallthru
          _
      $region128: #{tpu_custom_call.1} parent=5 // pred_fallthru
        _
      %p3547 = scmp.le.s32.totalorder 2, %s44
      // Predicated region
      $region189: #{tpu_custom_call.1} parent=5 // pred_check
        %p3548 = pneg %p3547
      $region190: #{tpu_custom_call.1} parent=5 // pred_check_branch
        %3550 = sbr.rel (%p3548) target = $region192
      $region191: #{tpu_custom_call.1} parent=5 // pred_region
        %s3551 = ssub.s32 %s44, 2
        // Predicated region
        $region193: #{tpu_custom_call.1} parent=191 // pred_check
          %p3552 = pneg %p645
        $region194: #{tpu_custom_call.1} parent=191 // pred_check_branch
          %3554 = sbr.rel (%p3552) target = $region196
        $region195: #{tpu_custom_call.1} parent=191 // pred_region
          %s3555 = sand.u32 %s630, 1
          %s3556 = scalar_lea.sflag [#allocation4], %s3555
          %s3557 = sand.u32 %s630, 1
          %s3558 = smul.addr %s3557, 8
          %s3559 = scalar_lea.vmem [#allocation25], %s3558
          %3560 = dma.done %s3556, 128
        $region196: #{tpu_custom_call.1} parent=191 // pred_fallthru
          _
      $region192: #{tpu_custom_call.1} parent=5 // pred_fallthru
        _
    $region6: #{tpu_custom_call.1} parent=1 // loop_footer
      %s48 = sadd.s32 1, %s44
    $region7: #{tpu_custom_call.1} parent=1 // loop_footer_branch
      %43 = sbr.rel target = $region3
    $region8: #{tpu_custom_call.1} parent=1 // loop_exit
      _
    %3561 = vsyncpa [#allocation3], 1
    %s3562 = scalar_lea.sflag [#allocation3], 1
    %3563 = vsyncpa %s3562, 1
    %3564 = vsyncpa [#allocation6], 1
    %3565 = vsyncpa [#allocation9], 1
    %3566 = vsyncpa [#allocation12], 1
    %3567 = vsyncpa [#allocation15], 1
    %3568 = vsyncpa [#allocation18], 1
    %3569 = vsyncpa [#allocation21], 1
    %3570 = vsyncpa [#allocation24], 1
    %3571 = vsyncpa [#allocation4], 1
    %s3572 = scalar_lea.sflag [#allocation4], 1
    %3573 = vsyncpa %s3572, 1

</llo_original>
